<compile_context>
chip_gen: v6e
topology: v6e:2x2x1
jax: 0.10.0
libtpu: 0.0.40
codegen_flags: <defaults>
</compile_context>

<pallas_src>
import functools
import math

import jax
import jax.numpy as jnp
from jax.experimental import pallas as pl
from jax.experimental.pallas import tpu as pltpu


# ----------------------------------------------------------------------------
# Pallas kernels
# ----------------------------------------------------------------------------
def _conv_none_kernel(K, dB, padl_lanes, n_out,
                      x_ref, w_ref, sc_ref, sh_ref, o_ref, xp_ref):
    """'same' stride-1 conv + folded (bias/BN) affine, no activation.

    x_ref: (Cin, N_in) f32, w_ref: (K, Cout, Cin) bf16, sc/sh: (Cout,1) f32,
    o_ref: (Cout, n_out) f32, xp_ref: (Cin, N_pad) f32 VMEM scratch (zero-padded copy).
    """
    xp_ref[...] = jnp.zeros_like(xp_ref)
    xp_ref[:, pl.ds(padl_lanes, x_ref.shape[1])] = x_ref[...]
    acc = jnp.zeros((o_ref.shape[0], n_out), jnp.float32)
    for j in range(K):                       # static unroll: K lane-shifted MXU matmuls
        xs = xp_ref[:, pl.ds(j * dB, n_out)].astype(jnp.bfloat16)
        acc += jnp.dot(w_ref[j], xs, preferred_element_type=jnp.float32)
    o_ref[...] = acc * sc_ref[...] + sh_ref[...]


def _conv_glu_kernel(K, dB, padl_lanes, n_out,
                     x_ref, wa_ref, wb_ref, sa_ref, ha_ref, sb_ref, hb_ref,
                     o_ref, xp_ref):
    """'same' stride-1 conv + folded BN + GLU(dim=channel).

    The two GLU halves are separate weight stacks (two dots), so no channel slice of the
    matmul result is needed and each half's channel count stays sublane-aligned.
    """
    xp_ref[...] = jnp.zeros_like(xp_ref)
    xp_ref[:, pl.ds(padl_lanes, x_ref.shape[1])] = x_ref[...]
    c = o_ref.shape[0]
    acc_a = jnp.zeros((c, n_out), jnp.float32)
    acc_b = jnp.zeros((c, n_out), jnp.float32)
    for j in range(K):
        xs = xp_ref[:, pl.ds(j * dB, n_out)].astype(jnp.bfloat16)
        acc_a += jnp.dot(wa_ref[j], xs, preferred_element_type=jnp.float32)
        acc_b += jnp.dot(wb_ref[j], xs, preferred_element_type=jnp.float32)
    ya = acc_a * sa_ref[...] + ha_ref[...]
    yb = acc_b * sb_ref[...] + hb_ref[...]
    o_ref[...] = ya * jax.nn.sigmoid(yb)


def _wavenet_kernel(K, B, T, dilations, gate_dim,
                    h_ref, wga_ref, wgb_ref, sga_ref, hga_ref, sgb_ref, hgb_ref,
                    wr_ref, br_ref, ws_ref, bs_ref, o_ref, hp_ref):
    """Entire WaveNet stack fused in one kernel.

    Per layer: dilated 'same' gate conv + BN + tanh*sigmoid gate, 1x1 res conv (residual add),
    1x1 skip conv (skip sum).  The zero-padded residual state (hp_ref) and the skip accumulator
    stay resident in VMEM for all layers; weights are bf16, math is f32.
    # TODO(synk): the recipe's WaveNet class body is not shown; this is the canonical
    # gated-residual WaveNet. Conditioning (cond_dim / c_bct) is unused (None).
    """
    N = T * B
    pad_max = max(d * (K - 1) // 2 for d in dilations)
    center = pad_max * B
    hp_ref[...] = jnp.zeros_like(hp_ref)
    hp_ref[:, pl.ds(center, N)] = h_ref[...]
    skip = jnp.zeros((o_ref.shape[0], N), jnp.float32)
    for l, d in enumerate(dilations):        # layers fully unrolled -> static lane offsets
        base = (pad_max - d * (K - 1) // 2) * B
        acc_a = jnp.zeros((gate_dim, N), jnp.float32)
        acc_b = jnp.zeros((gate_dim, N), jnp.float32)
        for j in range(K):
            xs = hp_ref[:, pl.ds(base + j * d * B, N)].astype(jnp.bfloat16)
            acc_a += jnp.dot(wga_ref[l * K + j], xs, preferred_element_type=jnp.float32)
            acc_b += jnp.dot(wgb_ref[l * K + j], xs, preferred_element_type=jnp.float32)
        za = acc_a * sga_ref[l] + hga_ref[l]
        zb = acc_b * sgb_ref[l] + hgb_ref[l]
        g = (jnp.tanh(za) * jax.nn.sigmoid(zb)).astype(jnp.bfloat16)
        res = jnp.dot(wr_ref[l], g, preferred_element_type=jnp.float32) + br_ref[l]
        hp_ref[:, pl.ds(center, N)] = hp_ref[:, pl.ds(center, N)] + res
        skip = skip + jnp.dot(ws_ref[l], g, preferred_element_type=jnp.float32) + bs_ref[l]
    o_ref[...] = skip


# ----------------------------------------------------------------------------
# pallas_call wrappers
# ----------------------------------------------------------------------------
def _full_spec(shape):
    zeros = (0,) * len(shape)
    return pl.BlockSpec(shape, lambda i, _z=zeros: _z)


def fused_conv(x_cn, p, *, batch, dilation=1, pad_l=None, pad_r=None):
    """Fused conv (+BN affine, + optional GLU) on a (Cin, T*B) lane-dense activation."""
    glu = "wa" in p
    w0 = p["wa"] if glu else p["w"]
    K, cout, cin = w0.shape
    T = x_cn.shape[1] // batch
    if pad_l is None:
        total = dilation * (K - 1)
        pad_l = total // 2
        pad_r = total - pad_l
    n_out_t = T + pad_l + pad_r - dilation * (K - 1)
    n_out = n_out_t * batch
    n_pad = (T + pad_l + pad_r) * batch
    dB = dilation * batch
    padl_lanes = pad_l * batch

    if glu:
        kern = functools.partial(_conv_glu_kernel, K, dB, padl_lanes, n_out)
        args = (x_cn, p["wa"], p["wb"], p["sa"], p["ha"], p["sb"], p["hb"])
    else:
        kern = functools.partial(_conv_none_kernel, K, dB, padl_lanes, n_out)
        args = (x_cn, p["w"], p["sc"], p["sh"])

    return pl.pallas_call(
        kern,
        out_shape=jax.ShapeDtypeStruct((cout, n_out), jnp.float32),
        grid=(1,),
        in_specs=[_full_spec(a.shape) for a in args],
        out_specs=_full_spec((cout, n_out)),
        scratch_shapes=[pltpu.VMEM((cin, n_pad), jnp.float32)],
        compiler_params=pltpu.CompilerParams(dimension_semantics=("arbitrary",)),
    )(*args)


def conv_transpose_glu(x_cn, p, *, batch, stride):
    """ConvTranspose1d ('same', L_out = L_in*stride) + BN + GLU.

    Implemented as a zero-stuffed upsample (pure JAX data movement) followed by the fused
    lane-shift conv kernel with the flipped/transposed weight.
    # TODO(synk): the recipe's custom ConvTranspose1d 'same' padding is not shown; symmetric
    # padding with L_out == L_in*stride is assumed.  A polyphase split would also remove the
    # multiply-by-zero FLOPs, but this path is a tiny fraction of the model.
    """
    K = p["wa"].shape[0]
    cin = p["wa"].shape[2]
    T = x_cn.shape[1] // batch
    pad = (K - stride) // 2
    eff = K - 1 - pad
    lu = (T - 1) * stride + 1
    up = jnp.zeros((cin, lu, batch), x_cn.dtype).at[:, ::stride, :].set(
        x_cn.reshape(cin, T, batch))
    return fused_conv(up.reshape(cin, lu * batch), p, batch=batch,
                      dilation=1, pad_l=eff, pad_r=eff)


def wavenet_forward(wn, h_cn, *, batch):
    K, dil, gd = wn["K"], wn["dilations"], wn["gate_dim"]
    rd, N = h_cn.shape
    T = N // batch
    pad_l = [d * (K - 1) // 2 for d in dil]
    pad_r = [d * (K - 1) - q for d, q in zip(dil, pad_l)]
    n_pad = (T + max(pad_l) + max(pad_r)) * batch
    sd = wn["ws"].shape[1]
    args = (h_cn, wn["wga"], wn["wgb"], wn["sga"], wn["hga"], wn["sgb"], wn["hgb"],
            wn["wr"], wn["br"], wn["ws"], wn["bs"])
    kern = functools.partial(_wavenet_kernel, K, batch, T, tuple(dil), gd)
    return pl.pallas_call(
        kern,
        out_shape=jax.ShapeDtypeStruct((sd, N), jnp.float32),
        grid=(1,),
        in_specs=[_full_spec(a.shape) for a in args],
        out_specs=_full_spec((sd, N)),
        scratch_shapes=[pltpu.VMEM((rd, n_pad), jnp.float32)],
        compiler_params=pltpu.CompilerParams(dimension_semantics=("arbitrary",)),
    )(*args)


# ----------------------------------------------------------------------------
# Deterministic synthetic parameters (bf16 weight stacks, folded eval-mode BN)
# ----------------------------------------------------------------------------
def _fold_bn(key, cout, bias, use_bn):
    if not use_bn:
        return jnp.ones((cout, 1), jnp.float32), bias[:, None]
    kg, kb, km, kv = jax.random.split(key, 4)
    gamma = jax.random.uniform(kg, (cout,), jnp.float32, 0.8, 1.2)
    beta = jax.random.uniform(kb, (cout,), jnp.float32, -0.05, 0.05)
    mean = jax.random.uniform(km, (cout,), jnp.float32, -0.1, 0.1)
    var = jax.random.uniform(kv, (cout,), jnp.float32, 0.9, 1.1)
    std = jnp.sqrt(var + 1e-5)
    return (gamma / std)[:, None], (gamma * (bias - mean) / std + beta)[:, None]


def _to_stack(w_torch, transpose):
    if transpose:   # ConvTranspose1d weight (Cin, Cout, K) -> correlation stack (K, Cout, Cin)
        return jnp.transpose(jnp.flip(w_torch, axis=2), (2, 1, 0))
    return jnp.transpose(w_torch, (2, 0, 1))            # Conv1d (Cout, Cin, K) -> (K, Cout, Cin)


def _init_conv(key, cout, cin, k, *, glu, use_bn=True, transpose=False):
    kw, kb, kbn = jax.random.split(key, 3)
    fan = cin * k
    shape = (cin, cout, k) if transpose else (cout, cin, k)
    w = jax.random.uniform(kw, shape, jnp.float32, -1.0, 1.0) / math.sqrt(fan)
    b = jax.random.uniform(kb, (cout,), jnp.float32, -0.1, 0.1)
    scale, shift = _fold_bn(kbn, cout, b, use_bn)
    stack = _to_stack(w, transpose).astype(jnp.bfloat16)      # (K, Cout, Cin) bf16
    if glu:
        c = cout // 2
        return {"wa": stack[:, :c], "wb": stack[:, c:],
                "sa": scale[:c], "ha": shift[:c], "sb": scale[c:], "hb": shift[c:]}
    return {"w": stack, "sc": scale, "sh": shift}


def init_wavenet(key, residual_dim, gate_dim, skip_dim, kernel_size, dilation_list, n_stages):
    dil = list(dilation_list) * n_stages
    keys = jax.random.split(key, 3 * len(dil))
    wga, wgb, sga, hga, sgb, hgb, wr, br, ws, bs = ([] for _ in range(10))
    for i in range(len(dil)):
        g = _init_conv(keys[3 * i], 2 * gate_dim, residual_dim, kernel_size,
                       glu=True, use_bn=True)
        wga.append(g["wa"]); wgb.append(g["wb"])
        sga.append(g["sa"]); hga.append(g["ha"]); sgb.append(g["sb"]); hgb.append(g["hb"])
        r = _init_conv(keys[3 * i + 1], residual_dim, gate_dim, 1, glu=False, use_bn=False)
        wr.append(r["w"][0]); br.append(r["sh"])
        s = _init_conv(keys[3 * i + 2], skip_dim, gate_dim, 1, glu=False, use_bn=False)
        ws.append(s["w"][0]); bs.append(s["sh"])
    return {"K": kernel_size, "dilations": tuple(dil), "gate_dim": gate_dim,
            "wga": jnp.concatenate(wga, axis=0),      # (L*K, gate_dim, residual_dim) bf16
            "wgb": jnp.concatenate(wgb, axis=0),
            "sga": jnp.stack(sga), "hga": jnp.stack(hga),
            "sgb": jnp.stack(sgb), "hgb": jnp.stack(hgb),
            "wr": jnp.stack(wr), "br": jnp.stack(br),
            "ws": jnp.stack(ws), "bs": jnp.stack(bs)}


def init_decoder(key, cfg):
    ks = jax.random.split(key, 5)
    rd, gd, sd, k = cfg["residual_dim"], cfg["gate_dim"], cfg["skip_dim"], cfg["kernel_size"]
    usf = cfg["up_sample_factor"]
    p = {"in": _init_conv(ks[0], 2 * rd, cfg["input_dim"], k, glu=True),
         "wn": init_wavenet(ks[2], rd, gd, sd, k, cfg["dilation_list"], cfg["n_stages"]),
         "out1": _init_conv(ks[3], 2 * sd, sd, k, glu=True),
         "out2": _init_conv(ks[4], cfg["output_dim"], sd, 15, glu=False, use_bn=False),
         "usf": usf}
    if usf > 1:
        rw = (4 + usf % 2) * usf
        p["up"] = _init_conv(ks[1], 2 * rd, rd, rw, glu=True, transpose=True)
    return p


# ----------------------------------------------------------------------------
# Decoder forward
# ----------------------------------------------------------------------------
def decoder_forward(p, x_bct, c_bct=None):
    # TODO(synk): conditioning (cond_dim / c_bct) is unused here (None), matching the default call.
    B, C, T = x_bct.shape
    h = jnp.transpose(x_bct, (1, 2, 0)).reshape(C, T * B)    # -> lane-dense (C, T*B)
    h = fused_conv(h, p["in"], batch=B)                      # in_layer: Conv1d + BN + GLU
    if p["usf"] > 1:
        h = conv_transpose_glu(h, p["up"], batch=B, stride=p["usf"])   # re_sampler
    h = wavenet_forward(p["wn"], h, batch=B)                 # fused WaveNet stack
    h = fused_conv(h, p["out1"], batch=B)                    # out_layer[0:3]: Conv + BN + GLU
    y = fused_conv(h, p["out2"], batch=B)                    # out_layer[3]: Conv1d(.., 15)
    cout, n = y.shape
    return jnp.transpose(y.reshape(cout, n // B, B), (2, 0, 1))   # back to (B, C, T_out)


# ----------------------------------------------------------------------------
if __name__ == "__main__":
    key = jax.random.PRNGKey(0)
    kx, kp = jax.random.split(key)

    B, C, T = 2, 4, 16
    x = jax.random.normal(kx, (B, C, T), jnp.float32)

    cfg = dict(input_dim=4, output_dim=4, residual_dim=8, gate_dim=8, skip_dim=8,
               kernel_size=3, dilation_list=[1, 2], n_stages=1, up_sample_factor=2)
    params = init_decoder(kp, cfg)

    y = jax.jit(lambda xx: decoder_forward(params, xx))(x)
    jax.block_until_ready(y)

    assert y.shape == (B, cfg["output_dim"], T * cfg["up_sample_factor"]), y.shape
    assert bool(jnp.all(jnp.isfinite(y)))
    print("KERNEL_OK")
</pallas_src>

<mosaic_0001>
module attributes {stable_mosaic.version = 11 : i64} {
  func.func @_conv_glu_kernel(%arg0: i32, %arg1: memref<4x32xf32, #tpu.memory_space<vmem>>, %arg2: memref<3x8x4xbf16, #tpu.memory_space<vmem>>, %arg3: memref<3x8x4xbf16, #tpu.memory_space<vmem>>, %arg4: memref<8x1xf32, #tpu.memory_space<vmem>>, %arg5: memref<8x1xf32, #tpu.memory_space<vmem>>, %arg6: memref<8x1xf32, #tpu.memory_space<vmem>>, %arg7: memref<8x1xf32, #tpu.memory_space<vmem>>, %arg8: memref<8x32xf32, #tpu.memory_space<vmem>>, %arg9: memref<4x36xf32, #tpu.memory_space<vmem>>) attributes {dimension_semantics = [#tpu.dimension_semantics<arbitrary>], iteration_bounds = array<i64: 1>, scalar_prefetch = 0 : i64, scratch_operands = 1 : i64, tpu.core_type = #tpu.core_type<tc>, window_params = [{pipeline_mode = #tpu.pipeline_mode<synchronous>, transform_indices = @transform_0, window_bounds = array<i64: 4, 32>}, {pipeline_mode = #tpu.pipeline_mode<synchronous>, transform_indices = @transform_1, window_bounds = array<i64: 3, 8, 4>}, {pipeline_mode = #tpu.pipeline_mode<synchronous>, transform_indices = @transform_2, window_bounds = array<i64: 3, 8, 4>}, {pipeline_mode = #tpu.pipeline_mode<synchronous>, transform_indices = @transform_3, window_bounds = array<i64: 8, 1>}, {pipeline_mode = #tpu.pipeline_mode<synchronous>, transform_indices = @transform_4, window_bounds = array<i64: 8, 1>}, {pipeline_mode = #tpu.pipeline_mode<synchronous>, transform_indices = @transform_5, window_bounds = array<i64: 8, 1>}, {pipeline_mode = #tpu.pipeline_mode<synchronous>, transform_indices = @transform_6, window_bounds = array<i64: 8, 1>}, {pipeline_mode = #tpu.pipeline_mode<synchronous>, transform_indices = @transform_7, window_bounds = array<i64: 8, 32>}]} {
    %cst = arith.constant 0.000000e+00 : f32
    %0 = vector.broadcast %cst : f32 to vector<4x36xf32>
    %c0 = arith.constant 0 : index
    %c0_0 = arith.constant 0 : index
    %1 = vector.load %arg9[%c0, %c0_0] : memref<4x36xf32, #tpu.memory_space<vmem>>, vector<4x36xf32>
    tpu.vector_store %arg9[%c0, %c0_0], %0 {strides = array<i32>} : memref<4x36xf32, #tpu.memory_space<vmem>>, vector<4x36xf32>,
    %c0_1 = arith.constant 0 : index
    %c0_2 = arith.constant 0 : index
    %2 = vector.load %arg1[%c0_1, %c0_2] : memref<4x32xf32, #tpu.memory_space<vmem>>, vector<4x32xf32>
    %c0_3 = arith.constant 0 : index
    %c2 = arith.constant 2 : index
    %3 = vector.load %arg9[%c0_3, %c2] : memref<4x36xf32, #tpu.memory_space<vmem>>, vector<4x32xf32>
    tpu.vector_store %arg9[%c0_3, %c2], %2 {strides = array<i32>} : memref<4x36xf32, #tpu.memory_space<vmem>>, vector<4x32xf32>,
    %cst_4 = arith.constant 0.000000e+00 : f32
    %4 = vector.broadcast %cst_4 : f32 to vector<8x32xf32>
    %cst_5 = arith.constant 0.000000e+00 : f32
    %5 = vector.broadcast %cst_5 : f32 to vector<8x32xf32>
    %c0_6 = arith.constant 0 : index
    %c0_7 = arith.constant 0 : index
    %6 = vector.load %arg9[%c0_6, %c0_7] : memref<4x36xf32, #tpu.memory_space<vmem>>, vector<4x32xf32>
    %7 = arith.truncf %6 : vector<4x32xf32> to vector<4x32xbf16>
    %c0_8 = arith.constant 0 : index
    %c0_9 = arith.constant 0 : index
    %c0_10 = arith.constant 0 : index
    %8 = vector.load %arg2[%c0_8, %c0_9, %c0_10] : memref<3x8x4xbf16, #tpu.memory_space<vmem>>, vector<1x8x4xbf16>
    %9 = vector.shape_cast %8 : vector<1x8x4xbf16> to vector<8x4xbf16>
    %cst_11 = arith.constant dense<0.000000e+00> : vector<8x32xf32>
    %10 = tpu.matmul %9, %7, %cst_11 {dimension_numbers = #tpu.dot_dimension_numbers<[1], [0], [0], [1], [0, 0, 1, 1], [], []>} : vector<8x4xbf16>, vector<4x32xbf16>, vector<8x32xf32> -> vector<8x32xf32>
    %11 = arith.addf %4, %10 : vector<8x32xf32>
    %c0_12 = arith.constant 0 : index
    %c0_13 = arith.constant 0 : index
    %c0_14 = arith.constant 0 : index
    %12 = vector.load %arg3[%c0_12, %c0_13, %c0_14] : memref<3x8x4xbf16, #tpu.memory_space<vmem>>, vector<1x8x4xbf16>
    %13 = vector.shape_cast %12 : vector<1x8x4xbf16> to vector<8x4xbf16>
    %cst_15 = arith.constant dense<0.000000e+00> : vector<8x32xf32>
    %14 = tpu.matmul %13, %7, %cst_15 {dimension_numbers = #tpu.dot_dimension_numbers<[1], [0], [0], [1], [0, 0, 1, 1], [], []>} : vector<8x4xbf16>, vector<4x32xbf16>, vector<8x32xf32> -> vector<8x32xf32>
    %15 = arith.addf %5, %14 : vector<8x32xf32>
    %c0_16 = arith.constant 0 : index
    %c2_17 = arith.constant 2 : index
    %16 = vector.load %arg9[%c0_16, %c2_17] : memref<4x36xf32, #tpu.memory_space<vmem>>, vector<4x32xf32>
    %17 = arith.truncf %16 : vector<4x32xf32> to vector<4x32xbf16>
    %c1 = arith.constant 1 : index
    %c0_18 = arith.constant 0 : index
    %c0_19 = arith.constant 0 : index
    %18 = vector.load %arg2[%c1, %c0_18, %c0_19] : memref<3x8x4xbf16, #tpu.memory_space<vmem>>, vector<1x8x4xbf16>
    %19 = vector.shape_cast %18 : vector<1x8x4xbf16> to vector<8x4xbf16>
    %cst_20 = arith.constant dense<0.000000e+00> : vector<8x32xf32>
    %20 = tpu.matmul %19, %17, %cst_20 {dimension_numbers = #tpu.dot_dimension_numbers<[1], [0], [0], [1], [0, 0, 1, 1], [], []>} : vector<8x4xbf16>, vector<4x32xbf16>, vector<8x32xf32> -> vector<8x32xf32>
    %21 = arith.addf %11, %20 : vector<8x32xf32>
    %c1_21 = arith.constant 1 : index
    %c0_22 = arith.constant 0 : index
    %c0_23 = arith.constant 0 : index
    %22 = vector.load %arg3[%c1_21, %c0_22, %c0_23] : memref<3x8x4xbf16, #tpu.memory_space<vmem>>, vector<1x8x4xbf16>
    %23 = vector.shape_cast %22 : vector<1x8x4xbf16> to vector<8x4xbf16>
    %cst_24 = arith.constant dense<0.000000e+00> : vector<8x32xf32>
    %24 = tpu.matmul %23, %17, %cst_24 {dimension_numbers = #tpu.dot_dimension_numbers<[1], [0], [0], [1], [0, 0, 1, 1], [], []>} : vector<8x4xbf16>, vector<4x32xbf16>, vector<8x32xf32> -> vector<8x32xf32>
    %25 = arith.addf %15, %24 : vector<8x32xf32>
    %c0_25 = arith.constant 0 : index
    %c4 = arith.constant 4 : index
    %26 = vector.load %arg9[%c0_25, %c4] : memref<4x36xf32, #tpu.memory_space<vmem>>, vector<4x32xf32>
    %27 = arith.truncf %26 : vector<4x32xf32> to vector<4x32xbf16>
    %c2_26 = arith.constant 2 : index
    %c0_27 = arith.constant 0 : index
    %c0_28 = arith.constant 0 : index
    %28 = vector.load %arg2[%c2_26, %c0_27, %c0_28] : memref<3x8x4xbf16, #tpu.memory_space<vmem>>, vector<1x8x4xbf16>
    %29 = vector.shape_cast %28 : vector<1x8x4xbf16> to vector<8x4xbf16>
    %cst_29 = arith.constant dense<0.000000e+00> : vector<8x32xf32>
    %30 = tpu.matmul %29, %27, %cst_29 {dimension_numbers = #tpu.dot_dimension_numbers<[1], [0], [0], [1], [0, 0, 1, 1], [], []>} : vector<8x4xbf16>, vector<4x32xbf16>, vector<8x32xf32> -> vector<8x32xf32>
    %31 = arith.addf %21, %30 : vector<8x32xf32>
    %c2_30 = arith.constant 2 : index
    %c0_31 = arith.constant 0 : index
    %c0_32 = arith.constant 0 : index
    %32 = vector.load %arg3[%c2_30, %c0_31, %c0_32] : memref<3x8x4xbf16, #tpu.memory_space<vmem>>, vector<1x8x4xbf16>
    %33 = vector.shape_cast %32 : vector<1x8x4xbf16> to vector<8x4xbf16>
    %cst_33 = arith.constant dense<0.000000e+00> : vector<8x32xf32>
    %34 = tpu.matmul %33, %27, %cst_33 {dimension_numbers = #tpu.dot_dimension_numbers<[1], [0], [0], [1], [0, 0, 1, 1], [], []>} : vector<8x4xbf16>, vector<4x32xbf16>, vector<8x32xf32> -> vector<8x32xf32>
    %35 = arith.addf %25, %34 : vector<8x32xf32>
    %c0_34 = arith.constant 0 : index
    %c0_35 = arith.constant 0 : index
    %36 = vector.load %arg4[%c0_34, %c0_35] : memref<8x1xf32, #tpu.memory_space<vmem>>, vector<8x1xf32>
    %37 = vector.broadcast %36 : vector<8x1xf32> to vector<8x32xf32>
    %38 = arith.mulf %31, %37 : vector<8x32xf32>
    %c0_36 = arith.constant 0 : index
    %c0_37 = arith.constant 0 : index
    %39 = vector.load %arg5[%c0_36, %c0_37] : memref<8x1xf32, #tpu.memory_space<vmem>>, vector<8x1xf32>
    %40 = vector.broadcast %39 : vector<8x1xf32> to vector<8x32xf32>
    %41 = arith.addf %38, %40 : vector<8x32xf32>
    %c0_38 = arith.constant 0 : index
    %c0_39 = arith.constant 0 : index
    %42 = vector.load %arg6[%c0_38, %c0_39] : memref<8x1xf32, #tpu.memory_space<vmem>>, vector<8x1xf32>
    %43 = vector.broadcast %42 : vector<8x1xf32> to vector<8x32xf32>
    %44 = arith.mulf %35, %43 : vector<8x32xf32>
    %c0_40 = arith.constant 0 : index
    %c0_41 = arith.constant 0 : index
    %45 = vector.load %arg7[%c0_40, %c0_41] : memref<8x1xf32, #tpu.memory_space<vmem>>, vector<8x1xf32>
    %46 = vector.broadcast %45 : vector<8x1xf32> to vector<8x32xf32>
    %47 = arith.addf %44, %46 : vector<8x32xf32>
    %48 = arith.negf %47 : vector<8x32xf32>
    %49 = math.exp %48 : vector<8x32xf32>
    %cst_42 = arith.constant 1.000000e+00 : f32
    %50 = vector.broadcast %cst_42 : f32 to vector<8x32xf32>
    %51 = arith.addf %50, %49 : vector<8x32xf32>
    %52 = arith.divf %50, %51 : vector<8x32xf32>
    %53 = arith.mulf %41, %52 : vector<8x32xf32>
    %c0_43 = arith.constant 0 : index
    %c0_44 = arith.constant 0 : index
    %54 = vector.load %arg8[%c0_43, %c0_44] : memref<8x32xf32, #tpu.memory_space<vmem>>, vector<8x32xf32>
    tpu.vector_store %arg8[%c0_43, %c0_44], %53 {strides = array<i32>} : memref<8x32xf32, #tpu.memory_space<vmem>>, vector<8x32xf32>,
    return
  }
  func.func @transform_0(%arg0: i32) -> (i32, i32) {
    %c0_i32 = arith.constant 0 : i32
    %c0_i32_0 = arith.constant 0 : i32
    %c0_i32_1 = arith.constant 0 : i32
    return %c0_i32, %c0_i32_0 : i32, i32
  }
  func.func @transform_1(%arg0: i32) -> (i32, i32, i32) {
    %c0_i32 = arith.constant 0 : i32
    %c0_i32_0 = arith.constant 0 : i32
    %c0_i32_1 = arith.constant 0 : i32
    %c0_i32_2 = arith.constant 0 : i32
    return %c0_i32, %c0_i32_0, %c0_i32_1 : i32, i32, i32
  }
  func.func @transform_2(%arg0: i32) -> (i32, i32, i32) {
    %c0_i32 = arith.constant 0 : i32
    %c0_i32_0 = arith.constant 0 : i32
    %c0_i32_1 = arith.constant 0 : i32
    %c0_i32_2 = arith.constant 0 : i32
    return %c0_i32, %c0_i32_0, %c0_i32_1 : i32, i32, i32
  }
  func.func @transform_3(%arg0: i32) -> (i32, i32) {
    %c0_i32 = arith.constant 0 : i32
    %c0_i32_0 = arith.constant 0 : i32
    %c0_i32_1 = arith.constant 0 : i32
    return %c0_i32, %c0_i32_0 : i32, i32
  }
  func.func @transform_4(%arg0: i32) -> (i32, i32) {
    %c0_i32 = arith.constant 0 : i32
    %c0_i32_0 = arith.constant 0 : i32
    %c0_i32_1 = arith.constant 0 : i32
    return %c0_i32, %c0_i32_0 : i32, i32
  }
  func.func @transform_5(%arg0: i32) -> (i32, i32) {
    %c0_i32 = arith.constant 0 : i32
    %c0_i32_0 = arith.constant 0 : i32
    %c0_i32_1 = arith.constant 0 : i32
    return %c0_i32, %c0_i32_0 : i32, i32
  }
  func.func @transform_6(%arg0: i32) -> (i32, i32) {
    %c0_i32 = arith.constant 0 : i32
    %c0_i32_0 = arith.constant 0 : i32
    %c0_i32_1 = arith.constant 0 : i32
    return %c0_i32, %c0_i32_0 : i32, i32
  }
  func.func @transform_7(%arg0: i32) -> (i32, i32) {
    %c0_i32 = arith.constant 0 : i32
    %c0_i32_0 = arith.constant 0 : i32
    %c0_i32_1 = arith.constant 0 : i32
    return %c0_i32, %c0_i32_0 : i32, i32
  }
}

module attributes {stable_mosaic.version = 11 : i64} {
  func.func @_conv_glu_kernel(%arg0: i32, %arg1: memref<8x62xf32, #tpu.memory_space<vmem>>, %arg2: memref<8x8x8xbf16, #tpu.memory_space<vmem>>, %arg3: memref<8x8x8xbf16, #tpu.memory_space<vmem>>, %arg4: memref<8x1xf32, #tpu.memory_space<vmem>>, %arg5: memref<8x1xf32, #tpu.memory_space<vmem>>, %arg6: memref<8x1xf32, #tpu.memory_space<vmem>>, %arg7: memref<8x1xf32, #tpu.memory_space<vmem>>, %arg8: memref<8x64xf32, #tpu.memory_space<vmem>>, %arg9: memref<8x78xf32, #tpu.memory_space<vmem>>) attributes {dimension_semantics = [#tpu.dimension_semantics<arbitrary>], iteration_bounds = array<i64: 1>, scalar_prefetch = 0 : i64, scratch_operands = 1 : i64, tpu.core_type = #tpu.core_type<tc>, window_params = [{pipeline_mode = #tpu.pipeline_mode<synchronous>, transform_indices = @transform_0, window_bounds = array<i64: 8, 62>}, {pipeline_mode = #tpu.pipeline_mode<synchronous>, transform_indices = @transform_1, window_bounds = array<i64: 8, 8, 8>}, {pipeline_mode = #tpu.pipeline_mode<synchronous>, transform_indices = @transform_2, window_bounds = array<i64: 8, 8, 8>}, {pipeline_mode = #tpu.pipeline_mode<synchronous>, transform_indices = @transform_3, window_bounds = array<i64: 8, 1>}, {pipeline_mode = #tpu.pipeline_mode<synchronous>, transform_indices = @transform_4, window_bounds = array<i64: 8, 1>}, {pipeline_mode = #tpu.pipeline_mode<synchronous>, transform_indices = @transform_5, window_bounds = array<i64: 8, 1>}, {pipeline_mode = #tpu.pipeline_mode<synchronous>, transform_indices = @transform_6, window_bounds = array<i64: 8, 1>}, {pipeline_mode = #tpu.pipeline_mode<synchronous>, transform_indices = @transform_7, window_bounds = array<i64: 8, 64>}]} {
    %cst = arith.constant 0.000000e+00 : f32
    %0 = vector.broadcast %cst : f32 to vector<8x78xf32>
    %c0 = arith.constant 0 : index
    %c0_0 = arith.constant 0 : index
    %1 = vector.load %arg9[%c0, %c0_0] : memref<8x78xf32, #tpu.memory_space<vmem>>, vector<8x78xf32>
    tpu.vector_store %arg9[%c0, %c0_0], %0 {strides = array<i32>} : memref<8x78xf32, #tpu.memory_space<vmem>>, vector<8x78xf32>,
    %c0_1 = arith.constant 0 : index
    %c0_2 = arith.constant 0 : index
    %2 = vector.load %arg1[%c0_1, %c0_2] : memref<8x62xf32, #tpu.memory_space<vmem>>, vector<8x62xf32>
    %c0_3 = arith.constant 0 : index
    %c8 = arith.constant 8 : index
    %3 = vector.load %arg9[%c0_3, %c8] : memref<8x78xf32, #tpu.memory_space<vmem>>, vector<8x62xf32>
    tpu.vector_store %arg9[%c0_3, %c8], %2 {strides = array<i32>} : memref<8x78xf32, #tpu.memory_space<vmem>>, vector<8x62xf32>,
    %cst_4 = arith.constant 0.000000e+00 : f32
    %4 = vector.broadcast %cst_4 : f32 to vector<8x64xf32>
    %cst_5 = arith.constant 0.000000e+00 : f32
    %5 = vector.broadcast %cst_5 : f32 to vector<8x64xf32>
    %c0_6 = arith.constant 0 : index
    %c0_7 = arith.constant 0 : index
    %6 = vector.load %arg9[%c0_6, %c0_7] : memref<8x78xf32, #tpu.memory_space<vmem>>, vector<8x64xf32>
    %7 = arith.truncf %6 : vector<8x64xf32> to vector<8x64xbf16>
    %c0_8 = arith.constant 0 : index
    %c0_9 = arith.constant 0 : index
    %c0_10 = arith.constant 0 : index
    %8 = vector.load %arg2[%c0_8, %c0_9, %c0_10] : memref<8x8x8xbf16, #tpu.memory_space<vmem>>, vector<1x8x8xbf16>
    %9 = vector.shape_cast %8 : vector<1x8x8xbf16> to vector<8x8xbf16>
    %cst_11 = arith.constant dense<0.000000e+00> : vector<8x64xf32>
    %10 = tpu.matmul %9, %7, %cst_11 {dimension_numbers = #tpu.dot_dimension_numbers<[1], [0], [0], [1], [0, 0, 1, 1], [], []>} : vector<8x8xbf16>, vector<8x64xbf16>, vector<8x64xf32> -> vector<8x64xf32>
    %11 = arith.addf %4, %10 : vector<8x64xf32>
    %c0_12 = arith.constant 0 : index
    %c0_13 = arith.constant 0 : index
    %c0_14 = arith.constant 0 : index
    %12 = vector.load %arg3[%c0_12, %c0_13, %c0_14] : memref<8x8x8xbf16, #tpu.memory_space<vmem>>, vector<1x8x8xbf16>
    %13 = vector.shape_cast %12 : vector<1x8x8xbf16> to vector<8x8xbf16>
    %cst_15 = arith.constant dense<0.000000e+00> : vector<8x64xf32>
    %14 = tpu.matmul %13, %7, %cst_15 {dimension_numbers = #tpu.dot_dimension_numbers<[1], [0], [0], [1], [0, 0, 1, 1], [], []>} : vector<8x8xbf16>, vector<8x64xbf16>, vector<8x64xf32> -> vector<8x64xf32>
    %15 = arith.addf %5, %14 : vector<8x64xf32>
    %c0_16 = arith.constant 0 : index
    %c2 = arith.constant 2 : index
    %16 = vector.load %arg9[%c0_16, %c2] : memref<8x78xf32, #tpu.memory_space<vmem>>, vector<8x64xf32>
    %17 = arith.truncf %16 : vector<8x64xf32> to vector<8x64xbf16>
    %c1 = arith.constant 1 : index
    %c0_17 = arith.constant 0 : index
    %c0_18 = arith.constant 0 : index
    %18 = vector.load %arg2[%c1, %c0_17, %c0_18] : memref<8x8x8xbf16, #tpu.memory_space<vmem>>, vector<1x8x8xbf16>
    %19 = vector.shape_cast %18 : vector<1x8x8xbf16> to vector<8x8xbf16>
    %cst_19 = arith.constant dense<0.000000e+00> : vector<8x64xf32>
    %20 = tpu.matmul %19, %17, %cst_19 {dimension_numbers = #tpu.dot_dimension_numbers<[1], [0], [0], [1], [0, 0, 1, 1], [], []>} : vector<8x8xbf16>, vector<8x64xbf16>, vector<8x64xf32> -> vector<8x64xf32>
    %21 = arith.addf %11, %20 : vector<8x64xf32>
    %c1_20 = arith.constant 1 : index
    %c0_21 = arith.constant 0 : index
    %c0_22 = arith.constant 0 : index
    %22 = vector.load %arg3[%c1_20, %c0_21, %c0_22] : memref<8x8x8xbf16, #tpu.memory_space<vmem>>, vector<1x8x8xbf16>
    %23 = vector.shape_cast %22 : vector<1x8x8xbf16> to vector<8x8xbf16>
    %cst_23 = arith.constant dense<0.000000e+00> : vector<8x64xf32>
    %24 = tpu.matmul %23, %17, %cst_23 {dimension_numbers = #tpu.dot_dimension_numbers<[1], [0], [0], [1], [0, 0, 1, 1], [], []>} : vector<8x8xbf16>, vector<8x64xbf16>, vector<8x64xf32> -> vector<8x64xf32>
    %25 = arith.addf %15, %24 : vector<8x64xf32>
    %c0_24 = arith.constant 0 : index
    %c4 = arith.constant 4 : index
    %26 = vector.load %arg9[%c0_24, %c4] : memref<8x78xf32, #tpu.memory_space<vmem>>, vector<8x64xf32>
    %27 = arith.truncf %26 : vector<8x64xf32> to vector<8x64xbf16>
    %c2_25 = arith.constant 2 : index
    %c0_26 = arith.constant 0 : index
    %c0_27 = arith.constant 0 : index
    %28 = vector.load %arg2[%c2_25, %c0_26, %c0_27] : memref<8x8x8xbf16, #tpu.memory_space<vmem>>, vector<1x8x8xbf16>
    %29 = vector.shape_cast %28 : vector<1x8x8xbf16> to vector<8x8xbf16>
    %cst_28 = arith.constant dense<0.000000e+00> : vector<8x64xf32>
    %30 = tpu.matmul %29, %27, %cst_28 {dimension_numbers = #tpu.dot_dimension_numbers<[1], [0], [0], [1], [0, 0, 1, 1], [], []>} : vector<8x8xbf16>, vector<8x64xbf16>, vector<8x64xf32> -> vector<8x64xf32>
    %31 = arith.addf %21, %30 : vector<8x64xf32>
    %c2_29 = arith.constant 2 : index
    %c0_30 = arith.constant 0 : index
    %c0_31 = arith.constant 0 : index
    %32 = vector.load %arg3[%c2_29, %c0_30, %c0_31] : memref<8x8x8xbf16, #tpu.memory_space<vmem>>, vector<1x8x8xbf16>
    %33 = vector.shape_cast %32 : vector<1x8x8xbf16> to vector<8x8xbf16>
    %cst_32 = arith.constant dense<0.000000e+00> : vector<8x64xf32>
    %34 = tpu.matmul %33, %27, %cst_32 {dimension_numbers = #tpu.dot_dimension_numbers<[1], [0], [0], [1], [0, 0, 1, 1], [], []>} : vector<8x8xbf16>, vector<8x64xbf16>, vector<8x64xf32> -> vector<8x64xf32>
    %35 = arith.addf %25, %34 : vector<8x64xf32>
    %c0_33 = arith.constant 0 : index
    %c6 = arith.constant 6 : index
    %36 = vector.load %arg9[%c0_33, %c6] : memref<8x78xf32, #tpu.memory_space<vmem>>, vector<8x64xf32>
    %37 = arith.truncf %36 : vector<8x64xf32> to vector<8x64xbf16>
    %c3 = arith.constant 3 : index
    %c0_34 = arith.constant 0 : index
    %c0_35 = arith.constant 0 : index
    %38 = vector.load %arg2[%c3, %c0_34, %c0_35] : memref<8x8x8xbf16, #tpu.memory_space<vmem>>, vector<1x8x8xbf16>
    %39 = vector.shape_cast %38 : vector<1x8x8xbf16> to vector<8x8xbf16>
    %cst_36 = arith.constant dense<0.000000e+00> : vector<8x64xf32>
    %40 = tpu.matmul %39, %37, %cst_36 {dimension_numbers = #tpu.dot_dimension_numbers<[1], [0], [0], [1], [0, 0, 1, 1], [], []>} : vector<8x8xbf16>, vector<8x64xbf16>, vector<8x64xf32> -> vector<8x64xf32>
    %41 = arith.addf %31, %40 : vector<8x64xf32>
    %c3_37 = arith.constant 3 : index
    %c0_38 = arith.constant 0 : index
    %c0_39 = arith.constant 0 : index
    %42 = vector.load %arg3[%c3_37, %c0_38, %c0_39] : memref<8x8x8xbf16, #tpu.memory_space<vmem>>, vector<1x8x8xbf16>
    %43 = vector.shape_cast %42 : vector<1x8x8xbf16> to vector<8x8xbf16>
    %cst_40 = arith.constant dense<0.000000e+00> : vector<8x64xf32>
    %44 = tpu.matmul %43, %37, %cst_40 {dimension_numbers = #tpu.dot_dimension_numbers<[1], [0], [0], [1], [0, 0, 1, 1], [], []>} : vector<8x8xbf16>, vector<8x64xbf16>, vector<8x64xf32> -> vector<8x64xf32>
    %45 = arith.addf %35, %44 : vector<8x64xf32>
    %c0_41 = arith.constant 0 : index
    %c8_42 = arith.constant 8 : index
    %46 = vector.load %arg9[%c0_41, %c8_42] : memref<8x78xf32, #tpu.memory_space<vmem>>, vector<8x64xf32>
    %47 = arith.truncf %46 : vector<8x64xf32> to vector<8x64xbf16>
    %c4_43 = arith.constant 4 : index
    %c0_44 = arith.constant 0 : index
    %c0_45 = arith.constant 0 : index
    %48 = vector.load %arg2[%c4_43, %c0_44, %c0_45] : memref<8x8x8xbf16, #tpu.memory_space<vmem>>, vector<1x8x8xbf16>
    %49 = vector.shape_cast %48 : vector<1x8x8xbf16> to vector<8x8xbf16>
    %cst_46 = arith.constant dense<0.000000e+00> : vector<8x64xf32>
    %50 = tpu.matmul %49, %47, %cst_46 {dimension_numbers = #tpu.dot_dimension_numbers<[1], [0], [0], [1], [0, 0, 1, 1], [], []>} : vector<8x8xbf16>, vector<8x64xbf16>, vector<8x64xf32> -> vector<8x64xf32>
    %51 = arith.addf %41, %50 : vector<8x64xf32>
    %c4_47 = arith.constant 4 : index
    %c0_48 = arith.constant 0 : index
    %c0_49 = arith.constant 0 : index
    %52 = vector.load %arg3[%c4_47, %c0_48, %c0_49] : memref<8x8x8xbf16, #tpu.memory_space<vmem>>, vector<1x8x8xbf16>
    %53 = vector.shape_cast %52 : vector<1x8x8xbf16> to vector<8x8xbf16>
    %cst_50 = arith.constant dense<0.000000e+00> : vector<8x64xf32>
    %54 = tpu.matmul %53, %47, %cst_50 {dimension_numbers = #tpu.dot_dimension_numbers<[1], [0], [0], [1], [0, 0, 1, 1], [], []>} : vector<8x8xbf16>, vector<8x64xbf16>, vector<8x64xf32> -> vector<8x64xf32>
    %55 = arith.addf %45, %54 : vector<8x64xf32>
    %c0_51 = arith.constant 0 : index
    %c10 = arith.constant 10 : index
    %56 = vector.load %arg9[%c0_51, %c10] : memref<8x78xf32, #tpu.memory_space<vmem>>, vector<8x64xf32>
    %57 = arith.truncf %56 : vector<8x64xf32> to vector<8x64xbf16>
    %c5 = arith.constant 5 : index
    %c0_52 = arith.constant 0 : index
    %c0_53 = arith.constant 0 : index
    %58 = vector.load %arg2[%c5, %c0_52, %c0_53] : memref<8x8x8xbf16, #tpu.memory_space<vmem>>, vector<1x8x8xbf16>
    %59 = vector.shape_cast %58 : vector<1x8x8xbf16> to vector<8x8xbf16>
    %cst_54 = arith.constant dense<0.000000e+00> : vector<8x64xf32>
    %60 = tpu.matmul %59, %57, %cst_54 {dimension_numbers = #tpu.dot_dimension_numbers<[1], [0], [0], [1], [0, 0, 1, 1], [], []>} : vector<8x8xbf16>, vector<8x64xbf16>, vector<8x64xf32> -> vector<8x64xf32>
    %61 = arith.addf %51, %60 : vector<8x64xf32>
    %c5_55 = arith.constant 5 : index
    %c0_56 = arith.constant 0 : index
    %c0_57 = arith.constant 0 : index
    %62 = vector.load %arg3[%c5_55, %c0_56, %c0_57] : memref<8x8x8xbf16, #tpu.memory_space<vmem>>, vector<1x8x8xbf16>
    %63 = vector.shape_cast %62 : vector<1x8x8xbf16> to vector<8x8xbf16>
    %cst_58 = arith.constant dense<0.000000e+00> : vector<8x64xf32>
    %64 = tpu.matmul %63, %57, %cst_58 {dimension_numbers = #tpu.dot_dimension_numbers<[1], [0], [0], [1], [0, 0, 1, 1], [], []>} : vector<8x8xbf16>, vector<8x64xbf16>, vector<8x64xf32> -> vector<8x64xf32>
    %65 = arith.addf %55, %64 : vector<8x64xf32>
    %c0_59 = arith.constant 0 : index
    %c12 = arith.constant 12 : index
    %66 = vector.load %arg9[%c0_59, %c12] : memref<8x78xf32, #tpu.memory_space<vmem>>, vector<8x64xf32>
    %67 = arith.truncf %66 : vector<8x64xf32> to vector<8x64xbf16>
    %c6_60 = arith.constant 6 : index
    %c0_61 = arith.constant 0 : index
    %c0_62 = arith.constant 0 : index
    %68 = vector.load %arg2[%c6_60, %c0_61, %c0_62] : memref<8x8x8xbf16, #tpu.memory_space<vmem>>, vector<1x8x8xbf16>
    %69 = vector.shape_cast %68 : vector<1x8x8xbf16> to vector<8x8xbf16>
    %cst_63 = arith.constant dense<0.000000e+00> : vector<8x64xf32>
    %70 = tpu.matmul %69, %67, %cst_63 {dimension_numbers = #tpu.dot_dimension_numbers<[1], [0], [0], [1], [0, 0, 1, 1], [], []>} : vector<8x8xbf16>, vector<8x64xbf16>, vector<8x64xf32> -> vector<8x64xf32>
    %71 = arith.addf %61, %70 : vector<8x64xf32>
    %c6_64 = arith.constant 6 : index
    %c0_65 = arith.constant 0 : index
    %c0_66 = arith.constant 0 : index
    %72 = vector.load %arg3[%c6_64, %c0_65, %c0_66] : memref<8x8x8xbf16, #tpu.memory_space<vmem>>, vector<1x8x8xbf16>
    %73 = vector.shape_cast %72 : vector<1x8x8xbf16> to vector<8x8xbf16>
    %cst_67 = arith.constant dense<0.000000e+00> : vector<8x64xf32>
    %74 = tpu.matmul %73, %67, %cst_67 {dimension_numbers = #tpu.dot_dimension_numbers<[1], [0], [0], [1], [0, 0, 1, 1], [], []>} : vector<8x8xbf16>, vector<8x64xbf16>, vector<8x64xf32> -> vector<8x64xf32>
    %75 = arith.addf %65, %74 : vector<8x64xf32>
    %c0_68 = arith.constant 0 : index
    %c14 = arith.constant 14 : index
    %76 = vector.load %arg9[%c0_68, %c14] : memref<8x78xf32, #tpu.memory_space<vmem>>, vector<8x64xf32>
    %77 = arith.truncf %76 : vector<8x64xf32> to vector<8x64xbf16>
    %c7 = arith.constant 7 : index
    %c0_69 = arith.constant 0 : index
    %c0_70 = arith.constant 0 : index
    %78 = vector.load %arg2[%c7, %c0_69, %c0_70] : memref<8x8x8xbf16, #tpu.memory_space<vmem>>, vector<1x8x8xbf16>
    %79 = vector.shape_cast %78 : vector<1x8x8xbf16> to vector<8x8xbf16>
    %cst_71 = arith.constant dense<0.000000e+00> : vector<8x64xf32>
    %80 = tpu.matmul %79, %77, %cst_71 {dimension_numbers = #tpu.dot_dimension_numbers<[1], [0], [0], [1], [0, 0, 1, 1], [], []>} : vector<8x8xbf16>, vector<8x64xbf16>, vector<8x64xf32> -> vector<8x64xf32>
    %81 = arith.addf %71, %80 : vector<8x64xf32>
    %c7_72 = arith.constant 7 : index
    %c0_73 = arith.constant 0 : index
    %c0_74 = arith.constant 0 : index
    %82 = vector.load %arg3[%c7_72, %c0_73, %c0_74] : memref<8x8x8xbf16, #tpu.memory_space<vmem>>, vector<1x8x8xbf16>
    %83 = vector.shape_cast %82 : vector<1x8x8xbf16> to vector<8x8xbf16>
    %cst_75 = arith.constant dense<0.000000e+00> : vector<8x64xf32>
    %84 = tpu.matmul %83, %77, %cst_75 {dimension_numbers = #tpu.dot_dimension_numbers<[1], [0], [0], [1], [0, 0, 1, 1], [], []>} : vector<8x8xbf16>, vector<8x64xbf16>, vector<8x64xf32> -> vector<8x64xf32>
    %85 = arith.addf %75, %84 : vector<8x64xf32>
    %c0_76 = arith.constant 0 : index
    %c0_77 = arith.constant 0 : index
    %86 = vector.load %arg4[%c0_76, %c0_77] : memref<8x1xf32, #tpu.memory_space<vmem>>, vector<8x1xf32>
    %87 = vector.broadcast %86 : vector<8x1xf32> to vector<8x64xf32>
    %88 = arith.mulf %81, %87 : vector<8x64xf32>
    %c0_78 = arith.constant 0 : index
    %c0_79 = arith.constant 0 : index
    %89 = vector.load %arg5[%c0_78, %c0_79] : memref<8x1xf32, #tpu.memory_space<vmem>>, vector<8x1xf32>
    %90 = vector.broadcast %89 : vector<8x1xf32> to vector<8x64xf32>
    %91 = arith.addf %88, %90 : vector<8x64xf32>
    %c0_80 = arith.constant 0 : index
    %c0_81 = arith.constant 0 : index
    %92 = vector.load %arg6[%c0_80, %c0_81] : memref<8x1xf32, #tpu.memory_space<vmem>>, vector<8x1xf32>
    %93 = vector.broadcast %92 : vector<8x1xf32> to vector<8x64xf32>
    %94 = arith.mulf %85, %93 : vector<8x64xf32>
    %c0_82 = arith.constant 0 : index
    %c0_83 = arith.constant 0 : index
    %95 = vector.load %arg7[%c0_82, %c0_83] : memref<8x1xf32, #tpu.memory_space<vmem>>, vector<8x1xf32>
    %96 = vector.broadcast %95 : vector<8x1xf32> to vector<8x64xf32>
    %97 = arith.addf %94, %96 : vector<8x64xf32>
    %98 = arith.negf %97 : vector<8x64xf32>
    %99 = math.exp %98 : vector<8x64xf32>
    %cst_84 = arith.constant 1.000000e+00 : f32
    %100 = vector.broadcast %cst_84 : f32 to vector<8x64xf32>
    %101 = arith.addf %100, %99 : vector<8x64xf32>
    %102 = arith.divf %100, %101 : vector<8x64xf32>
    %103 = arith.mulf %91, %102 : vector<8x64xf32>
    %c0_85 = arith.constant 0 : index
    %c0_86 = arith.constant 0 : index
    %104 = vector.load %arg8[%c0_85, %c0_86] : memref<8x64xf32, #tpu.memory_space<vmem>>, vector<8x64xf32>
    tpu.vector_store %arg8[%c0_85, %c0_86], %103 {strides = array<i32>} : memref<8x64xf32, #tpu.memory_space<vmem>>, vector<8x64xf32>,
    return
  }
  func.func @transform_0(%arg0: i32) -> (i32, i32) {
    %c0_i32 = arith.constant 0 : i32
    %c0_i32_0 = arith.constant 0 : i32
    %c0_i32_1 = arith.constant 0 : i32
    return %c0_i32, %c0_i32_0 : i32, i32
  }
  func.func @transform_1(%arg0: i32) -> (i32, i32, i32) {
    %c0_i32 = arith.constant 0 : i32
    %c0_i32_0 = arith.constant 0 : i32
    %c0_i32_1 = arith.constant 0 : i32
    %c0_i32_2 = arith.constant 0 : i32
    return %c0_i32, %c0_i32_0, %c0_i32_1 : i32, i32, i32
  }
  func.func @transform_2(%arg0: i32) -> (i32, i32, i32) {
    %c0_i32 = arith.constant 0 : i32
    %c0_i32_0 = arith.constant 0 : i32
    %c0_i32_1 = arith.constant 0 : i32
    %c0_i32_2 = arith.constant 0 : i32
    return %c0_i32, %c0_i32_0, %c0_i32_1 : i32, i32, i32
  }
  func.func @transform_3(%arg0: i32) -> (i32, i32) {
    %c0_i32 = arith.constant 0 : i32
    %c0_i32_0 = arith.constant 0 : i32
    %c0_i32_1 = arith.constant 0 : i32
    return %c0_i32, %c0_i32_0 : i32, i32
  }
  func.func @transform_4(%arg0: i32) -> (i32, i32) {
    %c0_i32 = arith.constant 0 : i32
    %c0_i32_0 = arith.constant 0 : i32
    %c0_i32_1 = arith.constant 0 : i32
    return %c0_i32, %c0_i32_0 : i32, i32
  }
  func.func @transform_5(%arg0: i32) -> (i32, i32) {
    %c0_i32 = arith.constant 0 : i32
    %c0_i32_0 = arith.constant 0 : i32
    %c0_i32_1 = arith.constant 0 : i32
    return %c0_i32, %c0_i32_0 : i32, i32
  }
  func.func @transform_6(%arg0: i32) -> (i32, i32) {
    %c0_i32 = arith.constant 0 : i32
    %c0_i32_0 = arith.constant 0 : i32
    %c0_i32_1 = arith.constant 0 : i32
    return %c0_i32, %c0_i32_0 : i32, i32
  }
  func.func @transform_7(%arg0: i32) -> (i32, i32) {
    %c0_i32 = arith.constant 0 : i32
    %c0_i32_0 = arith.constant 0 : i32
    %c0_i32_1 = arith.constant 0 : i32
    return %c0_i32, %c0_i32_0 : i32, i32
  }
}

module attributes {stable_mosaic.version = 11 : i64} {
  func.func @_wavenet_kernel(%arg0: i32, %arg1: memref<8x64xf32, #tpu.memory_space<vmem>>, %arg2: memref<6x8x8xbf16, #tpu.memory_space<vmem>>, %arg3: memref<6x8x8xbf16, #tpu.memory_space<vmem>>, %arg4: memref<2x8x1xf32, #tpu.memory_space<vmem>>, %arg5: memref<2x8x1xf32, #tpu.memory_space<vmem>>, %arg6: memref<2x8x1xf32, #tpu.memory_space<vmem>>, %arg7: memref<2x8x1xf32, #tpu.memory_space<vmem>>, %arg8: memref<2x8x8xbf16, #tpu.memory_space<vmem>>, %arg9: memref<2x8x1xf32, #tpu.memory_space<vmem>>, %arg10: memref<2x8x8xbf16, #tpu.memory_space<vmem>>, %arg11: memref<2x8x1xf32, #tpu.memory_space<vmem>>, %arg12: memref<8x64xf32, #tpu.memory_space<vmem>>, %arg13: memref<8x72xf32, #tpu.memory_space<vmem>>) attributes {dimension_semantics = [#tpu.dimension_semantics<arbitrary>], iteration_bounds = array<i64: 1>, scalar_prefetch = 0 : i64, scratch_operands = 1 : i64, tpu.core_type = #tpu.core_type<tc>, window_params = [{pipeline_mode = #tpu.pipeline_mode<synchronous>, transform_indices = @transform_0, window_bounds = array<i64: 8, 64>}, {pipeline_mode = #tpu.pipeline_mode<synchronous>, transform_indices = @transform_1, window_bounds = array<i64: 6, 8, 8>}, {pipeline_mode = #tpu.pipeline_mode<synchronous>, transform_indices = @transform_2, window_bounds = array<i64: 6, 8, 8>}, {pipeline_mode = #tpu.pipeline_mode<synchronous>, transform_indices = @transform_3, window_bounds = array<i64: 2, 8, 1>}, {pipeline_mode = #tpu.pipeline_mode<synchronous>, transform_indices = @transform_4, window_bounds = array<i64: 2, 8, 1>}, {pipeline_mode = #tpu.pipeline_mode<synchronous>, transform_indices = @transform_5, window_bounds = array<i64: 2, 8, 1>}, {pipeline_mode = #tpu.pipeline_mode<synchronous>, transform_indices = @transform_6, window_bounds = array<i64: 2, 8, 1>}, {pipeline_mode = #tpu.pipeline_mode<synchronous>, transform_indices = @transform_7, window_bounds = array<i64: 2, 8, 8>}, {pipeline_mode = #tpu.pipeline_mode<synchronous>, transform_indices = @transform_8, window_bounds = array<i64: 2, 8, 1>}, {pipeline_mode = #tpu.pipeline_mode<synchronous>, transform_indices = @transform_9, window_bounds = array<i64: 2, 8, 8>}, {pipeline_mode = #tpu.pipeline_mode<synchronous>, transform_indices = @transform_10, window_bounds = array<i64: 2, 8, 1>}, {pipeline_mode = #tpu.pipeline_mode<synchronous>, transform_indices = @transform_11, window_bounds = array<i64: 8, 64>}]} {
    %cst = arith.constant 0.000000e+00 : f32
    %0 = vector.broadcast %cst : f32 to vector<8x72xf32>
    %c0 = arith.constant 0 : index
    %c0_0 = arith.constant 0 : index
    %1 = vector.load %arg13[%c0, %c0_0] : memref<8x72xf32, #tpu.memory_space<vmem>>, vector<8x72xf32>
    tpu.vector_store %arg13[%c0, %c0_0], %0 {strides = array<i32>} : memref<8x72xf32, #tpu.memory_space<vmem>>, vector<8x72xf32>,
    %c0_1 = arith.constant 0 : index
    %c0_2 = arith.constant 0 : index
    %2 = vector.load %arg1[%c0_1, %c0_2] : memref<8x64xf32, #tpu.memory_space<vmem>>, vector<8x64xf32>
    %c0_3 = arith.constant 0 : index
    %c4 = arith.constant 4 : index
    %3 = vector.load %arg13[%c0_3, %c4] : memref<8x72xf32, #tpu.memory_space<vmem>>, vector<8x64xf32>
    tpu.vector_store %arg13[%c0_3, %c4], %2 {strides = array<i32>} : memref<8x72xf32, #tpu.memory_space<vmem>>, vector<8x64xf32>,
    %cst_4 = arith.constant 0.000000e+00 : f32
    %4 = vector.broadcast %cst_4 : f32 to vector<8x64xf32>
    %cst_5 = arith.constant 0.000000e+00 : f32
    %5 = vector.broadcast %cst_5 : f32 to vector<8x64xf32>
    %cst_6 = arith.constant 0.000000e+00 : f32
    %6 = vector.broadcast %cst_6 : f32 to vector<8x64xf32>
    %c0_7 = arith.constant 0 : index
    %c2 = arith.constant 2 : index
    %7 = vector.load %arg13[%c0_7, %c2] : memref<8x72xf32, #tpu.memory_space<vmem>>, vector<8x64xf32>
    %8 = arith.truncf %7 : vector<8x64xf32> to vector<8x64xbf16>
    %c0_8 = arith.constant 0 : index
    %c0_9 = arith.constant 0 : index
    %c0_10 = arith.constant 0 : index
    %9 = vector.load %arg2[%c0_8, %c0_9, %c0_10] : memref<6x8x8xbf16, #tpu.memory_space<vmem>>, vector<1x8x8xbf16>
    %10 = vector.shape_cast %9 : vector<1x8x8xbf16> to vector<8x8xbf16>
    %cst_11 = arith.constant dense<0.000000e+00> : vector<8x64xf32>
    %11 = tpu.matmul %10, %8, %cst_11 {dimension_numbers = #tpu.dot_dimension_numbers<[1], [0], [0], [1], [0, 0, 1, 1], [], []>} : vector<8x8xbf16>, vector<8x64xbf16>, vector<8x64xf32> -> vector<8x64xf32>
    %12 = arith.addf %5, %11 : vector<8x64xf32>
    %c0_12 = arith.constant 0 : index
    %c0_13 = arith.constant 0 : index
    %c0_14 = arith.constant 0 : index
    %13 = vector.load %arg3[%c0_12, %c0_13, %c0_14] : memref<6x8x8xbf16, #tpu.memory_space<vmem>>, vector<1x8x8xbf16>
    %14 = vector.shape_cast %13 : vector<1x8x8xbf16> to vector<8x8xbf16>
    %cst_15 = arith.constant dense<0.000000e+00> : vector<8x64xf32>
    %15 = tpu.matmul %14, %8, %cst_15 {dimension_numbers = #tpu.dot_dimension_numbers<[1], [0], [0], [1], [0, 0, 1, 1], [], []>} : vector<8x8xbf16>, vector<8x64xbf16>, vector<8x64xf32> -> vector<8x64xf32>
    %16 = arith.addf %6, %15 : vector<8x64xf32>
    %c0_16 = arith.constant 0 : index
    %c4_17 = arith.constant 4 : index
    %17 = vector.load %arg13[%c0_16, %c4_17] : memref<8x72xf32, #tpu.memory_space<vmem>>, vector<8x64xf32>
    %18 = arith.truncf %17 : vector<8x64xf32> to vector<8x64xbf16>
    %c1 = arith.constant 1 : index
    %c0_18 = arith.constant 0 : index
    %c0_19 = arith.constant 0 : index
    %19 = vector.load %arg2[%c1, %c0_18, %c0_19] : memref<6x8x8xbf16, #tpu.memory_space<vmem>>, vector<1x8x8xbf16>
    %20 = vector.shape_cast %19 : vector<1x8x8xbf16> to vector<8x8xbf16>
    %cst_20 = arith.constant dense<0.000000e+00> : vector<8x64xf32>
    %21 = tpu.matmul %20, %18, %cst_20 {dimension_numbers = #tpu.dot_dimension_numbers<[1], [0], [0], [1], [0, 0, 1, 1], [], []>} : vector<8x8xbf16>, vector<8x64xbf16>, vector<8x64xf32> -> vector<8x64xf32>
    %22 = arith.addf %12, %21 : vector<8x64xf32>
    %c1_21 = arith.constant 1 : index
    %c0_22 = arith.constant 0 : index
    %c0_23 = arith.constant 0 : index
    %23 = vector.load %arg3[%c1_21, %c0_22, %c0_23] : memref<6x8x8xbf16, #tpu.memory_space<vmem>>, vector<1x8x8xbf16>
    %24 = vector.shape_cast %23 : vector<1x8x8xbf16> to vector<8x8xbf16>
    %cst_24 = arith.constant dense<0.000000e+00> : vector<8x64xf32>
    %25 = tpu.matmul %24, %18, %cst_24 {dimension_numbers = #tpu.dot_dimension_numbers<[1], [0], [0], [1], [0, 0, 1, 1], [], []>} : vector<8x8xbf16>, vector<8x64xbf16>, vector<8x64xf32> -> vector<8x64xf32>
    %26 = arith.addf %16, %25 : vector<8x64xf32>
    %c0_25 = arith.constant 0 : index
    %c6 = arith.constant 6 : index
    %27 = vector.load %arg13[%c0_25, %c6] : memref<8x72xf32, #tpu.memory_space<vmem>>, vector<8x64xf32>
    %28 = arith.truncf %27 : vector<8x64xf32> to vector<8x64xbf16>
    %c2_26 = arith.constant 2 : index
    %c0_27 = arith.constant 0 : index
    %c0_28 = arith.constant 0 : index
    %29 = vector.load %arg2[%c2_26, %c0_27, %c0_28] : memref<6x8x8xbf16, #tpu.memory_space<vmem>>, vector<1x8x8xbf16>
    %30 = vector.shape_cast %29 : vector<1x8x8xbf16> to vector<8x8xbf16>
    %cst_29 = arith.constant dense<0.000000e+00> : vector<8x64xf32>
    %31 = tpu.matmul %30, %28, %cst_29 {dimension_numbers = #tpu.dot_dimension_numbers<[1], [0], [0], [1], [0, 0, 1, 1], [], []>} : vector<8x8xbf16>, vector<8x64xbf16>, vector<8x64xf32> -> vector<8x64xf32>
    %32 = arith.addf %22, %31 : vector<8x64xf32>
    %c2_30 = arith.constant 2 : index
    %c0_31 = arith.constant 0 : index
    %c0_32 = arith.constant 0 : index
    %33 = vector.load %arg3[%c2_30, %c0_31, %c0_32] : memref<6x8x8xbf16, #tpu.memory_space<vmem>>, vector<1x8x8xbf16>
    %34 = vector.shape_cast %33 : vector<1x8x8xbf16> to vector<8x8xbf16>
    %cst_33 = arith.constant dense<0.000000e+00> : vector<8x64xf32>
    %35 = tpu.matmul %34, %28, %cst_33 {dimension_numbers = #tpu.dot_dimension_numbers<[1], [0], [0], [1], [0, 0, 1, 1], [], []>} : vector<8x8xbf16>, vector<8x64xbf16>, vector<8x64xf32> -> vector<8x64xf32>
    %36 = arith.addf %26, %35 : vector<8x64xf32>
    %c0_34 = arith.constant 0 : index
    %c0_35 = arith.constant 0 : index
    %c0_36 = arith.constant 0 : index
    %37 = vector.load %arg4[%c0_34, %c0_35, %c0_36] : memref<2x8x1xf32, #tpu.memory_space<vmem>>, vector<1x8x1xf32>
    %38 = vector.shape_cast %37 : vector<1x8x1xf32> to vector<8x1xf32>
    %39 = vector.broadcast %38 : vector<8x1xf32> to vector<8x64xf32>
    %40 = arith.mulf %32, %39 : vector<8x64xf32>
    %c0_37 = arith.constant 0 : index
    %c0_38 = arith.constant 0 : index
    %c0_39 = arith.constant 0 : index
    %41 = vector.load %arg5[%c0_37, %c0_38, %c0_39] : memref<2x8x1xf32, #tpu.memory_space<vmem>>, vector<1x8x1xf32>
    %42 = vector.shape_cast %41 : vector<1x8x1xf32> to vector<8x1xf32>
    %43 = vector.broadcast %42 : vector<8x1xf32> to vector<8x64xf32>
    %44 = arith.addf %40, %43 : vector<8x64xf32>
    %c0_40 = arith.constant 0 : index
    %c0_41 = arith.constant 0 : index
    %c0_42 = arith.constant 0 : index
    %45 = vector.load %arg6[%c0_40, %c0_41, %c0_42] : memref<2x8x1xf32, #tpu.memory_space<vmem>>, vector<1x8x1xf32>
    %46 = vector.shape_cast %45 : vector<1x8x1xf32> to vector<8x1xf32>
    %47 = vector.broadcast %46 : vector<8x1xf32> to vector<8x64xf32>
    %48 = arith.mulf %36, %47 : vector<8x64xf32>
    %c0_43 = arith.constant 0 : index
    %c0_44 = arith.constant 0 : index
    %c0_45 = arith.constant 0 : index
    %49 = vector.load %arg7[%c0_43, %c0_44, %c0_45] : memref<2x8x1xf32, #tpu.memory_space<vmem>>, vector<1x8x1xf32>
    %50 = vector.shape_cast %49 : vector<1x8x1xf32> to vector<8x1xf32>
    %51 = vector.broadcast %50 : vector<8x1xf32> to vector<8x64xf32>
    %52 = arith.addf %48, %51 : vector<8x64xf32>
    %53 = math.tanh %44 : vector<8x64xf32>
    %54 = arith.negf %52 : vector<8x64xf32>
    %55 = math.exp %54 : vector<8x64xf32>
    %cst_46 = arith.constant 1.000000e+00 : f32
    %56 = vector.broadcast %cst_46 : f32 to vector<8x64xf32>
    %57 = arith.addf %56, %55 : vector<8x64xf32>
    %58 = arith.divf %56, %57 : vector<8x64xf32>
    %59 = arith.mulf %53, %58 : vector<8x64xf32>
    %60 = arith.truncf %59 : vector<8x64xf32> to vector<8x64xbf16>
    %c0_47 = arith.constant 0 : index
    %c0_48 = arith.constant 0 : index
    %c0_49 = arith.constant 0 : index
    %61 = vector.load %arg8[%c0_47, %c0_48, %c0_49] : memref<2x8x8xbf16, #tpu.memory_space<vmem>>, vector<1x8x8xbf16>
    %62 = vector.shape_cast %61 : vector<1x8x8xbf16> to vector<8x8xbf16>
    %cst_50 = arith.constant dense<0.000000e+00> : vector<8x64xf32>
    %63 = tpu.matmul %62, %60, %cst_50 {dimension_numbers = #tpu.dot_dimension_numbers<[1], [0], [0], [1], [0, 0, 1, 1], [], []>} : vector<8x8xbf16>, vector<8x64xbf16>, vector<8x64xf32> -> vector<8x64xf32>
    %c0_51 = arith.constant 0 : index
    %c0_52 = arith.constant 0 : index
    %c0_53 = arith.constant 0 : index
    %64 = vector.load %arg9[%c0_51, %c0_52, %c0_53] : memref<2x8x1xf32, #tpu.memory_space<vmem>>, vector<1x8x1xf32>
    %65 = vector.shape_cast %64 : vector<1x8x1xf32> to vector<8x1xf32>
    %66 = vector.broadcast %65 : vector<8x1xf32> to vector<8x64xf32>
    %67 = arith.addf %63, %66 : vector<8x64xf32>
    %c0_54 = arith.constant 0 : index
    %c4_55 = arith.constant 4 : index
    %68 = vector.load %arg13[%c0_54, %c4_55] : memref<8x72xf32, #tpu.memory_space<vmem>>, vector<8x64xf32>
    %69 = arith.addf %68, %67 : vector<8x64xf32>
    %c0_56 = arith.constant 0 : index
    %c4_57 = arith.constant 4 : index
    %70 = vector.load %arg13[%c0_56, %c4_57] : memref<8x72xf32, #tpu.memory_space<vmem>>, vector<8x64xf32>
    tpu.vector_store %arg13[%c0_56, %c4_57], %69 {strides = array<i32>} : memref<8x72xf32, #tpu.memory_space<vmem>>, vector<8x64xf32>,
    %c0_58 = arith.constant 0 : index
    %c0_59 = arith.constant 0 : index
    %c0_60 = arith.constant 0 : index
    %71 = vector.load %arg10[%c0_58, %c0_59, %c0_60] : memref<2x8x8xbf16, #tpu.memory_space<vmem>>, vector<1x8x8xbf16>
    %72 = vector.shape_cast %71 : vector<1x8x8xbf16> to vector<8x8xbf16>
    %cst_61 = arith.constant dense<0.000000e+00> : vector<8x64xf32>
    %73 = tpu.matmul %72, %60, %cst_61 {dimension_numbers = #tpu.dot_dimension_numbers<[1], [0], [0], [1], [0, 0, 1, 1], [], []>} : vector<8x8xbf16>, vector<8x64xbf16>, vector<8x64xf32> -> vector<8x64xf32>
    %74 = arith.addf %4, %73 : vector<8x64xf32>
    %c0_62 = arith.constant 0 : index
    %c0_63 = arith.constant 0 : index
    %c0_64 = arith.constant 0 : index
    %75 = vector.load %arg11[%c0_62, %c0_63, %c0_64] : memref<2x8x1xf32, #tpu.memory_space<vmem>>, vector<1x8x1xf32>
    %76 = vector.shape_cast %75 : vector<1x8x1xf32> to vector<8x1xf32>
    %77 = vector.broadcast %76 : vector<8x1xf32> to vector<8x64xf32>
    %78 = arith.addf %74, %77 : vector<8x64xf32>
    %cst_65 = arith.constant 0.000000e+00 : f32
    %79 = vector.broadcast %cst_65 : f32 to vector<8x64xf32>
    %cst_66 = arith.constant 0.000000e+00 : f32
    %80 = vector.broadcast %cst_66 : f32 to vector<8x64xf32>
    %c0_67 = arith.constant 0 : index
    %c0_68 = arith.constant 0 : index
    %81 = vector.load %arg13[%c0_67, %c0_68] : memref<8x72xf32, #tpu.memory_space<vmem>>, vector<8x64xf32>
    %82 = arith.truncf %81 : vector<8x64xf32> to vector<8x64xbf16>
    %c3 = arith.constant 3 : index
    %c0_69 = arith.constant 0 : index
    %c0_70 = arith.constant 0 : index
    %83 = vector.load %arg2[%c3, %c0_69, %c0_70] : memref<6x8x8xbf16, #tpu.memory_space<vmem>>, vector<1x8x8xbf16>
    %84 = vector.shape_cast %83 : vector<1x8x8xbf16> to vector<8x8xbf16>
    %cst_71 = arith.constant dense<0.000000e+00> : vector<8x64xf32>
    %85 = tpu.matmul %84, %82, %cst_71 {dimension_numbers = #tpu.dot_dimension_numbers<[1], [0], [0], [1], [0, 0, 1, 1], [], []>} : vector<8x8xbf16>, vector<8x64xbf16>, vector<8x64xf32> -> vector<8x64xf32>
    %86 = arith.addf %79, %85 : vector<8x64xf32>
    %c3_72 = arith.constant 3 : index
    %c0_73 = arith.constant 0 : index
    %c0_74 = arith.constant 0 : index
    %87 = vector.load %arg3[%c3_72, %c0_73, %c0_74] : memref<6x8x8xbf16, #tpu.memory_space<vmem>>, vector<1x8x8xbf16>
    %88 = vector.shape_cast %87 : vector<1x8x8xbf16> to vector<8x8xbf16>
    %cst_75 = arith.constant dense<0.000000e+00> : vector<8x64xf32>
    %89 = tpu.matmul %88, %82, %cst_75 {dimension_numbers = #tpu.dot_dimension_numbers<[1], [0], [0], [1], [0, 0, 1, 1], [], []>} : vector<8x8xbf16>, vector<8x64xbf16>, vector<8x64xf32> -> vector<8x64xf32>
    %90 = arith.addf %80, %89 : vector<8x64xf32>
    %c0_76 = arith.constant 0 : index
    %c4_77 = arith.constant 4 : index
    %91 = vector.load %arg13[%c0_76, %c4_77] : memref<8x72xf32, #tpu.memory_space<vmem>>, vector<8x64xf32>
    %92 = arith.truncf %91 : vector<8x64xf32> to vector<8x64xbf16>
    %c4_78 = arith.constant 4 : index
    %c0_79 = arith.constant 0 : index
    %c0_80 = arith.constant 0 : index
    %93 = vector.load %arg2[%c4_78, %c0_79, %c0_80] : memref<6x8x8xbf16, #tpu.memory_space<vmem>>, vector<1x8x8xbf16>
    %94 = vector.shape_cast %93 : vector<1x8x8xbf16> to vector<8x8xbf16>
    %cst_81 = arith.constant dense<0.000000e+00> : vector<8x64xf32>
    %95 = tpu.matmul %94, %92, %cst_81 {dimension_numbers = #tpu.dot_dimension_numbers<[1], [0], [0], [1], [0, 0, 1, 1], [], []>} : vector<8x8xbf16>, vector<8x64xbf16>, vector<8x64xf32> -> vector<8x64xf32>
    %96 = arith.addf %86, %95 : vector<8x64xf32>
    %c4_82 = arith.constant 4 : index
    %c0_83 = arith.constant 0 : index
    %c0_84 = arith.constant 0 : index
    %97 = vector.load %arg3[%c4_82, %c0_83, %c0_84] : memref<6x8x8xbf16, #tpu.memory_space<vmem>>, vector<1x8x8xbf16>
    %98 = vector.shape_cast %97 : vector<1x8x8xbf16> to vector<8x8xbf16>
    %cst_85 = arith.constant dense<0.000000e+00> : vector<8x64xf32>
    %99 = tpu.matmul %98, %92, %cst_85 {dimension_numbers = #tpu.dot_dimension_numbers<[1], [0], [0], [1], [0, 0, 1, 1], [], []>} : vector<8x8xbf16>, vector<8x64xbf16>, vector<8x64xf32> -> vector<8x64xf32>
    %100 = arith.addf %90, %99 : vector<8x64xf32>
    %c0_86 = arith.constant 0 : index
    %c8 = arith.constant 8 : index
    %101 = vector.load %arg13[%c0_86, %c8] : memref<8x72xf32, #tpu.memory_space<vmem>>, vector<8x64xf32>
    %102 = arith.truncf %101 : vector<8x64xf32> to vector<8x64xbf16>
    %c5 = arith.constant 5 : index
    %c0_87 = arith.constant 0 : index
    %c0_88 = arith.constant 0 : index
    %103 = vector.load %arg2[%c5, %c0_87, %c0_88] : memref<6x8x8xbf16, #tpu.memory_space<vmem>>, vector<1x8x8xbf16>
    %104 = vector.shape_cast %103 : vector<1x8x8xbf16> to vector<8x8xbf16>
    %cst_89 = arith.constant dense<0.000000e+00> : vector<8x64xf32>
    %105 = tpu.matmul %104, %102, %cst_89 {dimension_numbers = #tpu.dot_dimension_numbers<[1], [0], [0], [1], [0, 0, 1, 1], [], []>} : vector<8x8xbf16>, vector<8x64xbf16>, vector<8x64xf32> -> vector<8x64xf32>
    %106 = arith.addf %96, %105 : vector<8x64xf32>
    %c5_90 = arith.constant 5 : index
    %c0_91 = arith.constant 0 : index
    %c0_92 = arith.constant 0 : index
    %107 = vector.load %arg3[%c5_90, %c0_91, %c0_92] : memref<6x8x8xbf16, #tpu.memory_space<vmem>>, vector<1x8x8xbf16>
    %108 = vector.shape_cast %107 : vector<1x8x8xbf16> to vector<8x8xbf16>
    %cst_93 = arith.constant dense<0.000000e+00> : vector<8x64xf32>
    %109 = tpu.matmul %108, %102, %cst_93 {dimension_numbers = #tpu.dot_dimension_numbers<[1], [0], [0], [1], [0, 0, 1, 1], [], []>} : vector<8x8xbf16>, vector<8x64xbf16>, vector<8x64xf32> -> vector<8x64xf32>
    %110 = arith.addf %100, %109 : vector<8x64xf32>
    %c1_94 = arith.constant 1 : index
    %c0_95 = arith.constant 0 : index
    %c0_96 = arith.constant 0 : index
    %111 = vector.load %arg4[%c1_94, %c0_95, %c0_96] : memref<2x8x1xf32, #tpu.memory_space<vmem>>, vector<1x8x1xf32>
    %112 = vector.shape_cast %111 : vector<1x8x1xf32> to vector<8x1xf32>
    %113 = vector.broadcast %112 : vector<8x1xf32> to vector<8x64xf32>
    %114 = arith.mulf %106, %113 : vector<8x64xf32>
    %c1_97 = arith.constant 1 : index
    %c0_98 = arith.constant 0 : index
    %c0_99 = arith.constant 0 : index
    %115 = vector.load %arg5[%c1_97, %c0_98, %c0_99] : memref<2x8x1xf32, #tpu.memory_space<vmem>>, vector<1x8x1xf32>
    %116 = vector.shape_cast %115 : vector<1x8x1xf32> to vector<8x1xf32>
    %117 = vector.broadcast %116 : vector<8x1xf32> to vector<8x64xf32>
    %118 = arith.addf %114, %117 : vector<8x64xf32>
    %c1_100 = arith.constant 1 : index
    %c0_101 = arith.constant 0 : index
    %c0_102 = arith.constant 0 : index
    %119 = vector.load %arg6[%c1_100, %c0_101, %c0_102] : memref<2x8x1xf32, #tpu.memory_space<vmem>>, vector<1x8x1xf32>
    %120 = vector.shape_cast %119 : vector<1x8x1xf32> to vector<8x1xf32>
    %121 = vector.broadcast %120 : vector<8x1xf32> to vector<8x64xf32>
    %122 = arith.mulf %110, %121 : vector<8x64xf32>
    %c1_103 = arith.constant 1 : index
    %c0_104 = arith.constant 0 : index
    %c0_105 = arith.constant 0 : index
    %123 = vector.load %arg7[%c1_103, %c0_104, %c0_105] : memref<2x8x1xf32, #tpu.memory_space<vmem>>, vector<1x8x1xf32>
    %124 = vector.shape_cast %123 : vector<1x8x1xf32> to vector<8x1xf32>
    %125 = vector.broadcast %124 : vector<8x1xf32> to vector<8x64xf32>
    %126 = arith.addf %122, %125 : vector<8x64xf32>
    %127 = math.tanh %118 : vector<8x64xf32>
    %128 = arith.negf %126 : vector<8x64xf32>
    %129 = math.exp %128 : vector<8x64xf32>
    %cst_106 = arith.constant 1.000000e+00 : f32
    %130 = vector.broadcast %cst_106 : f32 to vector<8x64xf32>
    %131 = arith.addf %130, %129 : vector<8x64xf32>
    %132 = arith.divf %130, %131 : vector<8x64xf32>
    %133 = arith.mulf %127, %132 : vector<8x64xf32>
    %134 = arith.truncf %133 : vector<8x64xf32> to vector<8x64xbf16>
    %c1_107 = arith.constant 1 : index
    %c0_108 = arith.constant 0 : index
    %c0_109 = arith.constant 0 : index
    %135 = vector.load %arg8[%c1_107, %c0_108, %c0_109] : memref<2x8x8xbf16, #tpu.memory_space<vmem>>, vector<1x8x8xbf16>
    %136 = vector.shape_cast %135 : vector<1x8x8xbf16> to vector<8x8xbf16>
    %cst_110 = arith.constant dense<0.000000e+00> : vector<8x64xf32>
    %137 = tpu.matmul %136, %134, %cst_110 {dimension_numbers = #tpu.dot_dimension_numbers<[1], [0], [0], [1], [0, 0, 1, 1], [], []>} : vector<8x8xbf16>, vector<8x64xbf16>, vector<8x64xf32> -> vector<8x64xf32>
    %c1_111 = arith.constant 1 : index
    %c0_112 = arith.constant 0 : index
    %c0_113 = arith.constant 0 : index
    %138 = vector.load %arg9[%c1_111, %c0_112, %c0_113] : memref<2x8x1xf32, #tpu.memory_space<vmem>>, vector<1x8x1xf32>
    %139 = vector.shape_cast %138 : vector<1x8x1xf32> to vector<8x1xf32>
    %140 = vector.broadcast %139 : vector<8x1xf32> to vector<8x64xf32>
    %141 = arith.addf %137, %140 : vector<8x64xf32>
    %c0_114 = arith.constant 0 : index
    %c4_115 = arith.constant 4 : index
    %142 = vector.load %arg13[%c0_114, %c4_115] : memref<8x72xf32, #tpu.memory_space<vmem>>, vector<8x64xf32>
    %143 = arith.addf %142, %141 : vector<8x64xf32>
    %c0_116 = arith.constant 0 : index
    %c4_117 = arith.constant 4 : index
    %144 = vector.load %arg13[%c0_116, %c4_117] : memref<8x72xf32, #tpu.memory_space<vmem>>, vector<8x64xf32>
    tpu.vector_store %arg13[%c0_116, %c4_117], %143 {strides = array<i32>} : memref<8x72xf32, #tpu.memory_space<vmem>>, vector<8x64xf32>,
    %c1_118 = arith.constant 1 : index
    %c0_119 = arith.constant 0 : index
    %c0_120 = arith.constant 0 : index
    %145 = vector.load %arg10[%c1_118, %c0_119, %c0_120] : memref<2x8x8xbf16, #tpu.memory_space<vmem>>, vector<1x8x8xbf16>
    %146 = vector.shape_cast %145 : vector<1x8x8xbf16> to vector<8x8xbf16>
    %cst_121 = arith.constant dense<0.000000e+00> : vector<8x64xf32>
    %147 = tpu.matmul %146, %134, %cst_121 {dimension_numbers = #tpu.dot_dimension_numbers<[1], [0], [0], [1], [0, 0, 1, 1], [], []>} : vector<8x8xbf16>, vector<8x64xbf16>, vector<8x64xf32> -> vector<8x64xf32>
    %148 = arith.addf %78, %147 : vector<8x64xf32>
    %c1_122 = arith.constant 1 : index
    %c0_123 = arith.constant 0 : index
    %c0_124 = arith.constant 0 : index
    %149 = vector.load %arg11[%c1_122, %c0_123, %c0_124] : memref<2x8x1xf32, #tpu.memory_space<vmem>>, vector<1x8x1xf32>
    %150 = vector.shape_cast %149 : vector<1x8x1xf32> to vector<8x1xf32>
    %151 = vector.broadcast %150 : vector<8x1xf32> to vector<8x64xf32>
    %152 = arith.addf %148, %151 : vector<8x64xf32>
    %c0_125 = arith.constant 0 : index
    %c0_126 = arith.constant 0 : index
    %153 = vector.load %arg12[%c0_125, %c0_126] : memref<8x64xf32, #tpu.memory_space<vmem>>, vector<8x64xf32>
    tpu.vector_store %arg12[%c0_125, %c0_126], %152 {strides = array<i32>} : memref<8x64xf32, #tpu.memory_space<vmem>>, vector<8x64xf32>,
    return
  }
  func.func @transform_0(%arg0: i32) -> (i32, i32) {
    %c0_i32 = arith.constant 0 : i32
    %c0_i32_0 = arith.constant 0 : i32
    %c0_i32_1 = arith.constant 0 : i32
    return %c0_i32, %c0_i32_0 : i32, i32
  }
  func.func @transform_1(%arg0: i32) -> (i32, i32, i32) {
    %c0_i32 = arith.constant 0 : i32
    %c0_i32_0 = arith.constant 0 : i32
    %c0_i32_1 = arith.constant 0 : i32
    %c0_i32_2 = arith.constant 0 : i32
    return %c0_i32, %c0_i32_0, %c0_i32_1 : i32, i32, i32
  }
  func.func @transform_2(%arg0: i32) -> (i32, i32, i32) {
    %c0_i32 = arith.constant 0 : i32
    %c0_i32_0 = arith.constant 0 : i32
    %c0_i32_1 = arith.constant 0 : i32
    %c0_i32_2 = arith.constant 0 : i32
    return %c0_i32, %c0_i32_0, %c0_i32_1 : i32, i32, i32
  }
  func.func @transform_3(%arg0: i32) -> (i32, i32, i32) {
    %c0_i32 = arith.constant 0 : i32
    %c0_i32_0 = arith.constant 0 : i32
    %c0_i32_1 = arith.constant 0 : i32
    %c0_i32_2 = arith.constant 0 : i32
    return %c0_i32, %c0_i32_0, %c0_i32_1 : i32, i32, i32
  }
  func.func @transform_4(%arg0: i32) -> (i32, i32, i32) {
    %c0_i32 = arith.constant 0 : i32
    %c0_i32_0 = arith.constant 0 : i32
    %c0_i32_1 = arith.constant 0 : i32
    %c0_i32_2 = arith.constant 0 : i32
    return %c0_i32, %c0_i32_0, %c0_i32_1 : i32, i32, i32
  }
  func.func @transform_5(%arg0: i32) -> (i32, i32, i32) {
    %c0_i32 = arith.constant 0 : i32
    %c0_i32_0 = arith.constant 0 : i32
    %c0_i32_1 = arith.constant 0 : i32
    %c0_i32_2 = arith.constant 0 : i32
    return %c0_i32, %c0_i32_0, %c0_i32_1 : i32, i32, i32
  }
  func.func @transform_6(%arg0: i32) -> (i32, i32, i32) {
    %c0_i32 = arith.constant 0 : i32
    %c0_i32_0 = arith.constant 0 : i32
    %c0_i32_1 = arith.constant 0 : i32
    %c0_i32_2 = arith.constant 0 : i32
    return %c0_i32, %c0_i32_0, %c0_i32_1 : i32, i32, i32
  }
  func.func @transform_7(%arg0: i32) -> (i32, i32, i32) {
    %c0_i32 = arith.constant 0 : i32
    %c0_i32_0 = arith.constant 0 : i32
    %c0_i32_1 = arith.constant 0 : i32
    %c0_i32_2 = arith.constant 0 : i32
    return %c0_i32, %c0_i32_0, %c0_i32_1 : i32, i32, i32
  }
  func.func @transform_8(%arg0: i32) -> (i32, i32, i32) {
    %c0_i32 = arith.constant 0 : i32
    %c0_i32_0 = arith.constant 0 : i32
    %c0_i32_1 = arith.constant 0 : i32
    %c0_i32_2 = arith.constant 0 : i32
    return %c0_i32, %c0_i32_0, %c0_i32_1 : i32, i32, i32
  }
  func.func @transform_9(%arg0: i32) -> (i32, i32, i32) {
    %c0_i32 = arith.constant 0 : i32
    %c0_i32_0 = arith.constant 0 : i32
    %c0_i32_1 = arith.constant 0 : i32
    %c0_i32_2 = arith.constant 0 : i32
    return %c0_i32, %c0_i32_0, %c0_i32_1 : i32, i32, i32
  }
  func.func @transform_10(%arg0: i32) -> (i32, i32, i32) {
    %c0_i32 = arith.constant 0 : i32
    %c0_i32_0 = arith.constant 0 : i32
    %c0_i32_1 = arith.constant 0 : i32
    %c0_i32_2 = arith.constant 0 : i32
    return %c0_i32, %c0_i32_0, %c0_i32_1 : i32, i32, i32
  }
  func.func @transform_11(%arg0: i32) -> (i32, i32) {
    %c0_i32 = arith.constant 0 : i32
    %c0_i32_0 = arith.constant 0 : i32
    %c0_i32_1 = arith.constant 0 : i32
    return %c0_i32, %c0_i32_0 : i32, i32
  }
}

module attributes {stable_mosaic.version = 11 : i64} {
  func.func @_conv_glu_kernel(%arg0: i32, %arg1: memref<8x64xf32, #tpu.memory_space<vmem>>, %arg2: memref<3x8x8xbf16, #tpu.memory_space<vmem>>, %arg3: memref<3x8x8xbf16, #tpu.memory_space<vmem>>, %arg4: memref<8x1xf32, #tpu.memory_space<vmem>>, %arg5: memref<8x1xf32, #tpu.memory_space<vmem>>, %arg6: memref<8x1xf32, #tpu.memory_space<vmem>>, %arg7: memref<8x1xf32, #tpu.memory_space<vmem>>, %arg8: memref<8x64xf32, #tpu.memory_space<vmem>>, %arg9: memref<8x68xf32, #tpu.memory_space<vmem>>) attributes {dimension_semantics = [#tpu.dimension_semantics<arbitrary>], iteration_bounds = array<i64: 1>, scalar_prefetch = 0 : i64, scratch_operands = 1 : i64, tpu.core_type = #tpu.core_type<tc>, window_params = [{pipeline_mode = #tpu.pipeline_mode<synchronous>, transform_indices = @transform_0, window_bounds = array<i64: 8, 64>}, {pipeline_mode = #tpu.pipeline_mode<synchronous>, transform_indices = @transform_1, window_bounds = array<i64: 3, 8, 8>}, {pipeline_mode = #tpu.pipeline_mode<synchronous>, transform_indices = @transform_2, window_bounds = array<i64: 3, 8, 8>}, {pipeline_mode = #tpu.pipeline_mode<synchronous>, transform_indices = @transform_3, window_bounds = array<i64: 8, 1>}, {pipeline_mode = #tpu.pipeline_mode<synchronous>, transform_indices = @transform_4, window_bounds = array<i64: 8, 1>}, {pipeline_mode = #tpu.pipeline_mode<synchronous>, transform_indices = @transform_5, window_bounds = array<i64: 8, 1>}, {pipeline_mode = #tpu.pipeline_mode<synchronous>, transform_indices = @transform_6, window_bounds = array<i64: 8, 1>}, {pipeline_mode = #tpu.pipeline_mode<synchronous>, transform_indices = @transform_7, window_bounds = array<i64: 8, 64>}]} {
    %cst = arith.constant 0.000000e+00 : f32
    %0 = vector.broadcast %cst : f32 to vector<8x68xf32>
    %c0 = arith.constant 0 : index
    %c0_0 = arith.constant 0 : index
    %1 = vector.load %arg9[%c0, %c0_0] : memref<8x68xf32, #tpu.memory_space<vmem>>, vector<8x68xf32>
    tpu.vector_store %arg9[%c0, %c0_0], %0 {strides = array<i32>} : memref<8x68xf32, #tpu.memory_space<vmem>>, vector<8x68xf32>,
    %c0_1 = arith.constant 0 : index
    %c0_2 = arith.constant 0 : index
    %2 = vector.load %arg1[%c0_1, %c0_2] : memref<8x64xf32, #tpu.memory_space<vmem>>, vector<8x64xf32>
    %c0_3 = arith.constant 0 : index
    %c2 = arith.constant 2 : index
    %3 = vector.load %arg9[%c0_3, %c2] : memref<8x68xf32, #tpu.memory_space<vmem>>, vector<8x64xf32>
    tpu.vector_store %arg9[%c0_3, %c2], %2 {strides = array<i32>} : memref<8x68xf32, #tpu.memory_space<vmem>>, vector<8x64xf32>,
    %cst_4 = arith.constant 0.000000e+00 : f32
    %4 = vector.broadcast %cst_4 : f32 to vector<8x64xf32>
    %cst_5 = arith.constant 0.000000e+00 : f32
    %5 = vector.broadcast %cst_5 : f32 to vector<8x64xf32>
    %c0_6 = arith.constant 0 : index
    %c0_7 = arith.constant 0 : index
    %6 = vector.load %arg9[%c0_6, %c0_7] : memref<8x68xf32, #tpu.memory_space<vmem>>, vector<8x64xf32>
    %7 = arith.truncf %6 : vector<8x64xf32> to vector<8x64xbf16>
    %c0_8 = arith.constant 0 : index
    %c0_9 = arith.constant 0 : index
    %c0_10 = arith.constant 0 : index
    %8 = vector.load %arg2[%c0_8, %c0_9, %c0_10] : memref<3x8x8xbf16, #tpu.memory_space<vmem>>, vector<1x8x8xbf16>
    %9 = vector.shape_cast %8 : vector<1x8x8xbf16> to vector<8x8xbf16>
    %cst_11 = arith.constant dense<0.000000e+00> : vector<8x64xf32>
    %10 = tpu.matmul %9, %7, %cst_11 {dimension_numbers = #tpu.dot_dimension_numbers<[1], [0], [0], [1], [0, 0, 1, 1], [], []>} : vector<8x8xbf16>, vector<8x64xbf16>, vector<8x64xf32> -> vector<8x64xf32>
    %11 = arith.addf %4, %10 : vector<8x64xf32>
    %c0_12 = arith.constant 0 : index
    %c0_13 = arith.constant 0 : index
    %c0_14 = arith.constant 0 : index
    %12 = vector.load %arg3[%c0_12, %c0_13, %c0_14] : memref<3x8x8xbf16, #tpu.memory_space<vmem>>, vector<1x8x8xbf16>
    %13 = vector.shape_cast %12 : vector<1x8x8xbf16> to vector<8x8xbf16>
    %cst_15 = arith.constant dense<0.000000e+00> : vector<8x64xf32>
    %14 = tpu.matmul %13, %7, %cst_15 {dimension_numbers = #tpu.dot_dimension_numbers<[1], [0], [0], [1], [0, 0, 1, 1], [], []>} : vector<8x8xbf16>, vector<8x64xbf16>, vector<8x64xf32> -> vector<8x64xf32>
    %15 = arith.addf %5, %14 : vector<8x64xf32>
    %c0_16 = arith.constant 0 : index
    %c2_17 = arith.constant 2 : index
    %16 = vector.load %arg9[%c0_16, %c2_17] : memref<8x68xf32, #tpu.memory_space<vmem>>, vector<8x64xf32>
    %17 = arith.truncf %16 : vector<8x64xf32> to vector<8x64xbf16>
    %c1 = arith.constant 1 : index
    %c0_18 = arith.constant 0 : index
    %c0_19 = arith.constant 0 : index
    %18 = vector.load %arg2[%c1, %c0_18, %c0_19] : memref<3x8x8xbf16, #tpu.memory_space<vmem>>, vector<1x8x8xbf16>
    %19 = vector.shape_cast %18 : vector<1x8x8xbf16> to vector<8x8xbf16>
    %cst_20 = arith.constant dense<0.000000e+00> : vector<8x64xf32>
    %20 = tpu.matmul %19, %17, %cst_20 {dimension_numbers = #tpu.dot_dimension_numbers<[1], [0], [0], [1], [0, 0, 1, 1], [], []>} : vector<8x8xbf16>, vector<8x64xbf16>, vector<8x64xf32> -> vector<8x64xf32>
    %21 = arith.addf %11, %20 : vector<8x64xf32>
    %c1_21 = arith.constant 1 : index
    %c0_22 = arith.constant 0 : index
    %c0_23 = arith.constant 0 : index
    %22 = vector.load %arg3[%c1_21, %c0_22, %c0_23] : memref<3x8x8xbf16, #tpu.memory_space<vmem>>, vector<1x8x8xbf16>
    %23 = vector.shape_cast %22 : vector<1x8x8xbf16> to vector<8x8xbf16>
    %cst_24 = arith.constant dense<0.000000e+00> : vector<8x64xf32>
    %24 = tpu.matmul %23, %17, %cst_24 {dimension_numbers = #tpu.dot_dimension_numbers<[1], [0], [0], [1], [0, 0, 1, 1], [], []>} : vector<8x8xbf16>, vector<8x64xbf16>, vector<8x64xf32> -> vector<8x64xf32>
    %25 = arith.addf %15, %24 : vector<8x64xf32>
    %c0_25 = arith.constant 0 : index
    %c4 = arith.constant 4 : index
    %26 = vector.load %arg9[%c0_25, %c4] : memref<8x68xf32, #tpu.memory_space<vmem>>, vector<8x64xf32>
    %27 = arith.truncf %26 : vector<8x64xf32> to vector<8x64xbf16>
    %c2_26 = arith.constant 2 : index
    %c0_27 = arith.constant 0 : index
    %c0_28 = arith.constant 0 : index
    %28 = vector.load %arg2[%c2_26, %c0_27, %c0_28] : memref<3x8x8xbf16, #tpu.memory_space<vmem>>, vector<1x8x8xbf16>
    %29 = vector.shape_cast %28 : vector<1x8x8xbf16> to vector<8x8xbf16>
    %cst_29 = arith.constant dense<0.000000e+00> : vector<8x64xf32>
    %30 = tpu.matmul %29, %27, %cst_29 {dimension_numbers = #tpu.dot_dimension_numbers<[1], [0], [0], [1], [0, 0, 1, 1], [], []>} : vector<8x8xbf16>, vector<8x64xbf16>, vector<8x64xf32> -> vector<8x64xf32>
    %31 = arith.addf %21, %30 : vector<8x64xf32>
    %c2_30 = arith.constant 2 : index
    %c0_31 = arith.constant 0 : index
    %c0_32 = arith.constant 0 : index
    %32 = vector.load %arg3[%c2_30, %c0_31, %c0_32] : memref<3x8x8xbf16, #tpu.memory_space<vmem>>, vector<1x8x8xbf16>
    %33 = vector.shape_cast %32 : vector<1x8x8xbf16> to vector<8x8xbf16>
    %cst_33 = arith.constant dense<0.000000e+00> : vector<8x64xf32>
    %34 = tpu.matmul %33, %27, %cst_33 {dimension_numbers = #tpu.dot_dimension_numbers<[1], [0], [0], [1], [0, 0, 1, 1], [], []>} : vector<8x8xbf16>, vector<8x64xbf16>, vector<8x64xf32> -> vector<8x64xf32>
    %35 = arith.addf %25, %34 : vector<8x64xf32>
    %c0_34 = arith.constant 0 : index
    %c0_35 = arith.constant 0 : index
    %36 = vector.load %arg4[%c0_34, %c0_35] : memref<8x1xf32, #tpu.memory_space<vmem>>, vector<8x1xf32>
    %37 = vector.broadcast %36 : vector<8x1xf32> to vector<8x64xf32>
    %38 = arith.mulf %31, %37 : vector<8x64xf32>
    %c0_36 = arith.constant 0 : index
    %c0_37 = arith.constant 0 : index
    %39 = vector.load %arg5[%c0_36, %c0_37] : memref<8x1xf32, #tpu.memory_space<vmem>>, vector<8x1xf32>
    %40 = vector.broadcast %39 : vector<8x1xf32> to vector<8x64xf32>
    %41 = arith.addf %38, %40 : vector<8x64xf32>
    %c0_38 = arith.constant 0 : index
    %c0_39 = arith.constant 0 : index
    %42 = vector.load %arg6[%c0_38, %c0_39] : memref<8x1xf32, #tpu.memory_space<vmem>>, vector<8x1xf32>
    %43 = vector.broadcast %42 : vector<8x1xf32> to vector<8x64xf32>
    %44 = arith.mulf %35, %43 : vector<8x64xf32>
    %c0_40 = arith.constant 0 : index
    %c0_41 = arith.constant 0 : index
    %45 = vector.load %arg7[%c0_40, %c0_41] : memref<8x1xf32, #tpu.memory_space<vmem>>, vector<8x1xf32>
    %46 = vector.broadcast %45 : vector<8x1xf32> to vector<8x64xf32>
    %47 = arith.addf %44, %46 : vector<8x64xf32>
    %48 = arith.negf %47 : vector<8x64xf32>
    %49 = math.exp %48 : vector<8x64xf32>
    %cst_42 = arith.constant 1.000000e+00 : f32
    %50 = vector.broadcast %cst_42 : f32 to vector<8x64xf32>
    %51 = arith.addf %50, %49 : vector<8x64xf32>
    %52 = arith.divf %50, %51 : vector<8x64xf32>
    %53 = arith.mulf %41, %52 : vector<8x64xf32>
    %c0_43 = arith.constant 0 : index
    %c0_44 = arith.constant 0 : index
    %54 = vector.load %arg8[%c0_43, %c0_44] : memref<8x64xf32, #tpu.memory_space<vmem>>, vector<8x64xf32>
    tpu.vector_store %arg8[%c0_43, %c0_44], %53 {strides = array<i32>} : memref<8x64xf32, #tpu.memory_space<vmem>>, vector<8x64xf32>,
    return
  }
  func.func @transform_0(%arg0: i32) -> (i32, i32) {
    %c0_i32 = arith.constant 0 : i32
    %c0_i32_0 = arith.constant 0 : i32
    %c0_i32_1 = arith.constant 0 : i32
    return %c0_i32, %c0_i32_0 : i32, i32
  }
  func.func @transform_1(%arg0: i32) -> (i32, i32, i32) {
    %c0_i32 = arith.constant 0 : i32
    %c0_i32_0 = arith.constant 0 : i32
    %c0_i32_1 = arith.constant 0 : i32
    %c0_i32_2 = arith.constant 0 : i32
    return %c0_i32, %c0_i32_0, %c0_i32_1 : i32, i32, i32
  }
  func.func @transform_2(%arg0: i32) -> (i32, i32, i32) {
    %c0_i32 = arith.constant 0 : i32
    %c0_i32_0 = arith.constant 0 : i32
    %c0_i32_1 = arith.constant 0 : i32
    %c0_i32_2 = arith.constant 0 : i32
    return %c0_i32, %c0_i32_0, %c0_i32_1 : i32, i32, i32
  }
  func.func @transform_3(%arg0: i32) -> (i32, i32) {
    %c0_i32 = arith.constant 0 : i32
    %c0_i32_0 = arith.constant 0 : i32
    %c0_i32_1 = arith.constant 0 : i32
    return %c0_i32, %c0_i32_0 : i32, i32
  }
  func.func @transform_4(%arg0: i32) -> (i32, i32) {
    %c0_i32 = arith.constant 0 : i32
    %c0_i32_0 = arith.constant 0 : i32
    %c0_i32_1 = arith.constant 0 : i32
    return %c0_i32, %c0_i32_0 : i32, i32
  }
  func.func @transform_5(%arg0: i32) -> (i32, i32) {
    %c0_i32 = arith.constant 0 : i32
    %c0_i32_0 = arith.constant 0 : i32
    %c0_i32_1 = arith.constant 0 : i32
    return %c0_i32, %c0_i32_0 : i32, i32
  }
  func.func @transform_6(%arg0: i32) -> (i32, i32) {
    %c0_i32 = arith.constant 0 : i32
    %c0_i32_0 = arith.constant 0 : i32
    %c0_i32_1 = arith.constant 0 : i32
    return %c0_i32, %c0_i32_0 : i32, i32
  }
  func.func @transform_7(%arg0: i32) -> (i32, i32) {
    %c0_i32 = arith.constant 0 : i32
    %c0_i32_0 = arith.constant 0 : i32
    %c0_i32_1 = arith.constant 0 : i32
    return %c0_i32, %c0_i32_0 : i32, i32
  }
}

module attributes {stable_mosaic.version = 11 : i64} {
  func.func @_conv_none_kernel(%arg0: i32, %arg1: memref<8x64xf32, #tpu.memory_space<vmem>>, %arg2: memref<15x4x8xbf16, #tpu.memory_space<vmem>>, %arg3: memref<4x1xf32, #tpu.memory_space<vmem>>, %arg4: memref<4x1xf32, #tpu.memory_space<vmem>>, %arg5: memref<4x64xf32, #tpu.memory_space<vmem>>, %arg6: memref<8x92xf32, #tpu.memory_space<vmem>>) attributes {dimension_semantics = [#tpu.dimension_semantics<arbitrary>], iteration_bounds = array<i64: 1>, scalar_prefetch = 0 : i64, scratch_operands = 1 : i64, tpu.core_type = #tpu.core_type<tc>, window_params = [{pipeline_mode = #tpu.pipeline_mode<synchronous>, transform_indices = @transform_0, window_bounds = array<i64: 8, 64>}, {pipeline_mode = #tpu.pipeline_mode<synchronous>, transform_indices = @transform_1, window_bounds = array<i64: 15, 4, 8>}, {pipeline_mode = #tpu.pipeline_mode<synchronous>, transform_indices = @transform_2, window_bounds = array<i64: 4, 1>}, {pipeline_mode = #tpu.pipeline_mode<synchronous>, transform_indices = @transform_3, window_bounds = array<i64: 4, 1>}, {pipeline_mode = #tpu.pipeline_mode<synchronous>, transform_indices = @transform_4, window_bounds = array<i64: 4, 64>}]} {
    %cst = arith.constant 0.000000e+00 : f32
    %0 = vector.broadcast %cst : f32 to vector<8x92xf32>
    %c0 = arith.constant 0 : index
    %c0_0 = arith.constant 0 : index
    %1 = vector.load %arg6[%c0, %c0_0] : memref<8x92xf32, #tpu.memory_space<vmem>>, vector<8x92xf32>
    tpu.vector_store %arg6[%c0, %c0_0], %0 {strides = array<i32>} : memref<8x92xf32, #tpu.memory_space<vmem>>, vector<8x92xf32>,
    %c0_1 = arith.constant 0 : index
    %c0_2 = arith.constant 0 : index
    %2 = vector.load %arg1[%c0_1, %c0_2] : memref<8x64xf32, #tpu.memory_space<vmem>>, vector<8x64xf32>
    %c0_3 = arith.constant 0 : index
    %c14 = arith.constant 14 : index
    %3 = vector.load %arg6[%c0_3, %c14] : memref<8x92xf32, #tpu.memory_space<vmem>>, vector<8x64xf32>
    tpu.vector_store %arg6[%c0_3, %c14], %2 {strides = array<i32>} : memref<8x92xf32, #tpu.memory_space<vmem>>, vector<8x64xf32>,
    %cst_4 = arith.constant 0.000000e+00 : f32
    %4 = vector.broadcast %cst_4 : f32 to vector<4x64xf32>
    %c0_5 = arith.constant 0 : index
    %c0_6 = arith.constant 0 : index
    %5 = vector.load %arg6[%c0_5, %c0_6] : memref<8x92xf32, #tpu.memory_space<vmem>>, vector<8x64xf32>
    %6 = arith.truncf %5 : vector<8x64xf32> to vector<8x64xbf16>
    %c0_7 = arith.constant 0 : index
    %c0_8 = arith.constant 0 : index
    %c0_9 = arith.constant 0 : index
    %7 = vector.load %arg2[%c0_7, %c0_8, %c0_9] : memref<15x4x8xbf16, #tpu.memory_space<vmem>>, vector<1x4x8xbf16>
    %8 = vector.shape_cast %7 : vector<1x4x8xbf16> to vector<4x8xbf16>
    %cst_10 = arith.constant dense<0.000000e+00> : vector<4x64xf32>
    %9 = tpu.matmul %8, %6, %cst_10 {dimension_numbers = #tpu.dot_dimension_numbers<[1], [0], [0], [1], [0, 0, 1, 1], [], []>} : vector<4x8xbf16>, vector<8x64xbf16>, vector<4x64xf32> -> vector<4x64xf32>
    %10 = arith.addf %4, %9 : vector<4x64xf32>
    %c0_11 = arith.constant 0 : index
    %c2 = arith.constant 2 : index
    %11 = vector.load %arg6[%c0_11, %c2] : memref<8x92xf32, #tpu.memory_space<vmem>>, vector<8x64xf32>
    %12 = arith.truncf %11 : vector<8x64xf32> to vector<8x64xbf16>
    %c1 = arith.constant 1 : index
    %c0_12 = arith.constant 0 : index
    %c0_13 = arith.constant 0 : index
    %13 = vector.load %arg2[%c1, %c0_12, %c0_13] : memref<15x4x8xbf16, #tpu.memory_space<vmem>>, vector<1x4x8xbf16>
    %14 = vector.shape_cast %13 : vector<1x4x8xbf16> to vector<4x8xbf16>
    %cst_14 = arith.constant dense<0.000000e+00> : vector<4x64xf32>
    %15 = tpu.matmul %14, %12, %cst_14 {dimension_numbers = #tpu.dot_dimension_numbers<[1], [0], [0], [1], [0, 0, 1, 1], [], []>} : vector<4x8xbf16>, vector<8x64xbf16>, vector<4x64xf32> -> vector<4x64xf32>
    %16 = arith.addf %10, %15 : vector<4x64xf32>
    %c0_15 = arith.constant 0 : index
    %c4 = arith.constant 4 : index
    %17 = vector.load %arg6[%c0_15, %c4] : memref<8x92xf32, #tpu.memory_space<vmem>>, vector<8x64xf32>
    %18 = arith.truncf %17 : vector<8x64xf32> to vector<8x64xbf16>
    %c2_16 = arith.constant 2 : index
    %c0_17 = arith.constant 0 : index
    %c0_18 = arith.constant 0 : index
    %19 = vector.load %arg2[%c2_16, %c0_17, %c0_18] : memref<15x4x8xbf16, #tpu.memory_space<vmem>>, vector<1x4x8xbf16>
    %20 = vector.shape_cast %19 : vector<1x4x8xbf16> to vector<4x8xbf16>
    %cst_19 = arith.constant dense<0.000000e+00> : vector<4x64xf32>
    %21 = tpu.matmul %20, %18, %cst_19 {dimension_numbers = #tpu.dot_dimension_numbers<[1], [0], [0], [1], [0, 0, 1, 1], [], []>} : vector<4x8xbf16>, vector<8x64xbf16>, vector<4x64xf32> -> vector<4x64xf32>
    %22 = arith.addf %16, %21 : vector<4x64xf32>
    %c0_20 = arith.constant 0 : index
    %c6 = arith.constant 6 : index
    %23 = vector.load %arg6[%c0_20, %c6] : memref<8x92xf32, #tpu.memory_space<vmem>>, vector<8x64xf32>
    %24 = arith.truncf %23 : vector<8x64xf32> to vector<8x64xbf16>
    %c3 = arith.constant 3 : index
    %c0_21 = arith.constant 0 : index
    %c0_22 = arith.constant 0 : index
    %25 = vector.load %arg2[%c3, %c0_21, %c0_22] : memref<15x4x8xbf16, #tpu.memory_space<vmem>>, vector<1x4x8xbf16>
    %26 = vector.shape_cast %25 : vector<1x4x8xbf16> to vector<4x8xbf16>
    %cst_23 = arith.constant dense<0.000000e+00> : vector<4x64xf32>
    %27 = tpu.matmul %26, %24, %cst_23 {dimension_numbers = #tpu.dot_dimension_numbers<[1], [0], [0], [1], [0, 0, 1, 1], [], []>} : vector<4x8xbf16>, vector<8x64xbf16>, vector<4x64xf32> -> vector<4x64xf32>
    %28 = arith.addf %22, %27 : vector<4x64xf32>
    %c0_24 = arith.constant 0 : index
    %c8 = arith.constant 8 : index
    %29 = vector.load %arg6[%c0_24, %c8] : memref<8x92xf32, #tpu.memory_space<vmem>>, vector<8x64xf32>
    %30 = arith.truncf %29 : vector<8x64xf32> to vector<8x64xbf16>
    %c4_25 = arith.constant 4 : index
    %c0_26 = arith.constant 0 : index
    %c0_27 = arith.constant 0 : index
    %31 = vector.load %arg2[%c4_25, %c0_26, %c0_27] : memref<15x4x8xbf16, #tpu.memory_space<vmem>>, vector<1x4x8xbf16>
    %32 = vector.shape_cast %31 : vector<1x4x8xbf16> to vector<4x8xbf16>
    %cst_28 = arith.constant dense<0.000000e+00> : vector<4x64xf32>
    %33 = tpu.matmul %32, %30, %cst_28 {dimension_numbers = #tpu.dot_dimension_numbers<[1], [0], [0], [1], [0, 0, 1, 1], [], []>} : vector<4x8xbf16>, vector<8x64xbf16>, vector<4x64xf32> -> vector<4x64xf32>
    %34 = arith.addf %28, %33 : vector<4x64xf32>
    %c0_29 = arith.constant 0 : index
    %c10 = arith.constant 10 : index
    %35 = vector.load %arg6[%c0_29, %c10] : memref<8x92xf32, #tpu.memory_space<vmem>>, vector<8x64xf32>
    %36 = arith.truncf %35 : vector<8x64xf32> to vector<8x64xbf16>
    %c5 = arith.constant 5 : index
    %c0_30 = arith.constant 0 : index
    %c0_31 = arith.constant 0 : index
    %37 = vector.load %arg2[%c5, %c0_30, %c0_31] : memref<15x4x8xbf16, #tpu.memory_space<vmem>>, vector<1x4x8xbf16>
    %38 = vector.shape_cast %37 : vector<1x4x8xbf16> to vector<4x8xbf16>
    %cst_32 = arith.constant dense<0.000000e+00> : vector<4x64xf32>
    %39 = tpu.matmul %38, %36, %cst_32 {dimension_numbers = #tpu.dot_dimension_numbers<[1], [0], [0], [1], [0, 0, 1, 1], [], []>} : vector<4x8xbf16>, vector<8x64xbf16>, vector<4x64xf32> -> vector<4x64xf32>
    %40 = arith.addf %34, %39 : vector<4x64xf32>
    %c0_33 = arith.constant 0 : index
    %c12 = arith.constant 12 : index
    %41 = vector.load %arg6[%c0_33, %c12] : memref<8x92xf32, #tpu.memory_space<vmem>>, vector<8x64xf32>
    %42 = arith.truncf %41 : vector<8x64xf32> to vector<8x64xbf16>
    %c6_34 = arith.constant 6 : index
    %c0_35 = arith.constant 0 : index
    %c0_36 = arith.constant 0 : index
    %43 = vector.load %arg2[%c6_34, %c0_35, %c0_36] : memref<15x4x8xbf16, #tpu.memory_space<vmem>>, vector<1x4x8xbf16>
    %44 = vector.shape_cast %43 : vector<1x4x8xbf16> to vector<4x8xbf16>
    %cst_37 = arith.constant dense<0.000000e+00> : vector<4x64xf32>
    %45 = tpu.matmul %44, %42, %cst_37 {dimension_numbers = #tpu.dot_dimension_numbers<[1], [0], [0], [1], [0, 0, 1, 1], [], []>} : vector<4x8xbf16>, vector<8x64xbf16>, vector<4x64xf32> -> vector<4x64xf32>
    %46 = arith.addf %40, %45 : vector<4x64xf32>
    %c0_38 = arith.constant 0 : index
    %c14_39 = arith.constant 14 : index
    %47 = vector.load %arg6[%c0_38, %c14_39] : memref<8x92xf32, #tpu.memory_space<vmem>>, vector<8x64xf32>
    %48 = arith.truncf %47 : vector<8x64xf32> to vector<8x64xbf16>
    %c7 = arith.constant 7 : index
    %c0_40 = arith.constant 0 : index
    %c0_41 = arith.constant 0 : index
    %49 = vector.load %arg2[%c7, %c0_40, %c0_41] : memref<15x4x8xbf16, #tpu.memory_space<vmem>>, vector<1x4x8xbf16>
    %50 = vector.shape_cast %49 : vector<1x4x8xbf16> to vector<4x8xbf16>
    %cst_42 = arith.constant dense<0.000000e+00> : vector<4x64xf32>
    %51 = tpu.matmul %50, %48, %cst_42 {dimension_numbers = #tpu.dot_dimension_numbers<[1], [0], [0], [1], [0, 0, 1, 1], [], []>} : vector<4x8xbf16>, vector<8x64xbf16>, vector<4x64xf32> -> vector<4x64xf32>
    %52 = arith.addf %46, %51 : vector<4x64xf32>
    %c0_43 = arith.constant 0 : index
    %c16 = arith.constant 16 : index
    %53 = vector.load %arg6[%c0_43, %c16] : memref<8x92xf32, #tpu.memory_space<vmem>>, vector<8x64xf32>
    %54 = arith.truncf %53 : vector<8x64xf32> to vector<8x64xbf16>
    %c8_44 = arith.constant 8 : index
    %c0_45 = arith.constant 0 : index
    %c0_46 = arith.constant 0 : index
    %55 = vector.load %arg2[%c8_44, %c0_45, %c0_46] : memref<15x4x8xbf16, #tpu.memory_space<vmem>>, vector<1x4x8xbf16>
    %56 = vector.shape_cast %55 : vector<1x4x8xbf16> to vector<4x8xbf16>
    %cst_47 = arith.constant dense<0.000000e+00> : vector<4x64xf32>
    %57 = tpu.matmul %56, %54, %cst_47 {dimension_numbers = #tpu.dot_dimension_numbers<[1], [0], [0], [1], [0, 0, 1, 1], [], []>} : vector<4x8xbf16>, vector<8x64xbf16>, vector<4x64xf32> -> vector<4x64xf32>
    %58 = arith.addf %52, %57 : vector<4x64xf32>
    %c0_48 = arith.constant 0 : index
    %c18 = arith.constant 18 : index
    %59 = vector.load %arg6[%c0_48, %c18] : memref<8x92xf32, #tpu.memory_space<vmem>>, vector<8x64xf32>
    %60 = arith.truncf %59 : vector<8x64xf32> to vector<8x64xbf16>
    %c9 = arith.constant 9 : index
    %c0_49 = arith.constant 0 : index
    %c0_50 = arith.constant 0 : index
    %61 = vector.load %arg2[%c9, %c0_49, %c0_50] : memref<15x4x8xbf16, #tpu.memory_space<vmem>>, vector<1x4x8xbf16>
    %62 = vector.shape_cast %61 : vector<1x4x8xbf16> to vector<4x8xbf16>
    %cst_51 = arith.constant dense<0.000000e+00> : vector<4x64xf32>
    %63 = tpu.matmul %62, %60, %cst_51 {dimension_numbers = #tpu.dot_dimension_numbers<[1], [0], [0], [1], [0, 0, 1, 1], [], []>} : vector<4x8xbf16>, vector<8x64xbf16>, vector<4x64xf32> -> vector<4x64xf32>
    %64 = arith.addf %58, %63 : vector<4x64xf32>
    %c0_52 = arith.constant 0 : index
    %c20 = arith.constant 20 : index
    %65 = vector.load %arg6[%c0_52, %c20] : memref<8x92xf32, #tpu.memory_space<vmem>>, vector<8x64xf32>
    %66 = arith.truncf %65 : vector<8x64xf32> to vector<8x64xbf16>
    %c10_53 = arith.constant 10 : index
    %c0_54 = arith.constant 0 : index
    %c0_55 = arith.constant 0 : index
    %67 = vector.load %arg2[%c10_53, %c0_54, %c0_55] : memref<15x4x8xbf16, #tpu.memory_space<vmem>>, vector<1x4x8xbf16>
    %68 = vector.shape_cast %67 : vector<1x4x8xbf16> to vector<4x8xbf16>
    %cst_56 = arith.constant dense<0.000000e+00> : vector<4x64xf32>
    %69 = tpu.matmul %68, %66, %cst_56 {dimension_numbers = #tpu.dot_dimension_numbers<[1], [0], [0], [1], [0, 0, 1, 1], [], []>} : vector<4x8xbf16>, vector<8x64xbf16>, vector<4x64xf32> -> vector<4x64xf32>
    %70 = arith.addf %64, %69 : vector<4x64xf32>
    %c0_57 = arith.constant 0 : index
    %c22 = arith.constant 22 : index
    %71 = vector.load %arg6[%c0_57, %c22] : memref<8x92xf32, #tpu.memory_space<vmem>>, vector<8x64xf32>
    %72 = arith.truncf %71 : vector<8x64xf32> to vector<8x64xbf16>
    %c11 = arith.constant 11 : index
    %c0_58 = arith.constant 0 : index
    %c0_59 = arith.constant 0 : index
    %73 = vector.load %arg2[%c11, %c0_58, %c0_59] : memref<15x4x8xbf16, #tpu.memory_space<vmem>>, vector<1x4x8xbf16>
    %74 = vector.shape_cast %73 : vector<1x4x8xbf16> to vector<4x8xbf16>
    %cst_60 = arith.constant dense<0.000000e+00> : vector<4x64xf32>
    %75 = tpu.matmul %74, %72, %cst_60 {dimension_numbers = #tpu.dot_dimension_numbers<[1], [0], [0], [1], [0, 0, 1, 1], [], []>} : vector<4x8xbf16>, vector<8x64xbf16>, vector<4x64xf32> -> vector<4x64xf32>
    %76 = arith.addf %70, %75 : vector<4x64xf32>
    %c0_61 = arith.constant 0 : index
    %c24 = arith.constant 24 : index
    %77 = vector.load %arg6[%c0_61, %c24] : memref<8x92xf32, #tpu.memory_space<vmem>>, vector<8x64xf32>
    %78 = arith.truncf %77 : vector<8x64xf32> to vector<8x64xbf16>
    %c12_62 = arith.constant 12 : index
    %c0_63 = arith.constant 0 : index
    %c0_64 = arith.constant 0 : index
    %79 = vector.load %arg2[%c12_62, %c0_63, %c0_64] : memref<15x4x8xbf16, #tpu.memory_space<vmem>>, vector<1x4x8xbf16>
    %80 = vector.shape_cast %79 : vector<1x4x8xbf16> to vector<4x8xbf16>
    %cst_65 = arith.constant dense<0.000000e+00> : vector<4x64xf32>
    %81 = tpu.matmul %80, %78, %cst_65 {dimension_numbers = #tpu.dot_dimension_numbers<[1], [0], [0], [1], [0, 0, 1, 1], [], []>} : vector<4x8xbf16>, vector<8x64xbf16>, vector<4x64xf32> -> vector<4x64xf32>
    %82 = arith.addf %76, %81 : vector<4x64xf32>
    %c0_66 = arith.constant 0 : index
    %c26 = arith.constant 26 : index
    %83 = vector.load %arg6[%c0_66, %c26] : memref<8x92xf32, #tpu.memory_space<vmem>>, vector<8x64xf32>
    %84 = arith.truncf %83 : vector<8x64xf32> to vector<8x64xbf16>
    %c13 = arith.constant 13 : index
    %c0_67 = arith.constant 0 : index
    %c0_68 = arith.constant 0 : index
    %85 = vector.load %arg2[%c13, %c0_67, %c0_68] : memref<15x4x8xbf16, #tpu.memory_space<vmem>>, vector<1x4x8xbf16>
    %86 = vector.shape_cast %85 : vector<1x4x8xbf16> to vector<4x8xbf16>
    %cst_69 = arith.constant dense<0.000000e+00> : vector<4x64xf32>
    %87 = tpu.matmul %86, %84, %cst_69 {dimension_numbers = #tpu.dot_dimension_numbers<[1], [0], [0], [1], [0, 0, 1, 1], [], []>} : vector<4x8xbf16>, vector<8x64xbf16>, vector<4x64xf32> -> vector<4x64xf32>
    %88 = arith.addf %82, %87 : vector<4x64xf32>
    %c0_70 = arith.constant 0 : index
    %c28 = arith.constant 28 : index
    %89 = vector.load %arg6[%c0_70, %c28] : memref<8x92xf32, #tpu.memory_space<vmem>>, vector<8x64xf32>
    %90 = arith.truncf %89 : vector<8x64xf32> to vector<8x64xbf16>
    %c14_71 = arith.constant 14 : index
    %c0_72 = arith.constant 0 : index
    %c0_73 = arith.constant 0 : index
    %91 = vector.load %arg2[%c14_71, %c0_72, %c0_73] : memref<15x4x8xbf16, #tpu.memory_space<vmem>>, vector<1x4x8xbf16>
    %92 = vector.shape_cast %91 : vector<1x4x8xbf16> to vector<4x8xbf16>
    %cst_74 = arith.constant dense<0.000000e+00> : vector<4x64xf32>
    %93 = tpu.matmul %92, %90, %cst_74 {dimension_numbers = #tpu.dot_dimension_numbers<[1], [0], [0], [1], [0, 0, 1, 1], [], []>} : vector<4x8xbf16>, vector<8x64xbf16>, vector<4x64xf32> -> vector<4x64xf32>
    %94 = arith.addf %88, %93 : vector<4x64xf32>
    %c0_75 = arith.constant 0 : index
    %c0_76 = arith.constant 0 : index
    %95 = vector.load %arg3[%c0_75, %c0_76] : memref<4x1xf32, #tpu.memory_space<vmem>>, vector<4x1xf32>
    %96 = vector.broadcast %95 : vector<4x1xf32> to vector<4x64xf32>
    %97 = arith.mulf %94, %96 : vector<4x64xf32>
    %c0_77 = arith.constant 0 : index
    %c0_78 = arith.constant 0 : index
    %98 = vector.load %arg4[%c0_77, %c0_78] : memref<4x1xf32, #tpu.memory_space<vmem>>, vector<4x1xf32>
    %99 = vector.broadcast %98 : vector<4x1xf32> to vector<4x64xf32>
    %100 = arith.addf %97, %99 : vector<4x64xf32>
    %c0_79 = arith.constant 0 : index
    %c0_80 = arith.constant 0 : index
    %101 = vector.load %arg5[%c0_79, %c0_80] : memref<4x64xf32, #tpu.memory_space<vmem>>, vector<4x64xf32>
    tpu.vector_store %arg5[%c0_79, %c0_80], %100 {strides = array<i32>} : memref<4x64xf32, #tpu.memory_space<vmem>>, vector<4x64xf32>,
    return
  }
  func.func @transform_0(%arg0: i32) -> (i32, i32) {
    %c0_i32 = arith.constant 0 : i32
    %c0_i32_0 = arith.constant 0 : i32
    %c0_i32_1 = arith.constant 0 : i32
    return %c0_i32, %c0_i32_0 : i32, i32
  }
  func.func @transform_1(%arg0: i32) -> (i32, i32, i32) {
    %c0_i32 = arith.constant 0 : i32
    %c0_i32_0 = arith.constant 0 : i32
    %c0_i32_1 = arith.constant 0 : i32
    %c0_i32_2 = arith.constant 0 : i32
    return %c0_i32, %c0_i32_0, %c0_i32_1 : i32, i32, i32
  }
  func.func @transform_2(%arg0: i32) -> (i32, i32) {
    %c0_i32 = arith.constant 0 : i32
    %c0_i32_0 = arith.constant 0 : i32
    %c0_i32_1 = arith.constant 0 : i32
    return %c0_i32, %c0_i32_0 : i32, i32
  }
  func.func @transform_3(%arg0: i32) -> (i32, i32) {
    %c0_i32 = arith.constant 0 : i32
    %c0_i32_0 = arith.constant 0 : i32
    %c0_i32_1 = arith.constant 0 : i32
    return %c0_i32, %c0_i32_0 : i32, i32
  }
  func.func @transform_4(%arg0: i32) -> (i32, i32) {
    %c0_i32 = arith.constant 0 : i32
    %c0_i32_0 = arith.constant 0 : i32
    %c0_i32_1 = arith.constant 0 : i32
    return %c0_i32, %c0_i32_0 : i32, i32
  }
}

</mosaic_0001>

<llo_original>
// kernel: _lambda_.5
$region0: #{_lambda_.5}
  #allocation0 [shape = 'u32[]', space=smem, size = 0x4, offset = 0x4, fixed_abs, tag = 'smem constant byte address 0x4 - core index']
  #allocation1 [shape = 'u32[144,128]{1,0:T(1,128)}', space=vmem, size = 0x12000, scoped, tag = 'internal scratch']
  #allocation2 [shape = 'f32[4,36]{1,0:T(4,128)}', space=vmem, size = 0x800, scoped, tag = 'scratch operand']
  %s0 = inlined_call_operand.vmem [shape: f32[4,32], index: 0, kind: input, shape index: {}]
  %s1 = inlined_call_operand.vmem [shape: bf16[3,8,4], index: 1, kind: input, shape index: {}]
  %s2 = inlined_call_operand.vmem [shape: bf16[3,8,4], index: 2, kind: input, shape index: {}]
  %s3 = inlined_call_operand.vmem [shape: f32[8,1], index: 3, kind: input, shape index: {}]
  %s4 = inlined_call_operand.vmem [shape: f32[8,1], index: 4, kind: input, shape index: {}]
  %s5 = inlined_call_operand.vmem [shape: f32[8,1], index: 5, kind: input, shape index: {}]
  %s6 = inlined_call_operand.vmem [shape: f32[8,1], index: 6, kind: input, shape index: {}]
  %s7 = inlined_call_operand.vmem [shape: f32[8,32], index: 7, kind: output, shape index: {}]
  %s8 = sld [smem:[#allocation0]]
  $region38: #{_lambda_.5} parent=0
    _
  %s10 = ssub.s32 1, %s8
  %s11 = scalar_select 0, %s10, %s8
  // Predicated region
  $region2: #{_lambda_.5} parent=0 // pred_check
    _
  $region3: #{_lambda_.5} parent=0 // pred_check_branch
    %13 = sbr.rel (0) target = $region5
  $region4: #{_lambda_.5} parent=0 // pred_region
    _
  $region5: #{_lambda_.5} parent=0 // pred_fallthru
    _
  // Predicated region
  $region6: #{_lambda_.5} parent=0 // pred_check
    _
  $region7: #{_lambda_.5} parent=0 // pred_check_branch
    %15 = sbr.rel (0) target = $region9
  $region8: #{_lambda_.5} parent=0 // pred_region
    _
  $region9: #{_lambda_.5} parent=0 // pred_fallthru
    _
  // Predicated region
  $region10: #{_lambda_.5} parent=0 // pred_check
    _
  $region11: #{_lambda_.5} parent=0 // pred_check_branch
    %17 = sbr.rel (0) target = $region13
  $region12: #{_lambda_.5} parent=0 // pred_region
    _
  $region13: #{_lambda_.5} parent=0 // pred_fallthru
    _
  // Predicated region
  $region14: #{_lambda_.5} parent=0 // pred_check
    _
  $region15: #{_lambda_.5} parent=0 // pred_check_branch
    %19 = sbr.rel (0) target = $region17
  $region16: #{_lambda_.5} parent=0 // pred_region
    _
  $region17: #{_lambda_.5} parent=0 // pred_fallthru
    _
  // Predicated region
  $region18: #{_lambda_.5} parent=0 // pred_check
    _
  $region19: #{_lambda_.5} parent=0 // pred_check_branch
    %21 = sbr.rel (0) target = $region21
  $region20: #{_lambda_.5} parent=0 // pred_region
    _
  $region21: #{_lambda_.5} parent=0 // pred_fallthru
    _
  // Predicated region
  $region22: #{_lambda_.5} parent=0 // pred_check
    _
  $region23: #{_lambda_.5} parent=0 // pred_check_branch
    %23 = sbr.rel (0) target = $region25
  $region24: #{_lambda_.5} parent=0 // pred_region
    _
  $region25: #{_lambda_.5} parent=0 // pred_fallthru
    _
  // Predicated region
  $region26: #{_lambda_.5} parent=0 // pred_check
    _
  $region27: #{_lambda_.5} parent=0 // pred_check_branch
    %25 = sbr.rel (0) target = $region29
  $region28: #{_lambda_.5} parent=0 // pred_region
    _
  $region29: #{_lambda_.5} parent=0 // pred_fallthru
    _
  %vm27 = vcmask 289792
  %28 = vst.msk [vmem:[#allocation2] sm:$0xf] %vm27, 0.0
  %v29 = vld [vmem:[%s0] sm:$0xf]
  %31 = vrot.lane.b32.xlu0 %v29, 2
  %v32 = vpop.permute.xlu0 %31
  %vm34 = vcmask 273424
  %35 = vst.msk [vmem:[#allocation2] sm:$0xf] %vm34, %v32
  %v36 = vld [vmem:[#allocation2] sm:$0xf]
  %v37 = vpack.c.bf16 %v36, %v36
  %v38 = vld [vmem:[%s1] sm:$0xf]
  %v39 = vld [vmem:[%s2] sm:$0xf]
  %s40 = scalar_lea.vmem %s1, 4
  %v41 = vld [vmem:[%s40] sm:$0xf]
  %43 = vrot.lane.b32.xlu0 %v37, 126
  %v44 = vpop.permute.xlu0 %43
  %vm45 = vcmask 31744
  %v47 = vsel %vm45, %v41, 0
  %vm49 = vcmask 1041408
  %v51 = vsel %vm49, %v44, 0
  %53 = vmatprep.subr.bf16.mxu0 0
  %54 = vmatpush1.bf16.msra.mxu0 0
  %55 = vmatprep.subr.bf16.mxu0 0
  %56 = vmatpush1.bf16.msra.mxu0 0
  %57 = vmatprep.subr.bf16.mxu0 0
  %58 = vmatpush1.bf16.msra.mxu0 0
  %59 = vmatprep.subr.bf16.mxu0 0
  %60 = vmatpush1.bf16.msra.mxu0 0
  %61 = vmatprep.subr.bf16.mxu0 0
  %62 = vmatpush1.bf16.msra.mxu0 0
  %63 = vmatprep.subr.bf16.mxu0 0
  %64 = vmatpush1.bf16.msra.mxu0 0
  %65 = vmatprep.subr.bf16.mxu0 0
  %66 = vmatpush1.bf16.msra.mxu0 0
  %67 = vmatprep.subr.bf16.mxu0 0
  %68 = vmatpush1.bf16.msra.mxu0 %v51
  %69 = vmatprep.subr.bf16.mxu0 0
  %70 = vmatpush2.bf16.msra.mxu0 0
  %71 = vmatprep.subr.bf16.mxu0 0
  %72 = vmatpush2.bf16.msra.mxu0 0
  %73 = vmatprep.subr.bf16.mxu0 0
  %74 = vmatpush2.bf16.msra.mxu0 0
  %75 = vmatprep.subr.bf16.mxu0 0
  %76 = vmatpush2.bf16.msra.mxu0 0
  %77 = vmatprep.subr.bf16.mxu0 0
  %78 = vmatpush2.bf16.msra.mxu0 0
  %79 = vmatprep.subr.bf16.mxu0 0
  %80 = vmatpush2.bf16.msra.mxu0 0
  %81 = vmatprep.subr.bf16.mxu0 0
  %82 = vmatpush2.bf16.msra.mxu0 0
  %83 = vmatprep.subr.bf16.mxu0 0
  %84 = vmatpush2.bf16.msra.mxu0 0
  %85 = vmatprep.mubr.bf16.mxu0 0
  %86 = vmatmul.mubr.bf16.gmra.mxu0 %v47
  %v87 = vpop.f32.mrf.mxu0
  %v88 = vadd.f32 0.0, %v87
  %v89 = vpop.f32.mrf.mxu0
  %v90 = vpop.f32.mrf.mxu0
  %v91 = vpop.f32.mrf.mxu0
  %92 = vdwg.mxu0
  %v94 = vsel %vm45, %v38, 0
  %v97 = vsel %vm49, %v37, 0
  %99 = vmatprep.subr.bf16.mxu0 0
  %100 = vmatpush1.bf16.msra.mxu0 0
  %101 = vmatprep.subr.bf16.mxu0 0
  %102 = vmatpush1.bf16.msra.mxu0 0
  %103 = vmatprep.subr.bf16.mxu0 0
  %104 = vmatpush1.bf16.msra.mxu0 0
  %105 = vmatprep.subr.bf16.mxu0 0
  %106 = vmatpush1.bf16.msra.mxu0 0
  %107 = vmatprep.subr.bf16.mxu0 0
  %108 = vmatpush1.bf16.msra.mxu0 0
  %109 = vmatprep.subr.bf16.mxu0 0
  %110 = vmatpush1.bf16.msra.mxu0 0
  %111 = vmatprep.subr.bf16.mxu0 0
  %112 = vmatpush1.bf16.msra.mxu0 0
  %113 = vmatprep.subr.bf16.mxu0 0
  %114 = vmatpush1.bf16.msra.mxu0 %v97
  %115 = vmatprep.subr.bf16.mxu0 0
  %116 = vmatpush2.bf16.msra.mxu0 0
  %117 = vmatprep.subr.bf16.mxu0 0
  %118 = vmatpush2.bf16.msra.mxu0 0
  %119 = vmatprep.subr.bf16.mxu0 0
  %120 = vmatpush2.bf16.msra.mxu0 0
  %121 = vmatprep.subr.bf16.mxu0 0
  %122 = vmatpush2.bf16.msra.mxu0 0
  %123 = vmatprep.subr.bf16.mxu0 0
  %124 = vmatpush2.bf16.msra.mxu0 0
  %125 = vmatprep.subr.bf16.mxu0 0
  %126 = vmatpush2.bf16.msra.mxu0 0
  %127 = vmatprep.subr.bf16.mxu0 0
  %128 = vmatpush2.bf16.msra.mxu0 0
  %129 = vmatprep.subr.bf16.mxu0 0
  %130 = vmatpush2.bf16.msra.mxu0 0
  %131 = vmatprep.mubr.bf16.mxu0 0
  %132 = vmatmul.mubr.bf16.gmra.mxu0 %v94
  %v133 = vpop.f32.mrf.mxu0
  %v134 = vadd.f32 %v88, %v133
  %v135 = vpop.f32.mrf.mxu0
  %v136 = vpop.f32.mrf.mxu0
  %v137 = vpop.f32.mrf.mxu0
  %138 = vdwg.mxu0
  %s139 = scalar_lea.vmem %s2, 4
  %v140 = vld [vmem:[%s139] sm:$0xf]
  %v142 = vsel %vm45, %v140, 0
  %144 = vmatprep.subr.bf16.mxu0 0
  %145 = vmatpush1.bf16.msra.mxu0 0
  %146 = vmatprep.subr.bf16.mxu0 0
  %147 = vmatpush1.bf16.msra.mxu0 0
  %148 = vmatprep.subr.bf16.mxu0 0
  %149 = vmatpush1.bf16.msra.mxu0 0
  %150 = vmatprep.subr.bf16.mxu0 0
  %151 = vmatpush1.bf16.msra.mxu0 0
  %152 = vmatprep.subr.bf16.mxu0 0
  %153 = vmatpush1.bf16.msra.mxu0 0
  %154 = vmatprep.subr.bf16.mxu0 0
  %155 = vmatpush1.bf16.msra.mxu0 0
  %156 = vmatprep.subr.bf16.mxu0 0
  %157 = vmatpush1.bf16.msra.mxu0 0
  %158 = vmatprep.subr.bf16.mxu0 0
  %159 = vmatpush1.bf16.msra.mxu0 %v51
  %160 = vmatprep.subr.bf16.mxu0 0
  %161 = vmatpush2.bf16.msra.mxu0 0
  %162 = vmatprep.subr.bf16.mxu0 0
  %163 = vmatpush2.bf16.msra.mxu0 0
  %164 = vmatprep.subr.bf16.mxu0 0
  %165 = vmatpush2.bf16.msra.mxu0 0
  %166 = vmatprep.subr.bf16.mxu0 0
  %167 = vmatpush2.bf16.msra.mxu0 0
  %168 = vmatprep.subr.bf16.mxu0 0
  %169 = vmatpush2.bf16.msra.mxu0 0
  %170 = vmatprep.subr.bf16.mxu0 0
  %171 = vmatpush2.bf16.msra.mxu0 0
  %172 = vmatprep.subr.bf16.mxu0 0
  %173 = vmatpush2.bf16.msra.mxu0 0
  %174 = vmatprep.subr.bf16.mxu0 0
  %175 = vmatpush2.bf16.msra.mxu0 0
  %176 = vmatprep.mubr.bf16.mxu0 0
  %177 = vmatmul.mubr.bf16.gmra.mxu0 %v142
  %v178 = vpop.f32.mrf.mxu0
  %v179 = vadd.f32 0.0, %v178
  %v180 = vpop.f32.mrf.mxu0
  %v181 = vpop.f32.mrf.mxu0
  %v182 = vpop.f32.mrf.mxu0
  %183 = vdwg.mxu0
  %v185 = vsel %vm45, %v39, 0
  %187 = vmatprep.subr.bf16.mxu0 0
  %188 = vmatpush1.bf16.msra.mxu0 0
  %189 = vmatprep.subr.bf16.mxu0 0
  %190 = vmatpush1.bf16.msra.mxu0 0
  %191 = vmatprep.subr.bf16.mxu0 0
  %192 = vmatpush1.bf16.msra.mxu0 0
  %193 = vmatprep.subr.bf16.mxu0 0
  %194 = vmatpush1.bf16.msra.mxu0 0
  %195 = vmatprep.subr.bf16.mxu0 0
  %196 = vmatpush1.bf16.msra.mxu0 0
  %197 = vmatprep.subr.bf16.mxu0 0
  %198 = vmatpush1.bf16.msra.mxu0 0
  %199 = vmatprep.subr.bf16.mxu0 0
  %200 = vmatpush1.bf16.msra.mxu0 0
  %201 = vmatprep.subr.bf16.mxu0 0
  %202 = vmatpush1.bf16.msra.mxu0 %v97
  %203 = vmatprep.subr.bf16.mxu0 0
  %204 = vmatpush2.bf16.msra.mxu0 0
  %205 = vmatprep.subr.bf16.mxu0 0
  %206 = vmatpush2.bf16.msra.mxu0 0
  %207 = vmatprep.subr.bf16.mxu0 0
  %208 = vmatpush2.bf16.msra.mxu0 0
  %209 = vmatprep.subr.bf16.mxu0 0
  %210 = vmatpush2.bf16.msra.mxu0 0
  %211 = vmatprep.subr.bf16.mxu0 0
  %212 = vmatpush2.bf16.msra.mxu0 0
  %213 = vmatprep.subr.bf16.mxu0 0
  %214 = vmatpush2.bf16.msra.mxu0 0
  %215 = vmatprep.subr.bf16.mxu0 0
  %216 = vmatpush2.bf16.msra.mxu0 0
  %217 = vmatprep.subr.bf16.mxu0 0
  %218 = vmatpush2.bf16.msra.mxu0 0
  %219 = vmatprep.mubr.bf16.mxu0 0
  %220 = vmatmul.mubr.bf16.gmra.mxu0 %v185
  %v221 = vpop.f32.mrf.mxu0
  %v222 = vadd.f32 %v179, %v221
  %v223 = vpop.f32.mrf.mxu0
  %v224 = vpop.f32.mrf.mxu0
  %v225 = vpop.f32.mrf.mxu0
  %226 = vdwg.mxu0
  %s227 = scalar_lea.vmem %s1, 8
  %v228 = vld [vmem:[%s227] sm:$0xf]
  %229 = vrot.lane.b32.xlu0 %v37, 124
  %v230 = vpop.permute.xlu0 %229
  %v232 = vsel %vm45, %v228, 0
  %v235 = vsel %vm49, %v230, 0
  %237 = vmatprep.subr.bf16.mxu0 0
  %238 = vmatpush1.bf16.msra.mxu0 0
  %239 = vmatprep.subr.bf16.mxu0 0
  %240 = vmatpush1.bf16.msra.mxu0 0
  %241 = vmatprep.subr.bf16.mxu0 0
  %242 = vmatpush1.bf16.msra.mxu0 0
  %243 = vmatprep.subr.bf16.mxu0 0
  %244 = vmatpush1.bf16.msra.mxu0 0
  %245 = vmatprep.subr.bf16.mxu0 0
  %246 = vmatpush1.bf16.msra.mxu0 0
  %247 = vmatprep.subr.bf16.mxu0 0
  %248 = vmatpush1.bf16.msra.mxu0 0
  %249 = vmatprep.subr.bf16.mxu0 0
  %250 = vmatpush1.bf16.msra.mxu0 0
  %251 = vmatprep.subr.bf16.mxu0 0
  %252 = vmatpush1.bf16.msra.mxu0 %v235
  %253 = vmatprep.subr.bf16.mxu0 0
  %254 = vmatpush2.bf16.msra.mxu0 0
  %255 = vmatprep.subr.bf16.mxu0 0
  %256 = vmatpush2.bf16.msra.mxu0 0
  %257 = vmatprep.subr.bf16.mxu0 0
  %258 = vmatpush2.bf16.msra.mxu0 0
  %259 = vmatprep.subr.bf16.mxu0 0
  %260 = vmatpush2.bf16.msra.mxu0 0
  %261 = vmatprep.subr.bf16.mxu0 0
  %262 = vmatpush2.bf16.msra.mxu0 0
  %263 = vmatprep.subr.bf16.mxu0 0
  %264 = vmatpush2.bf16.msra.mxu0 0
  %265 = vmatprep.subr.bf16.mxu0 0
  %266 = vmatpush2.bf16.msra.mxu0 0
  %267 = vmatprep.subr.bf16.mxu0 0
  %268 = vmatpush2.bf16.msra.mxu0 0
  %269 = vmatprep.mubr.bf16.mxu0 0
  %270 = vmatmul.mubr.bf16.gmra.mxu0 %v232
  %v271 = vpop.f32.mrf.mxu0
  %v272 = vadd.f32 0.0, %v271
  %v273 = vpop.f32.mrf.mxu0
  %v274 = vpop.f32.mrf.mxu0
  %v275 = vpop.f32.mrf.mxu0
  %276 = vdwg.mxu0
  %v277 = vadd.f32 %v134, %v272
  %s278 = scalar_lea.vmem %s2, 8
  %v279 = vld [vmem:[%s278] sm:$0xf]
  %v281 = vsel %vm45, %v279, 0
  %283 = vmatprep.subr.bf16.mxu0 0
  %284 = vmatpush1.bf16.msra.mxu0 0
  %285 = vmatprep.subr.bf16.mxu0 0
  %286 = vmatpush1.bf16.msra.mxu0 0
  %287 = vmatprep.subr.bf16.mxu0 0
  %288 = vmatpush1.bf16.msra.mxu0 0
  %289 = vmatprep.subr.bf16.mxu0 0
  %290 = vmatpush1.bf16.msra.mxu0 0
  %291 = vmatprep.subr.bf16.mxu0 0
  %292 = vmatpush1.bf16.msra.mxu0 0
  %293 = vmatprep.subr.bf16.mxu0 0
  %294 = vmatpush1.bf16.msra.mxu0 0
  %295 = vmatprep.subr.bf16.mxu0 0
  %296 = vmatpush1.bf16.msra.mxu0 0
  %297 = vmatprep.subr.bf16.mxu0 0
  %298 = vmatpush1.bf16.msra.mxu0 %v235
  %299 = vmatprep.subr.bf16.mxu0 0
  %300 = vmatpush2.bf16.msra.mxu0 0
  %301 = vmatprep.subr.bf16.mxu0 0
  %302 = vmatpush2.bf16.msra.mxu0 0
  %303 = vmatprep.subr.bf16.mxu0 0
  %304 = vmatpush2.bf16.msra.mxu0 0
  %305 = vmatprep.subr.bf16.mxu0 0
  %306 = vmatpush2.bf16.msra.mxu0 0
  %307 = vmatprep.subr.bf16.mxu0 0
  %308 = vmatpush2.bf16.msra.mxu0 0
  %309 = vmatprep.subr.bf16.mxu0 0
  %310 = vmatpush2.bf16.msra.mxu0 0
  %311 = vmatprep.subr.bf16.mxu0 0
  %312 = vmatpush2.bf16.msra.mxu0 0
  %313 = vmatprep.subr.bf16.mxu0 0
  %314 = vmatpush2.bf16.msra.mxu0 0
  %315 = vmatprep.mubr.bf16.mxu0 0
  %316 = vmatmul.mubr.bf16.gmra.mxu0 %v281
  %v317 = vpop.f32.mrf.mxu0
  %v318 = vadd.f32 0.0, %v317
  %v319 = vpop.f32.mrf.mxu0
  %v320 = vpop.f32.mrf.mxu0
  %v321 = vpop.f32.mrf.mxu0
  %322 = vdwg.mxu0
  %v323 = vadd.f32 %v222, %v318
  %v324 = vld [vmem:[%s3] sm:$0xff]
  %326 = vset.pattern.permute.xlu0 0
  %327 = vperm.xlu0 %326, %v324
  %v328 = vpop.permute.xlu0 %327
  %v330 = vmul.f32 %v277, %v328
  %v331 = vld [vmem:[%s4] sm:$0xff]
  %333 = vset.pattern.permute.xlu0 0
  %334 = vperm.xlu0 %333, %v331
  %v335 = vpop.permute.xlu0 %334
  %v337 = vadd.f32 %v330, %v335
  %v338 = vld [vmem:[%s5] sm:$0xff]
  %340 = vset.pattern.permute.xlu0 0
  %341 = vperm.xlu0 %340, %v338
  %v342 = vpop.permute.xlu0 %341
  %v344 = vmul.f32 %v323, %v342
  %v345 = vld [vmem:[%s6] sm:$0xff]
  %347 = vset.pattern.permute.xlu0 0
  %348 = vperm.xlu0 %347, %v345
  %v349 = vpop.permute.xlu0 %348
  %v351 = vadd.f32 %v344, %v349
  %v352 = vxor.u32 %v351, 2147483648
  %v353 = vmul.f32 %v352, 1.442695
  %v354 = vpow.pop %v353
  %v355 = vadd.f32 %v354, 1.0
  %v356 = vrcp.pop %v355
  %v357 = vmul.f32 1.0, %v356
  %v358 = vmul.f32 %v337, %v357
  %vm359 = vcmask 261120
  %360 = vst.msk [vmem:[%s7] sm:$0xff] %vm359, %v358
  // Predicated region
  $region30: #{_lambda_.5} parent=0 // pred_check
    _
  $region31: #{_lambda_.5} parent=0 // pred_check_branch
    %362 = sbr.rel (0) target = $region33
  $region32: #{_lambda_.5} parent=0 // pred_region
    _
  $region33: #{_lambda_.5} parent=0 // pred_fallthru
    _
  // Predicated region
  $region34: #{_lambda_.5} parent=0 // pred_check
    _
  $region35: #{_lambda_.5} parent=0 // pred_check_branch
    %364 = sbr.rel (0) target = $region37
  $region36: #{_lambda_.5} parent=0 // pred_region
    _
  $region37: #{_lambda_.5} parent=0 // pred_fallthru
    _

// kernel: _lambda_.6
$region0: #{_lambda_.6}
  #allocation0 [shape = 'u32[]', space=smem, size = 0x4, offset = 0x4, fixed_abs, tag = 'smem constant byte address 0x4 - core index']
  #allocation1 [shape = 'u32[144,128]{1,0:T(1,128)}', space=vmem, size = 0x12000, scoped, tag = 'internal scratch']
  #allocation2 [shape = 'f32[8,78]{1,0:T(8,128)}', space=vmem, size = 0x1000, scoped, tag = 'scratch operand']
  %s0 = inlined_call_operand.vmem [shape: f32[8,62], index: 0, kind: input, shape index: {}]
  %s1 = inlined_call_operand.vmem [shape: bf16[8,8,8], index: 1, kind: input, shape index: {}]
  %s2 = inlined_call_operand.vmem [shape: bf16[8,8,8], index: 2, kind: input, shape index: {}]
  %s3 = inlined_call_operand.vmem [shape: f32[8,1], index: 3, kind: input, shape index: {}]
  %s4 = inlined_call_operand.vmem [shape: f32[8,1], index: 4, kind: input, shape index: {}]
  %s5 = inlined_call_operand.vmem [shape: f32[8,1], index: 5, kind: input, shape index: {}]
  %s6 = inlined_call_operand.vmem [shape: f32[8,1], index: 6, kind: input, shape index: {}]
  %s7 = inlined_call_operand.vmem [shape: f32[8,64], index: 7, kind: output, shape index: {}]
  %s8 = sld [smem:[#allocation0]]
  $region38: #{_lambda_.6} parent=0
    _
  %s10 = ssub.s32 1, %s8
  %s11 = scalar_select 0, %s10, %s8
  // Predicated region
  $region2: #{_lambda_.6} parent=0 // pred_check
    _
  $region3: #{_lambda_.6} parent=0 // pred_check_branch
    %13 = sbr.rel (0) target = $region5
  $region4: #{_lambda_.6} parent=0 // pred_region
    _
  $region5: #{_lambda_.6} parent=0 // pred_fallthru
    _
  // Predicated region
  $region6: #{_lambda_.6} parent=0 // pred_check
    _
  $region7: #{_lambda_.6} parent=0 // pred_check_branch
    %15 = sbr.rel (0) target = $region9
  $region8: #{_lambda_.6} parent=0 // pred_region
    _
  $region9: #{_lambda_.6} parent=0 // pred_fallthru
    _
  // Predicated region
  $region10: #{_lambda_.6} parent=0 // pred_check
    _
  $region11: #{_lambda_.6} parent=0 // pred_check_branch
    %17 = sbr.rel (0) target = $region13
  $region12: #{_lambda_.6} parent=0 // pred_region
    _
  $region13: #{_lambda_.6} parent=0 // pred_fallthru
    _
  // Predicated region
  $region14: #{_lambda_.6} parent=0 // pred_check
    _
  $region15: #{_lambda_.6} parent=0 // pred_check_branch
    %19 = sbr.rel (0) target = $region17
  $region16: #{_lambda_.6} parent=0 // pred_region
    _
  $region17: #{_lambda_.6} parent=0 // pred_fallthru
    _
  // Predicated region
  $region18: #{_lambda_.6} parent=0 // pred_check
    _
  $region19: #{_lambda_.6} parent=0 // pred_check_branch
    %21 = sbr.rel (0) target = $region21
  $region20: #{_lambda_.6} parent=0 // pred_region
    _
  $region21: #{_lambda_.6} parent=0 // pred_fallthru
    _
  // Predicated region
  $region22: #{_lambda_.6} parent=0 // pred_check
    _
  $region23: #{_lambda_.6} parent=0 // pred_check_branch
    %23 = sbr.rel (0) target = $region25
  $region24: #{_lambda_.6} parent=0 // pred_region
    _
  $region25: #{_lambda_.6} parent=0 // pred_fallthru
    _
  // Predicated region
  $region26: #{_lambda_.6} parent=0 // pred_check
    _
  $region27: #{_lambda_.6} parent=0 // pred_check_branch
    %25 = sbr.rel (0) target = $region29
  $region28: #{_lambda_.6} parent=0 // pred_region
    _
  $region29: #{_lambda_.6} parent=0 // pred_fallthru
    _
  %vm27 = vcmask 637952
  %28 = vst.msk [vmem:[#allocation2] sm:$0xff] %vm27, 0.0
  %v29 = vld [vmem:[%s0] sm:$0xff]
  %31 = vrot.lane.b32.xlu0 %v29, 8
  %v32 = vpop.permute.xlu0 %31
  %vm34 = vcmask 572480
  %35 = vst.msk [vmem:[#allocation2] sm:$0xff] %vm34, %v32
  %v36 = vld [vmem:[#allocation2] sm:$0xff]
  %v37 = vpack.c.bf16 %v36, %v36
  %v38 = vld [vmem:[%s1] sm:$0xf]
  %v39 = vld [vmem:[%s2] sm:$0xf]
  %s40 = scalar_lea.vmem %s1, 4
  %v41 = vld [vmem:[%s40] sm:$0xf]
  %43 = vrot.lane.b32.xlu0 %v37, 126
  %v44 = vpop.permute.xlu0 %43
  %vm45 = vcmask 64512
  %v47 = vsel %vm45, %v41, 0
  %vm49 = vcmask 1043456
  %v51 = vsel %vm49, %v44, 0
  %53 = vmatprep.subr.bf16.mxu0 0
  %54 = vmatpush1.bf16.msra.mxu0 0
  %55 = vmatprep.subr.bf16.mxu0 0
  %56 = vmatpush1.bf16.msra.mxu0 0
  %57 = vmatprep.subr.bf16.mxu0 0
  %58 = vmatpush1.bf16.msra.mxu0 0
  %59 = vmatprep.subr.bf16.mxu0 0
  %60 = vmatpush1.bf16.msra.mxu0 0
  %61 = vmatprep.subr.bf16.mxu0 0
  %62 = vmatpush1.bf16.msra.mxu0 0
  %63 = vmatprep.subr.bf16.mxu0 0
  %64 = vmatpush1.bf16.msra.mxu0 0
  %65 = vmatprep.subr.bf16.mxu0 0
  %66 = vmatpush1.bf16.msra.mxu0 0
  %67 = vmatprep.subr.bf16.mxu0 0
  %68 = vmatpush1.bf16.msra.mxu0 %v51
  %69 = vmatprep.subr.bf16.mxu0 0
  %70 = vmatpush2.bf16.msra.mxu0 0
  %71 = vmatprep.subr.bf16.mxu0 0
  %72 = vmatpush2.bf16.msra.mxu0 0
  %73 = vmatprep.subr.bf16.mxu0 0
  %74 = vmatpush2.bf16.msra.mxu0 0
  %75 = vmatprep.subr.bf16.mxu0 0
  %76 = vmatpush2.bf16.msra.mxu0 0
  %77 = vmatprep.subr.bf16.mxu0 0
  %78 = vmatpush2.bf16.msra.mxu0 0
  %79 = vmatprep.subr.bf16.mxu0 0
  %80 = vmatpush2.bf16.msra.mxu0 0
  %81 = vmatprep.subr.bf16.mxu0 0
  %82 = vmatpush2.bf16.msra.mxu0 0
  %83 = vmatprep.subr.bf16.mxu0 0
  %84 = vmatpush2.bf16.msra.mxu0 0
  %85 = vmatprep.mubr.bf16.mxu0 0
  %86 = vmatmul.mubr.bf16.gmra.mxu0 %v47
  %v87 = vpop.f32.mrf.mxu0
  %v88 = vadd.f32 0.0, %v87
  %v89 = vpop.f32.mrf.mxu0
  %v90 = vpop.f32.mrf.mxu0
  %v91 = vpop.f32.mrf.mxu0
  %92 = vdwg.mxu0
  %v94 = vsel %vm45, %v38, 0
  %v97 = vsel %vm49, %v37, 0
  %99 = vmatprep.subr.bf16.mxu0 0
  %100 = vmatpush1.bf16.msra.mxu0 0
  %101 = vmatprep.subr.bf16.mxu0 0
  %102 = vmatpush1.bf16.msra.mxu0 0
  %103 = vmatprep.subr.bf16.mxu0 0
  %104 = vmatpush1.bf16.msra.mxu0 0
  %105 = vmatprep.subr.bf16.mxu0 0
  %106 = vmatpush1.bf16.msra.mxu0 0
  %107 = vmatprep.subr.bf16.mxu0 0
  %108 = vmatpush1.bf16.msra.mxu0 0
  %109 = vmatprep.subr.bf16.mxu0 0
  %110 = vmatpush1.bf16.msra.mxu0 0
  %111 = vmatprep.subr.bf16.mxu0 0
  %112 = vmatpush1.bf16.msra.mxu0 0
  %113 = vmatprep.subr.bf16.mxu0 0
  %114 = vmatpush1.bf16.msra.mxu0 %v97
  %115 = vmatprep.subr.bf16.mxu0 0
  %116 = vmatpush2.bf16.msra.mxu0 0
  %117 = vmatprep.subr.bf16.mxu0 0
  %118 = vmatpush2.bf16.msra.mxu0 0
  %119 = vmatprep.subr.bf16.mxu0 0
  %120 = vmatpush2.bf16.msra.mxu0 0
  %121 = vmatprep.subr.bf16.mxu0 0
  %122 = vmatpush2.bf16.msra.mxu0 0
  %123 = vmatprep.subr.bf16.mxu0 0
  %124 = vmatpush2.bf16.msra.mxu0 0
  %125 = vmatprep.subr.bf16.mxu0 0
  %126 = vmatpush2.bf16.msra.mxu0 0
  %127 = vmatprep.subr.bf16.mxu0 0
  %128 = vmatpush2.bf16.msra.mxu0 0
  %129 = vmatprep.subr.bf16.mxu0 0
  %130 = vmatpush2.bf16.msra.mxu0 0
  %131 = vmatprep.mubr.bf16.mxu0 0
  %132 = vmatmul.mubr.bf16.gmra.mxu0 %v94
  %v133 = vpop.f32.mrf.mxu0
  %v134 = vadd.f32 %v88, %v133
  %v135 = vpop.f32.mrf.mxu0
  %v136 = vpop.f32.mrf.mxu0
  %v137 = vpop.f32.mrf.mxu0
  %138 = vdwg.mxu0
  %s139 = scalar_lea.vmem %s2, 4
  %v140 = vld [vmem:[%s139] sm:$0xf]
  %v142 = vsel %vm45, %v140, 0
  %144 = vmatprep.subr.bf16.mxu0 0
  %145 = vmatpush1.bf16.msra.mxu0 0
  %146 = vmatprep.subr.bf16.mxu0 0
  %147 = vmatpush1.bf16.msra.mxu0 0
  %148 = vmatprep.subr.bf16.mxu0 0
  %149 = vmatpush1.bf16.msra.mxu0 0
  %150 = vmatprep.subr.bf16.mxu0 0
  %151 = vmatpush1.bf16.msra.mxu0 0
  %152 = vmatprep.subr.bf16.mxu0 0
  %153 = vmatpush1.bf16.msra.mxu0 0
  %154 = vmatprep.subr.bf16.mxu0 0
  %155 = vmatpush1.bf16.msra.mxu0 0
  %156 = vmatprep.subr.bf16.mxu0 0
  %157 = vmatpush1.bf16.msra.mxu0 0
  %158 = vmatprep.subr.bf16.mxu0 0
  %159 = vmatpush1.bf16.msra.mxu0 %v51
  %160 = vmatprep.subr.bf16.mxu0 0
  %161 = vmatpush2.bf16.msra.mxu0 0
  %162 = vmatprep.subr.bf16.mxu0 0
  %163 = vmatpush2.bf16.msra.mxu0 0
  %164 = vmatprep.subr.bf16.mxu0 0
  %165 = vmatpush2.bf16.msra.mxu0 0
  %166 = vmatprep.subr.bf16.mxu0 0
  %167 = vmatpush2.bf16.msra.mxu0 0
  %168 = vmatprep.subr.bf16.mxu0 0
  %169 = vmatpush2.bf16.msra.mxu0 0
  %170 = vmatprep.subr.bf16.mxu0 0
  %171 = vmatpush2.bf16.msra.mxu0 0
  %172 = vmatprep.subr.bf16.mxu0 0
  %173 = vmatpush2.bf16.msra.mxu0 0
  %174 = vmatprep.subr.bf16.mxu0 0
  %175 = vmatpush2.bf16.msra.mxu0 0
  %176 = vmatprep.mubr.bf16.mxu0 0
  %177 = vmatmul.mubr.bf16.gmra.mxu0 %v142
  %v178 = vpop.f32.mrf.mxu0
  %v179 = vadd.f32 0.0, %v178
  %v180 = vpop.f32.mrf.mxu0
  %v181 = vpop.f32.mrf.mxu0
  %v182 = vpop.f32.mrf.mxu0
  %183 = vdwg.mxu0
  %v185 = vsel %vm45, %v39, 0
  %187 = vmatprep.subr.bf16.mxu0 0
  %188 = vmatpush1.bf16.msra.mxu0 0
  %189 = vmatprep.subr.bf16.mxu0 0
  %190 = vmatpush1.bf16.msra.mxu0 0
  %191 = vmatprep.subr.bf16.mxu0 0
  %192 = vmatpush1.bf16.msra.mxu0 0
  %193 = vmatprep.subr.bf16.mxu0 0
  %194 = vmatpush1.bf16.msra.mxu0 0
  %195 = vmatprep.subr.bf16.mxu0 0
  %196 = vmatpush1.bf16.msra.mxu0 0
  %197 = vmatprep.subr.bf16.mxu0 0
  %198 = vmatpush1.bf16.msra.mxu0 0
  %199 = vmatprep.subr.bf16.mxu0 0
  %200 = vmatpush1.bf16.msra.mxu0 0
  %201 = vmatprep.subr.bf16.mxu0 0
  %202 = vmatpush1.bf16.msra.mxu0 %v97
  %203 = vmatprep.subr.bf16.mxu0 0
  %204 = vmatpush2.bf16.msra.mxu0 0
  %205 = vmatprep.subr.bf16.mxu0 0
  %206 = vmatpush2.bf16.msra.mxu0 0
  %207 = vmatprep.subr.bf16.mxu0 0
  %208 = vmatpush2.bf16.msra.mxu0 0
  %209 = vmatprep.subr.bf16.mxu0 0
  %210 = vmatpush2.bf16.msra.mxu0 0
  %211 = vmatprep.subr.bf16.mxu0 0
  %212 = vmatpush2.bf16.msra.mxu0 0
  %213 = vmatprep.subr.bf16.mxu0 0
  %214 = vmatpush2.bf16.msra.mxu0 0
  %215 = vmatprep.subr.bf16.mxu0 0
  %216 = vmatpush2.bf16.msra.mxu0 0
  %217 = vmatprep.subr.bf16.mxu0 0
  %218 = vmatpush2.bf16.msra.mxu0 0
  %219 = vmatprep.mubr.bf16.mxu0 0
  %220 = vmatmul.mubr.bf16.gmra.mxu0 %v185
  %v221 = vpop.f32.mrf.mxu0
  %v222 = vadd.f32 %v179, %v221
  %v223 = vpop.f32.mrf.mxu0
  %v224 = vpop.f32.mrf.mxu0
  %v225 = vpop.f32.mrf.mxu0
  %226 = vdwg.mxu0
  %s227 = scalar_lea.vmem %s1, 8
  %v228 = vld [vmem:[%s227] sm:$0xf]
  %229 = vrot.lane.b32.xlu0 %v37, 124
  %v230 = vpop.permute.xlu0 %229
  %v232 = vsel %vm45, %v228, 0
  %v235 = vsel %vm49, %v230, 0
  %237 = vmatprep.subr.bf16.mxu0 0
  %238 = vmatpush1.bf16.msra.mxu0 0
  %239 = vmatprep.subr.bf16.mxu0 0
  %240 = vmatpush1.bf16.msra.mxu0 0
  %241 = vmatprep.subr.bf16.mxu0 0
  %242 = vmatpush1.bf16.msra.mxu0 0
  %243 = vmatprep.subr.bf16.mxu0 0
  %244 = vmatpush1.bf16.msra.mxu0 0
  %245 = vmatprep.subr.bf16.mxu0 0
  %246 = vmatpush1.bf16.msra.mxu0 0
  %247 = vmatprep.subr.bf16.mxu0 0
  %248 = vmatpush1.bf16.msra.mxu0 0
  %249 = vmatprep.subr.bf16.mxu0 0
  %250 = vmatpush1.bf16.msra.mxu0 0
  %251 = vmatprep.subr.bf16.mxu0 0
  %252 = vmatpush1.bf16.msra.mxu0 %v235
  %253 = vmatprep.subr.bf16.mxu0 0
  %254 = vmatpush2.bf16.msra.mxu0 0
  %255 = vmatprep.subr.bf16.mxu0 0
  %256 = vmatpush2.bf16.msra.mxu0 0
  %257 = vmatprep.subr.bf16.mxu0 0
  %258 = vmatpush2.bf16.msra.mxu0 0
  %259 = vmatprep.subr.bf16.mxu0 0
  %260 = vmatpush2.bf16.msra.mxu0 0
  %261 = vmatprep.subr.bf16.mxu0 0
  %262 = vmatpush2.bf16.msra.mxu0 0
  %263 = vmatprep.subr.bf16.mxu0 0
  %264 = vmatpush2.bf16.msra.mxu0 0
  %265 = vmatprep.subr.bf16.mxu0 0
  %266 = vmatpush2.bf16.msra.mxu0 0
  %267 = vmatprep.subr.bf16.mxu0 0
  %268 = vmatpush2.bf16.msra.mxu0 0
  %269 = vmatprep.mubr.bf16.mxu0 0
  %270 = vmatmul.mubr.bf16.gmra.mxu0 %v232
  %v271 = vpop.f32.mrf.mxu0
  %v272 = vadd.f32 0.0, %v271
  %v273 = vpop.f32.mrf.mxu0
  %v274 = vpop.f32.mrf.mxu0
  %v275 = vpop.f32.mrf.mxu0
  %276 = vdwg.mxu0
  %v277 = vadd.f32 %v134, %v272
  %s278 = scalar_lea.vmem %s2, 8
  %v279 = vld [vmem:[%s278] sm:$0xf]
  %v281 = vsel %vm45, %v279, 0
  %283 = vmatprep.subr.bf16.mxu0 0
  %284 = vmatpush1.bf16.msra.mxu0 0
  %285 = vmatprep.subr.bf16.mxu0 0
  %286 = vmatpush1.bf16.msra.mxu0 0
  %287 = vmatprep.subr.bf16.mxu0 0
  %288 = vmatpush1.bf16.msra.mxu0 0
  %289 = vmatprep.subr.bf16.mxu0 0
  %290 = vmatpush1.bf16.msra.mxu0 0
  %291 = vmatprep.subr.bf16.mxu0 0
  %292 = vmatpush1.bf16.msra.mxu0 0
  %293 = vmatprep.subr.bf16.mxu0 0
  %294 = vmatpush1.bf16.msra.mxu0 0
  %295 = vmatprep.subr.bf16.mxu0 0
  %296 = vmatpush1.bf16.msra.mxu0 0
  %297 = vmatprep.subr.bf16.mxu0 0
  %298 = vmatpush1.bf16.msra.mxu0 %v235
  %299 = vmatprep.subr.bf16.mxu0 0
  %300 = vmatpush2.bf16.msra.mxu0 0
  %301 = vmatprep.subr.bf16.mxu0 0
  %302 = vmatpush2.bf16.msra.mxu0 0
  %303 = vmatprep.subr.bf16.mxu0 0
  %304 = vmatpush2.bf16.msra.mxu0 0
  %305 = vmatprep.subr.bf16.mxu0 0
  %306 = vmatpush2.bf16.msra.mxu0 0
  %307 = vmatprep.subr.bf16.mxu0 0
  %308 = vmatpush2.bf16.msra.mxu0 0
  %309 = vmatprep.subr.bf16.mxu0 0
  %310 = vmatpush2.bf16.msra.mxu0 0
  %311 = vmatprep.subr.bf16.mxu0 0
  %312 = vmatpush2.bf16.msra.mxu0 0
  %313 = vmatprep.subr.bf16.mxu0 0
  %314 = vmatpush2.bf16.msra.mxu0 0
  %315 = vmatprep.mubr.bf16.mxu0 0
  %316 = vmatmul.mubr.bf16.gmra.mxu0 %v281
  %v317 = vpop.f32.mrf.mxu0
  %v318 = vadd.f32 0.0, %v317
  %v319 = vpop.f32.mrf.mxu0
  %v320 = vpop.f32.mrf.mxu0
  %v321 = vpop.f32.mrf.mxu0
  %322 = vdwg.mxu0
  %v323 = vadd.f32 %v222, %v318
  %s324 = scalar_lea.vmem %s1, 12
  %v325 = vld [vmem:[%s324] sm:$0xf]
  %326 = vrot.lane.b32.xlu0 %v37, 122
  %v327 = vpop.permute.xlu0 %326
  %v329 = vsel %vm45, %v325, 0
  %v332 = vsel %vm49, %v327, 0
  %334 = vmatprep.subr.bf16.mxu0 0
  %335 = vmatpush1.bf16.msra.mxu0 0
  %336 = vmatprep.subr.bf16.mxu0 0
  %337 = vmatpush1.bf16.msra.mxu0 0
  %338 = vmatprep.subr.bf16.mxu0 0
  %339 = vmatpush1.bf16.msra.mxu0 0
  %340 = vmatprep.subr.bf16.mxu0 0
  %341 = vmatpush1.bf16.msra.mxu0 0
  %342 = vmatprep.subr.bf16.mxu0 0
  %343 = vmatpush1.bf16.msra.mxu0 0
  %344 = vmatprep.subr.bf16.mxu0 0
  %345 = vmatpush1.bf16.msra.mxu0 0
  %346 = vmatprep.subr.bf16.mxu0 0
  %347 = vmatpush1.bf16.msra.mxu0 0
  %348 = vmatprep.subr.bf16.mxu0 0
  %349 = vmatpush1.bf16.msra.mxu0 %v332
  %350 = vmatprep.subr.bf16.mxu0 0
  %351 = vmatpush2.bf16.msra.mxu0 0
  %352 = vmatprep.subr.bf16.mxu0 0
  %353 = vmatpush2.bf16.msra.mxu0 0
  %354 = vmatprep.subr.bf16.mxu0 0
  %355 = vmatpush2.bf16.msra.mxu0 0
  %356 = vmatprep.subr.bf16.mxu0 0
  %357 = vmatpush2.bf16.msra.mxu0 0
  %358 = vmatprep.subr.bf16.mxu0 0
  %359 = vmatpush2.bf16.msra.mxu0 0
  %360 = vmatprep.subr.bf16.mxu0 0
  %361 = vmatpush2.bf16.msra.mxu0 0
  %362 = vmatprep.subr.bf16.mxu0 0
  %363 = vmatpush2.bf16.msra.mxu0 0
  %364 = vmatprep.subr.bf16.mxu0 0
  %365 = vmatpush2.bf16.msra.mxu0 0
  %366 = vmatprep.mubr.bf16.mxu0 0
  %367 = vmatmul.mubr.bf16.gmra.mxu0 %v329
  %v368 = vpop.f32.mrf.mxu0
  %v369 = vadd.f32 0.0, %v368
  %v370 = vpop.f32.mrf.mxu0
  %v371 = vpop.f32.mrf.mxu0
  %v372 = vpop.f32.mrf.mxu0
  %373 = vdwg.mxu0
  %v374 = vadd.f32 %v277, %v369
  %s375 = scalar_lea.vmem %s2, 12
  %v376 = vld [vmem:[%s375] sm:$0xf]
  %v378 = vsel %vm45, %v376, 0
  %380 = vmatprep.subr.bf16.mxu0 0
  %381 = vmatpush1.bf16.msra.mxu0 0
  %382 = vmatprep.subr.bf16.mxu0 0
  %383 = vmatpush1.bf16.msra.mxu0 0
  %384 = vmatprep.subr.bf16.mxu0 0
  %385 = vmatpush1.bf16.msra.mxu0 0
  %386 = vmatprep.subr.bf16.mxu0 0
  %387 = vmatpush1.bf16.msra.mxu0 0
  %388 = vmatprep.subr.bf16.mxu0 0
  %389 = vmatpush1.bf16.msra.mxu0 0
  %390 = vmatprep.subr.bf16.mxu0 0
  %391 = vmatpush1.bf16.msra.mxu0 0
  %392 = vmatprep.subr.bf16.mxu0 0
  %393 = vmatpush1.bf16.msra.mxu0 0
  %394 = vmatprep.subr.bf16.mxu0 0
  %395 = vmatpush1.bf16.msra.mxu0 %v332
  %396 = vmatprep.subr.bf16.mxu0 0
  %397 = vmatpush2.bf16.msra.mxu0 0
  %398 = vmatprep.subr.bf16.mxu0 0
  %399 = vmatpush2.bf16.msra.mxu0 0
  %400 = vmatprep.subr.bf16.mxu0 0
  %401 = vmatpush2.bf16.msra.mxu0 0
  %402 = vmatprep.subr.bf16.mxu0 0
  %403 = vmatpush2.bf16.msra.mxu0 0
  %404 = vmatprep.subr.bf16.mxu0 0
  %405 = vmatpush2.bf16.msra.mxu0 0
  %406 = vmatprep.subr.bf16.mxu0 0
  %407 = vmatpush2.bf16.msra.mxu0 0
  %408 = vmatprep.subr.bf16.mxu0 0
  %409 = vmatpush2.bf16.msra.mxu0 0
  %410 = vmatprep.subr.bf16.mxu0 0
  %411 = vmatpush2.bf16.msra.mxu0 0
  %412 = vmatprep.mubr.bf16.mxu0 0
  %413 = vmatmul.mubr.bf16.gmra.mxu0 %v378
  %v414 = vpop.f32.mrf.mxu0
  %v415 = vadd.f32 0.0, %v414
  %v416 = vpop.f32.mrf.mxu0
  %v417 = vpop.f32.mrf.mxu0
  %v418 = vpop.f32.mrf.mxu0
  %419 = vdwg.mxu0
  %v420 = vadd.f32 %v323, %v415
  %s421 = scalar_lea.vmem %s1, 16
  %v422 = vld [vmem:[%s421] sm:$0xf]
  %423 = vrot.lane.b32.xlu0 %v37, 120
  %v424 = vpop.permute.xlu0 %423
  %v426 = vsel %vm45, %v422, 0
  %v429 = vsel %vm49, %v424, 0
  %431 = vmatprep.subr.bf16.mxu0 0
  %432 = vmatpush1.bf16.msra.mxu0 0
  %433 = vmatprep.subr.bf16.mxu0 0
  %434 = vmatpush1.bf16.msra.mxu0 0
  %435 = vmatprep.subr.bf16.mxu0 0
  %436 = vmatpush1.bf16.msra.mxu0 0
  %437 = vmatprep.subr.bf16.mxu0 0
  %438 = vmatpush1.bf16.msra.mxu0 0
  %439 = vmatprep.subr.bf16.mxu0 0
  %440 = vmatpush1.bf16.msra.mxu0 0
  %441 = vmatprep.subr.bf16.mxu0 0
  %442 = vmatpush1.bf16.msra.mxu0 0
  %443 = vmatprep.subr.bf16.mxu0 0
  %444 = vmatpush1.bf16.msra.mxu0 0
  %445 = vmatprep.subr.bf16.mxu0 0
  %446 = vmatpush1.bf16.msra.mxu0 %v429
  %447 = vmatprep.subr.bf16.mxu0 0
  %448 = vmatpush2.bf16.msra.mxu0 0
  %449 = vmatprep.subr.bf16.mxu0 0
  %450 = vmatpush2.bf16.msra.mxu0 0
  %451 = vmatprep.subr.bf16.mxu0 0
  %452 = vmatpush2.bf16.msra.mxu0 0
  %453 = vmatprep.subr.bf16.mxu0 0
  %454 = vmatpush2.bf16.msra.mxu0 0
  %455 = vmatprep.subr.bf16.mxu0 0
  %456 = vmatpush2.bf16.msra.mxu0 0
  %457 = vmatprep.subr.bf16.mxu0 0
  %458 = vmatpush2.bf16.msra.mxu0 0
  %459 = vmatprep.subr.bf16.mxu0 0
  %460 = vmatpush2.bf16.msra.mxu0 0
  %461 = vmatprep.subr.bf16.mxu0 0
  %462 = vmatpush2.bf16.msra.mxu0 0
  %463 = vmatprep.mubr.bf16.mxu0 0
  %464 = vmatmul.mubr.bf16.gmra.mxu0 %v426
  %v465 = vpop.f32.mrf.mxu0
  %v466 = vadd.f32 0.0, %v465
  %v467 = vpop.f32.mrf.mxu0
  %v468 = vpop.f32.mrf.mxu0
  %v469 = vpop.f32.mrf.mxu0
  %470 = vdwg.mxu0
  %v471 = vadd.f32 %v374, %v466
  %s472 = scalar_lea.vmem %s2, 16
  %v473 = vld [vmem:[%s472] sm:$0xf]
  %v475 = vsel %vm45, %v473, 0
  %477 = vmatprep.subr.bf16.mxu0 0
  %478 = vmatpush1.bf16.msra.mxu0 0
  %479 = vmatprep.subr.bf16.mxu0 0
  %480 = vmatpush1.bf16.msra.mxu0 0
  %481 = vmatprep.subr.bf16.mxu0 0
  %482 = vmatpush1.bf16.msra.mxu0 0
  %483 = vmatprep.subr.bf16.mxu0 0
  %484 = vmatpush1.bf16.msra.mxu0 0
  %485 = vmatprep.subr.bf16.mxu0 0
  %486 = vmatpush1.bf16.msra.mxu0 0
  %487 = vmatprep.subr.bf16.mxu0 0
  %488 = vmatpush1.bf16.msra.mxu0 0
  %489 = vmatprep.subr.bf16.mxu0 0
  %490 = vmatpush1.bf16.msra.mxu0 0
  %491 = vmatprep.subr.bf16.mxu0 0
  %492 = vmatpush1.bf16.msra.mxu0 %v429
  %493 = vmatprep.subr.bf16.mxu0 0
  %494 = vmatpush2.bf16.msra.mxu0 0
  %495 = vmatprep.subr.bf16.mxu0 0
  %496 = vmatpush2.bf16.msra.mxu0 0
  %497 = vmatprep.subr.bf16.mxu0 0
  %498 = vmatpush2.bf16.msra.mxu0 0
  %499 = vmatprep.subr.bf16.mxu0 0
  %500 = vmatpush2.bf16.msra.mxu0 0
  %501 = vmatprep.subr.bf16.mxu0 0
  %502 = vmatpush2.bf16.msra.mxu0 0
  %503 = vmatprep.subr.bf16.mxu0 0
  %504 = vmatpush2.bf16.msra.mxu0 0
  %505 = vmatprep.subr.bf16.mxu0 0
  %506 = vmatpush2.bf16.msra.mxu0 0
  %507 = vmatprep.subr.bf16.mxu0 0
  %508 = vmatpush2.bf16.msra.mxu0 0
  %509 = vmatprep.mubr.bf16.mxu0 0
  %510 = vmatmul.mubr.bf16.gmra.mxu0 %v475
  %v511 = vpop.f32.mrf.mxu0
  %v512 = vadd.f32 0.0, %v511
  %v513 = vpop.f32.mrf.mxu0
  %v514 = vpop.f32.mrf.mxu0
  %v515 = vpop.f32.mrf.mxu0
  %516 = vdwg.mxu0
  %v517 = vadd.f32 %v420, %v512
  %s518 = scalar_lea.vmem %s1, 20
  %v519 = vld [vmem:[%s518] sm:$0xf]
  %520 = vrot.lane.b32.xlu0 %v37, 118
  %v521 = vpop.permute.xlu0 %520
  %v523 = vsel %vm45, %v519, 0
  %v526 = vsel %vm49, %v521, 0
  %528 = vmatprep.subr.bf16.mxu0 0
  %529 = vmatpush1.bf16.msra.mxu0 0
  %530 = vmatprep.subr.bf16.mxu0 0
  %531 = vmatpush1.bf16.msra.mxu0 0
  %532 = vmatprep.subr.bf16.mxu0 0
  %533 = vmatpush1.bf16.msra.mxu0 0
  %534 = vmatprep.subr.bf16.mxu0 0
  %535 = vmatpush1.bf16.msra.mxu0 0
  %536 = vmatprep.subr.bf16.mxu0 0
  %537 = vmatpush1.bf16.msra.mxu0 0
  %538 = vmatprep.subr.bf16.mxu0 0
  %539 = vmatpush1.bf16.msra.mxu0 0
  %540 = vmatprep.subr.bf16.mxu0 0
  %541 = vmatpush1.bf16.msra.mxu0 0
  %542 = vmatprep.subr.bf16.mxu0 0
  %543 = vmatpush1.bf16.msra.mxu0 %v526
  %544 = vmatprep.subr.bf16.mxu0 0
  %545 = vmatpush2.bf16.msra.mxu0 0
  %546 = vmatprep.subr.bf16.mxu0 0
  %547 = vmatpush2.bf16.msra.mxu0 0
  %548 = vmatprep.subr.bf16.mxu0 0
  %549 = vmatpush2.bf16.msra.mxu0 0
  %550 = vmatprep.subr.bf16.mxu0 0
  %551 = vmatpush2.bf16.msra.mxu0 0
  %552 = vmatprep.subr.bf16.mxu0 0
  %553 = vmatpush2.bf16.msra.mxu0 0
  %554 = vmatprep.subr.bf16.mxu0 0
  %555 = vmatpush2.bf16.msra.mxu0 0
  %556 = vmatprep.subr.bf16.mxu0 0
  %557 = vmatpush2.bf16.msra.mxu0 0
  %558 = vmatprep.subr.bf16.mxu0 0
  %559 = vmatpush2.bf16.msra.mxu0 0
  %560 = vmatprep.mubr.bf16.mxu0 0
  %561 = vmatmul.mubr.bf16.gmra.mxu0 %v523
  %v562 = vpop.f32.mrf.mxu0
  %v563 = vadd.f32 0.0, %v562
  %v564 = vpop.f32.mrf.mxu0
  %v565 = vpop.f32.mrf.mxu0
  %v566 = vpop.f32.mrf.mxu0
  %567 = vdwg.mxu0
  %v568 = vadd.f32 %v471, %v563
  %s569 = scalar_lea.vmem %s2, 20
  %v570 = vld [vmem:[%s569] sm:$0xf]
  %v572 = vsel %vm45, %v570, 0
  %574 = vmatprep.subr.bf16.mxu0 0
  %575 = vmatpush1.bf16.msra.mxu0 0
  %576 = vmatprep.subr.bf16.mxu0 0
  %577 = vmatpush1.bf16.msra.mxu0 0
  %578 = vmatprep.subr.bf16.mxu0 0
  %579 = vmatpush1.bf16.msra.mxu0 0
  %580 = vmatprep.subr.bf16.mxu0 0
  %581 = vmatpush1.bf16.msra.mxu0 0
  %582 = vmatprep.subr.bf16.mxu0 0
  %583 = vmatpush1.bf16.msra.mxu0 0
  %584 = vmatprep.subr.bf16.mxu0 0
  %585 = vmatpush1.bf16.msra.mxu0 0
  %586 = vmatprep.subr.bf16.mxu0 0
  %587 = vmatpush1.bf16.msra.mxu0 0
  %588 = vmatprep.subr.bf16.mxu0 0
  %589 = vmatpush1.bf16.msra.mxu0 %v526
  %590 = vmatprep.subr.bf16.mxu0 0
  %591 = vmatpush2.bf16.msra.mxu0 0
  %592 = vmatprep.subr.bf16.mxu0 0
  %593 = vmatpush2.bf16.msra.mxu0 0
  %594 = vmatprep.subr.bf16.mxu0 0
  %595 = vmatpush2.bf16.msra.mxu0 0
  %596 = vmatprep.subr.bf16.mxu0 0
  %597 = vmatpush2.bf16.msra.mxu0 0
  %598 = vmatprep.subr.bf16.mxu0 0
  %599 = vmatpush2.bf16.msra.mxu0 0
  %600 = vmatprep.subr.bf16.mxu0 0
  %601 = vmatpush2.bf16.msra.mxu0 0
  %602 = vmatprep.subr.bf16.mxu0 0
  %603 = vmatpush2.bf16.msra.mxu0 0
  %604 = vmatprep.subr.bf16.mxu0 0
  %605 = vmatpush2.bf16.msra.mxu0 0
  %606 = vmatprep.mubr.bf16.mxu0 0
  %607 = vmatmul.mubr.bf16.gmra.mxu0 %v572
  %v608 = vpop.f32.mrf.mxu0
  %v609 = vadd.f32 0.0, %v608
  %v610 = vpop.f32.mrf.mxu0
  %v611 = vpop.f32.mrf.mxu0
  %v612 = vpop.f32.mrf.mxu0
  %613 = vdwg.mxu0
  %v614 = vadd.f32 %v517, %v609
  %s615 = scalar_lea.vmem %s1, 24
  %v616 = vld [vmem:[%s615] sm:$0xf]
  %617 = vrot.lane.b32.xlu0 %v37, 116
  %v618 = vpop.permute.xlu0 %617
  %v620 = vsel %vm45, %v616, 0
  %v623 = vsel %vm49, %v618, 0
  %625 = vmatprep.subr.bf16.mxu0 0
  %626 = vmatpush1.bf16.msra.mxu0 0
  %627 = vmatprep.subr.bf16.mxu0 0
  %628 = vmatpush1.bf16.msra.mxu0 0
  %629 = vmatprep.subr.bf16.mxu0 0
  %630 = vmatpush1.bf16.msra.mxu0 0
  %631 = vmatprep.subr.bf16.mxu0 0
  %632 = vmatpush1.bf16.msra.mxu0 0
  %633 = vmatprep.subr.bf16.mxu0 0
  %634 = vmatpush1.bf16.msra.mxu0 0
  %635 = vmatprep.subr.bf16.mxu0 0
  %636 = vmatpush1.bf16.msra.mxu0 0
  %637 = vmatprep.subr.bf16.mxu0 0
  %638 = vmatpush1.bf16.msra.mxu0 0
  %639 = vmatprep.subr.bf16.mxu0 0
  %640 = vmatpush1.bf16.msra.mxu0 %v623
  %641 = vmatprep.subr.bf16.mxu0 0
  %642 = vmatpush2.bf16.msra.mxu0 0
  %643 = vmatprep.subr.bf16.mxu0 0
  %644 = vmatpush2.bf16.msra.mxu0 0
  %645 = vmatprep.subr.bf16.mxu0 0
  %646 = vmatpush2.bf16.msra.mxu0 0
  %647 = vmatprep.subr.bf16.mxu0 0
  %648 = vmatpush2.bf16.msra.mxu0 0
  %649 = vmatprep.subr.bf16.mxu0 0
  %650 = vmatpush2.bf16.msra.mxu0 0
  %651 = vmatprep.subr.bf16.mxu0 0
  %652 = vmatpush2.bf16.msra.mxu0 0
  %653 = vmatprep.subr.bf16.mxu0 0
  %654 = vmatpush2.bf16.msra.mxu0 0
  %655 = vmatprep.subr.bf16.mxu0 0
  %656 = vmatpush2.bf16.msra.mxu0 0
  %657 = vmatprep.mubr.bf16.mxu0 0
  %658 = vmatmul.mubr.bf16.gmra.mxu0 %v620
  %v659 = vpop.f32.mrf.mxu0
  %v660 = vadd.f32 0.0, %v659
  %v661 = vpop.f32.mrf.mxu0
  %v662 = vpop.f32.mrf.mxu0
  %v663 = vpop.f32.mrf.mxu0
  %664 = vdwg.mxu0
  %v665 = vadd.f32 %v568, %v660
  %s666 = scalar_lea.vmem %s2, 24
  %v667 = vld [vmem:[%s666] sm:$0xf]
  %v669 = vsel %vm45, %v667, 0
  %671 = vmatprep.subr.bf16.mxu0 0
  %672 = vmatpush1.bf16.msra.mxu0 0
  %673 = vmatprep.subr.bf16.mxu0 0
  %674 = vmatpush1.bf16.msra.mxu0 0
  %675 = vmatprep.subr.bf16.mxu0 0
  %676 = vmatpush1.bf16.msra.mxu0 0
  %677 = vmatprep.subr.bf16.mxu0 0
  %678 = vmatpush1.bf16.msra.mxu0 0
  %679 = vmatprep.subr.bf16.mxu0 0
  %680 = vmatpush1.bf16.msra.mxu0 0
  %681 = vmatprep.subr.bf16.mxu0 0
  %682 = vmatpush1.bf16.msra.mxu0 0
  %683 = vmatprep.subr.bf16.mxu0 0
  %684 = vmatpush1.bf16.msra.mxu0 0
  %685 = vmatprep.subr.bf16.mxu0 0
  %686 = vmatpush1.bf16.msra.mxu0 %v623
  %687 = vmatprep.subr.bf16.mxu0 0
  %688 = vmatpush2.bf16.msra.mxu0 0
  %689 = vmatprep.subr.bf16.mxu0 0
  %690 = vmatpush2.bf16.msra.mxu0 0
  %691 = vmatprep.subr.bf16.mxu0 0
  %692 = vmatpush2.bf16.msra.mxu0 0
  %693 = vmatprep.subr.bf16.mxu0 0
  %694 = vmatpush2.bf16.msra.mxu0 0
  %695 = vmatprep.subr.bf16.mxu0 0
  %696 = vmatpush2.bf16.msra.mxu0 0
  %697 = vmatprep.subr.bf16.mxu0 0
  %698 = vmatpush2.bf16.msra.mxu0 0
  %699 = vmatprep.subr.bf16.mxu0 0
  %700 = vmatpush2.bf16.msra.mxu0 0
  %701 = vmatprep.subr.bf16.mxu0 0
  %702 = vmatpush2.bf16.msra.mxu0 0
  %703 = vmatprep.mubr.bf16.mxu0 0
  %704 = vmatmul.mubr.bf16.gmra.mxu0 %v669
  %v705 = vpop.f32.mrf.mxu0
  %v706 = vadd.f32 0.0, %v705
  %v707 = vpop.f32.mrf.mxu0
  %v708 = vpop.f32.mrf.mxu0
  %v709 = vpop.f32.mrf.mxu0
  %710 = vdwg.mxu0
  %v711 = vadd.f32 %v614, %v706
  %s712 = scalar_lea.vmem %s1, 28
  %v713 = vld [vmem:[%s712] sm:$0xf]
  %714 = vrot.lane.b32.xlu0 %v37, 114
  %v715 = vpop.permute.xlu0 %714
  %v717 = vsel %vm45, %v713, 0
  %v720 = vsel %vm49, %v715, 0
  %722 = vmatprep.subr.bf16.mxu0 0
  %723 = vmatpush1.bf16.msra.mxu0 0
  %724 = vmatprep.subr.bf16.mxu0 0
  %725 = vmatpush1.bf16.msra.mxu0 0
  %726 = vmatprep.subr.bf16.mxu0 0
  %727 = vmatpush1.bf16.msra.mxu0 0
  %728 = vmatprep.subr.bf16.mxu0 0
  %729 = vmatpush1.bf16.msra.mxu0 0
  %730 = vmatprep.subr.bf16.mxu0 0
  %731 = vmatpush1.bf16.msra.mxu0 0
  %732 = vmatprep.subr.bf16.mxu0 0
  %733 = vmatpush1.bf16.msra.mxu0 0
  %734 = vmatprep.subr.bf16.mxu0 0
  %735 = vmatpush1.bf16.msra.mxu0 0
  %736 = vmatprep.subr.bf16.mxu0 0
  %737 = vmatpush1.bf16.msra.mxu0 %v720
  %738 = vmatprep.subr.bf16.mxu0 0
  %739 = vmatpush2.bf16.msra.mxu0 0
  %740 = vmatprep.subr.bf16.mxu0 0
  %741 = vmatpush2.bf16.msra.mxu0 0
  %742 = vmatprep.subr.bf16.mxu0 0
  %743 = vmatpush2.bf16.msra.mxu0 0
  %744 = vmatprep.subr.bf16.mxu0 0
  %745 = vmatpush2.bf16.msra.mxu0 0
  %746 = vmatprep.subr.bf16.mxu0 0
  %747 = vmatpush2.bf16.msra.mxu0 0
  %748 = vmatprep.subr.bf16.mxu0 0
  %749 = vmatpush2.bf16.msra.mxu0 0
  %750 = vmatprep.subr.bf16.mxu0 0
  %751 = vmatpush2.bf16.msra.mxu0 0
  %752 = vmatprep.subr.bf16.mxu0 0
  %753 = vmatpush2.bf16.msra.mxu0 0
  %754 = vmatprep.mubr.bf16.mxu0 0
  %755 = vmatmul.mubr.bf16.gmra.mxu0 %v717
  %v756 = vpop.f32.mrf.mxu0
  %v757 = vadd.f32 0.0, %v756
  %v758 = vpop.f32.mrf.mxu0
  %v759 = vpop.f32.mrf.mxu0
  %v760 = vpop.f32.mrf.mxu0
  %761 = vdwg.mxu0
  %v762 = vadd.f32 %v665, %v757
  %s763 = scalar_lea.vmem %s2, 28
  %v764 = vld [vmem:[%s763] sm:$0xf]
  %v766 = vsel %vm45, %v764, 0
  %768 = vmatprep.subr.bf16.mxu0 0
  %769 = vmatpush1.bf16.msra.mxu0 0
  %770 = vmatprep.subr.bf16.mxu0 0
  %771 = vmatpush1.bf16.msra.mxu0 0
  %772 = vmatprep.subr.bf16.mxu0 0
  %773 = vmatpush1.bf16.msra.mxu0 0
  %774 = vmatprep.subr.bf16.mxu0 0
  %775 = vmatpush1.bf16.msra.mxu0 0
  %776 = vmatprep.subr.bf16.mxu0 0
  %777 = vmatpush1.bf16.msra.mxu0 0
  %778 = vmatprep.subr.bf16.mxu0 0
  %779 = vmatpush1.bf16.msra.mxu0 0
  %780 = vmatprep.subr.bf16.mxu0 0
  %781 = vmatpush1.bf16.msra.mxu0 0
  %782 = vmatprep.subr.bf16.mxu0 0
  %783 = vmatpush1.bf16.msra.mxu0 %v720
  %784 = vmatprep.subr.bf16.mxu0 0
  %785 = vmatpush2.bf16.msra.mxu0 0
  %786 = vmatprep.subr.bf16.mxu0 0
  %787 = vmatpush2.bf16.msra.mxu0 0
  %788 = vmatprep.subr.bf16.mxu0 0
  %789 = vmatpush2.bf16.msra.mxu0 0
  %790 = vmatprep.subr.bf16.mxu0 0
  %791 = vmatpush2.bf16.msra.mxu0 0
  %792 = vmatprep.subr.bf16.mxu0 0
  %793 = vmatpush2.bf16.msra.mxu0 0
  %794 = vmatprep.subr.bf16.mxu0 0
  %795 = vmatpush2.bf16.msra.mxu0 0
  %796 = vmatprep.subr.bf16.mxu0 0
  %797 = vmatpush2.bf16.msra.mxu0 0
  %798 = vmatprep.subr.bf16.mxu0 0
  %799 = vmatpush2.bf16.msra.mxu0 0
  %800 = vmatprep.mubr.bf16.mxu0 0
  %801 = vmatmul.mubr.bf16.gmra.mxu0 %v766
  %v802 = vpop.f32.mrf.mxu0
  %v803 = vadd.f32 0.0, %v802
  %v804 = vpop.f32.mrf.mxu0
  %v805 = vpop.f32.mrf.mxu0
  %v806 = vpop.f32.mrf.mxu0
  %807 = vdwg.mxu0
  %v808 = vadd.f32 %v711, %v803
  %v809 = vld [vmem:[%s3] sm:$0xff]
  %811 = vset.pattern.permute.xlu0 0
  %812 = vperm.xlu0 %811, %v809
  %v813 = vpop.permute.xlu0 %812
  %v815 = vmul.f32 %v762, %v813
  %v816 = vld [vmem:[%s4] sm:$0xff]
  %818 = vset.pattern.permute.xlu0 0
  %819 = vperm.xlu0 %818, %v816
  %v820 = vpop.permute.xlu0 %819
  %v822 = vadd.f32 %v815, %v820
  %v823 = vld [vmem:[%s5] sm:$0xff]
  %825 = vset.pattern.permute.xlu0 0
  %826 = vperm.xlu0 %825, %v823
  %v827 = vpop.permute.xlu0 %826
  %v829 = vmul.f32 %v808, %v827
  %v830 = vld [vmem:[%s6] sm:$0xff]
  %832 = vset.pattern.permute.xlu0 0
  %833 = vperm.xlu0 %832, %v830
  %v834 = vpop.permute.xlu0 %833
  %v836 = vadd.f32 %v829, %v834
  %v837 = vxor.u32 %v836, 2147483648
  %v838 = vmul.f32 %v837, 1.442695
  %v839 = vpow.pop %v838
  %v840 = vadd.f32 %v839, 1.0
  %v841 = vrcp.pop %v840
  %v842 = vmul.f32 1.0, %v841
  %v843 = vmul.f32 %v822, %v842
  %vm844 = vcmask 523264
  %845 = vst.msk [vmem:[%s7] sm:$0xff] %vm844, %v843
  // Predicated region
  $region30: #{_lambda_.6} parent=0 // pred_check
    _
  $region31: #{_lambda_.6} parent=0 // pred_check_branch
    %847 = sbr.rel (0) target = $region33
  $region32: #{_lambda_.6} parent=0 // pred_region
    _
  $region33: #{_lambda_.6} parent=0 // pred_fallthru
    _
  // Predicated region
  $region34: #{_lambda_.6} parent=0 // pred_check
    _
  $region35: #{_lambda_.6} parent=0 // pred_check_branch
    %849 = sbr.rel (0) target = $region37
  $region36: #{_lambda_.6} parent=0 // pred_region
    _
  $region37: #{_lambda_.6} parent=0 // pred_fallthru
    _

// kernel: _lambda_.7
$region0: #{_lambda_.7}
  #allocation0 [shape = 'u32[]', space=smem, size = 0x4, offset = 0x4, fixed_abs, tag = 'smem constant byte address 0x4 - core index']
  #allocation1 [shape = 'u32[144,128]{1,0:T(1,128)}', space=vmem, size = 0x12000, scoped, tag = 'internal scratch']
  #allocation2 [shape = 'f32[8,72]{1,0:T(8,128)}', space=vmem, size = 0x1000, scoped, tag = 'scratch operand']
  %s0 = inlined_call_operand.vmem [shape: f32[8,64], index: 0, kind: input, shape index: {}]
  %s1 = inlined_call_operand.vmem [shape: bf16[6,8,8], index: 1, kind: input, shape index: {}]
  %s2 = inlined_call_operand.vmem [shape: bf16[6,8,8], index: 2, kind: input, shape index: {}]
  %s3 = inlined_call_operand.vmem [shape: f32[2,8,1], index: 3, kind: input, shape index: {}]
  %s4 = inlined_call_operand.vmem [shape: f32[2,8,1], index: 4, kind: input, shape index: {}]
  %s5 = inlined_call_operand.vmem [shape: f32[2,8,1], index: 5, kind: input, shape index: {}]
  %s6 = inlined_call_operand.vmem [shape: f32[2,8,1], index: 6, kind: input, shape index: {}]
  %s7 = inlined_call_operand.vmem [shape: bf16[2,8,8], index: 7, kind: input, shape index: {}]
  %s8 = inlined_call_operand.vmem [shape: f32[2,8,1], index: 8, kind: input, shape index: {}]
  %s9 = inlined_call_operand.vmem [shape: bf16[2,8,8], index: 9, kind: input, shape index: {}]
  %s10 = inlined_call_operand.vmem [shape: f32[2,8,1], index: 10, kind: input, shape index: {}]
  %s11 = inlined_call_operand.vmem [shape: f32[8,64], index: 11, kind: output, shape index: {}]
  %s12 = sld [smem:[#allocation0]]
  $region54: #{_lambda_.7} parent=0
    _
  %s14 = ssub.s32 1, %s12
  %s15 = scalar_select 0, %s14, %s12
  // Predicated region
  $region2: #{_lambda_.7} parent=0 // pred_check
    _
  $region3: #{_lambda_.7} parent=0 // pred_check_branch
    %17 = sbr.rel (0) target = $region5
  $region4: #{_lambda_.7} parent=0 // pred_region
    _
  $region5: #{_lambda_.7} parent=0 // pred_fallthru
    _
  // Predicated region
  $region6: #{_lambda_.7} parent=0 // pred_check
    _
  $region7: #{_lambda_.7} parent=0 // pred_check_branch
    %19 = sbr.rel (0) target = $region9
  $region8: #{_lambda_.7} parent=0 // pred_region
    _
  $region9: #{_lambda_.7} parent=0 // pred_fallthru
    _
  // Predicated region
  $region10: #{_lambda_.7} parent=0 // pred_check
    _
  $region11: #{_lambda_.7} parent=0 // pred_check_branch
    %21 = sbr.rel (0) target = $region13
  $region12: #{_lambda_.7} parent=0 // pred_region
    _
  $region13: #{_lambda_.7} parent=0 // pred_fallthru
    _
  // Predicated region
  $region14: #{_lambda_.7} parent=0 // pred_check
    _
  $region15: #{_lambda_.7} parent=0 // pred_check_branch
    %23 = sbr.rel (0) target = $region17
  $region16: #{_lambda_.7} parent=0 // pred_region
    _
  $region17: #{_lambda_.7} parent=0 // pred_fallthru
    _
  // Predicated region
  $region18: #{_lambda_.7} parent=0 // pred_check
    _
  $region19: #{_lambda_.7} parent=0 // pred_check_branch
    %25 = sbr.rel (0) target = $region21
  $region20: #{_lambda_.7} parent=0 // pred_region
    _
  $region21: #{_lambda_.7} parent=0 // pred_fallthru
    _
  // Predicated region
  $region22: #{_lambda_.7} parent=0 // pred_check
    _
  $region23: #{_lambda_.7} parent=0 // pred_check_branch
    %27 = sbr.rel (0) target = $region25
  $region24: #{_lambda_.7} parent=0 // pred_region
    _
  $region25: #{_lambda_.7} parent=0 // pred_fallthru
    _
  // Predicated region
  $region26: #{_lambda_.7} parent=0 // pred_check
    _
  $region27: #{_lambda_.7} parent=0 // pred_check_branch
    %29 = sbr.rel (0) target = $region29
  $region28: #{_lambda_.7} parent=0 // pred_region
    _
  $region29: #{_lambda_.7} parent=0 // pred_fallthru
    _
  // Predicated region
  $region30: #{_lambda_.7} parent=0 // pred_check
    _
  $region31: #{_lambda_.7} parent=0 // pred_check_branch
    %31 = sbr.rel (0) target = $region33
  $region32: #{_lambda_.7} parent=0 // pred_region
    _
  $region33: #{_lambda_.7} parent=0 // pred_fallthru
    _
  // Predicated region
  $region34: #{_lambda_.7} parent=0 // pred_check
    _
  $region35: #{_lambda_.7} parent=0 // pred_check_branch
    %33 = sbr.rel (0) target = $region37
  $region36: #{_lambda_.7} parent=0 // pred_region
    _
  $region37: #{_lambda_.7} parent=0 // pred_fallthru
    _
  // Predicated region
  $region38: #{_lambda_.7} parent=0 // pred_check
    _
  $region39: #{_lambda_.7} parent=0 // pred_check_branch
    %35 = sbr.rel (0) target = $region41
  $region40: #{_lambda_.7} parent=0 // pred_region
    _
  $region41: #{_lambda_.7} parent=0 // pred_fallthru
    _
  // Predicated region
  $region42: #{_lambda_.7} parent=0 // pred_check
    _
  $region43: #{_lambda_.7} parent=0 // pred_check_branch
    %37 = sbr.rel (0) target = $region45
  $region44: #{_lambda_.7} parent=0 // pred_region
    _
  $region45: #{_lambda_.7} parent=0 // pred_fallthru
    _
  %vm39 = vcmask 588800
  %40 = vst.msk [vmem:[#allocation2] sm:$0xff] %vm39, 0.0
  %v41 = vld [vmem:[%s0] sm:$0xff]
  %43 = vrot.lane.b32.xlu0 %v41, 4
  %v44 = vpop.permute.xlu0 %43
  %vm46 = vcmask 556064
  %47 = vst.msk [vmem:[#allocation2] sm:$0xff] %vm46, %v44
  %v48 = vld [vmem:[#allocation2] sm:$0xff]
  %v49 = vpack.c.bf16 %v48, %v48
  %v50 = vld [vmem:[%s1] sm:$0xf]
  %v51 = vld [vmem:[%s2] sm:$0xf]
  %s52 = scalar_lea.vmem %s1, 4
  %v53 = vld [vmem:[%s52] sm:$0xf]
  %55 = vrot.lane.b32.xlu0 %v49, 124
  %v56 = vpop.permute.xlu0 %55
  %vm57 = vcmask 64512
  %v59 = vsel %vm57, %v53, 0
  %vm61 = vcmask 1043456
  %v63 = vsel %vm61, %v56, 0
  %65 = vmatprep.subr.bf16.mxu0 0
  %66 = vmatpush1.bf16.msra.mxu0 0
  %67 = vmatprep.subr.bf16.mxu0 0
  %68 = vmatpush1.bf16.msra.mxu0 0
  %69 = vmatprep.subr.bf16.mxu0 0
  %70 = vmatpush1.bf16.msra.mxu0 0
  %71 = vmatprep.subr.bf16.mxu0 0
  %72 = vmatpush1.bf16.msra.mxu0 0
  %73 = vmatprep.subr.bf16.mxu0 0
  %74 = vmatpush1.bf16.msra.mxu0 0
  %75 = vmatprep.subr.bf16.mxu0 0
  %76 = vmatpush1.bf16.msra.mxu0 0
  %77 = vmatprep.subr.bf16.mxu0 0
  %78 = vmatpush1.bf16.msra.mxu0 0
  %79 = vmatprep.subr.bf16.mxu0 0
  %80 = vmatpush1.bf16.msra.mxu0 %v63
  %81 = vmatprep.subr.bf16.mxu0 0
  %82 = vmatpush2.bf16.msra.mxu0 0
  %83 = vmatprep.subr.bf16.mxu0 0
  %84 = vmatpush2.bf16.msra.mxu0 0
  %85 = vmatprep.subr.bf16.mxu0 0
  %86 = vmatpush2.bf16.msra.mxu0 0
  %87 = vmatprep.subr.bf16.mxu0 0
  %88 = vmatpush2.bf16.msra.mxu0 0
  %89 = vmatprep.subr.bf16.mxu0 0
  %90 = vmatpush2.bf16.msra.mxu0 0
  %91 = vmatprep.subr.bf16.mxu0 0
  %92 = vmatpush2.bf16.msra.mxu0 0
  %93 = vmatprep.subr.bf16.mxu0 0
  %94 = vmatpush2.bf16.msra.mxu0 0
  %95 = vmatprep.subr.bf16.mxu0 0
  %96 = vmatpush2.bf16.msra.mxu0 0
  %97 = vmatprep.mubr.bf16.mxu0 0
  %98 = vmatmul.mubr.bf16.gmra.mxu0 %v59
  %v99 = vpop.f32.mrf.mxu0
  %v100 = vadd.f32 0.0, %v99
  %v101 = vpop.f32.mrf.mxu0
  %v102 = vpop.f32.mrf.mxu0
  %v103 = vpop.f32.mrf.mxu0
  %104 = vdwg.mxu0
  %105 = vrot.lane.b32.xlu0 %v49, 126
  %v106 = vpop.permute.xlu0 %105
  %v108 = vsel %vm57, %v50, 0
  %v111 = vsel %vm61, %v106, 0
  %113 = vmatprep.subr.bf16.mxu0 0
  %114 = vmatpush1.bf16.msra.mxu0 0
  %115 = vmatprep.subr.bf16.mxu0 0
  %116 = vmatpush1.bf16.msra.mxu0 0
  %117 = vmatprep.subr.bf16.mxu0 0
  %118 = vmatpush1.bf16.msra.mxu0 0
  %119 = vmatprep.subr.bf16.mxu0 0
  %120 = vmatpush1.bf16.msra.mxu0 0
  %121 = vmatprep.subr.bf16.mxu0 0
  %122 = vmatpush1.bf16.msra.mxu0 0
  %123 = vmatprep.subr.bf16.mxu0 0
  %124 = vmatpush1.bf16.msra.mxu0 0
  %125 = vmatprep.subr.bf16.mxu0 0
  %126 = vmatpush1.bf16.msra.mxu0 0
  %127 = vmatprep.subr.bf16.mxu0 0
  %128 = vmatpush1.bf16.msra.mxu0 %v111
  %129 = vmatprep.subr.bf16.mxu0 0
  %130 = vmatpush2.bf16.msra.mxu0 0
  %131 = vmatprep.subr.bf16.mxu0 0
  %132 = vmatpush2.bf16.msra.mxu0 0
  %133 = vmatprep.subr.bf16.mxu0 0
  %134 = vmatpush2.bf16.msra.mxu0 0
  %135 = vmatprep.subr.bf16.mxu0 0
  %136 = vmatpush2.bf16.msra.mxu0 0
  %137 = vmatprep.subr.bf16.mxu0 0
  %138 = vmatpush2.bf16.msra.mxu0 0
  %139 = vmatprep.subr.bf16.mxu0 0
  %140 = vmatpush2.bf16.msra.mxu0 0
  %141 = vmatprep.subr.bf16.mxu0 0
  %142 = vmatpush2.bf16.msra.mxu0 0
  %143 = vmatprep.subr.bf16.mxu0 0
  %144 = vmatpush2.bf16.msra.mxu0 0
  %145 = vmatprep.mubr.bf16.mxu0 0
  %146 = vmatmul.mubr.bf16.gmra.mxu0 %v108
  %v147 = vpop.f32.mrf.mxu0
  %v148 = vadd.f32 %v100, %v147
  %v149 = vpop.f32.mrf.mxu0
  %v150 = vpop.f32.mrf.mxu0
  %v151 = vpop.f32.mrf.mxu0
  %152 = vdwg.mxu0
  %s153 = scalar_lea.vmem %s2, 4
  %v154 = vld [vmem:[%s153] sm:$0xf]
  %v156 = vsel %vm57, %v154, 0
  %158 = vmatprep.subr.bf16.mxu0 0
  %159 = vmatpush1.bf16.msra.mxu0 0
  %160 = vmatprep.subr.bf16.mxu0 0
  %161 = vmatpush1.bf16.msra.mxu0 0
  %162 = vmatprep.subr.bf16.mxu0 0
  %163 = vmatpush1.bf16.msra.mxu0 0
  %164 = vmatprep.subr.bf16.mxu0 0
  %165 = vmatpush1.bf16.msra.mxu0 0
  %166 = vmatprep.subr.bf16.mxu0 0
  %167 = vmatpush1.bf16.msra.mxu0 0
  %168 = vmatprep.subr.bf16.mxu0 0
  %169 = vmatpush1.bf16.msra.mxu0 0
  %170 = vmatprep.subr.bf16.mxu0 0
  %171 = vmatpush1.bf16.msra.mxu0 0
  %172 = vmatprep.subr.bf16.mxu0 0
  %173 = vmatpush1.bf16.msra.mxu0 %v63
  %174 = vmatprep.subr.bf16.mxu0 0
  %175 = vmatpush2.bf16.msra.mxu0 0
  %176 = vmatprep.subr.bf16.mxu0 0
  %177 = vmatpush2.bf16.msra.mxu0 0
  %178 = vmatprep.subr.bf16.mxu0 0
  %179 = vmatpush2.bf16.msra.mxu0 0
  %180 = vmatprep.subr.bf16.mxu0 0
  %181 = vmatpush2.bf16.msra.mxu0 0
  %182 = vmatprep.subr.bf16.mxu0 0
  %183 = vmatpush2.bf16.msra.mxu0 0
  %184 = vmatprep.subr.bf16.mxu0 0
  %185 = vmatpush2.bf16.msra.mxu0 0
  %186 = vmatprep.subr.bf16.mxu0 0
  %187 = vmatpush2.bf16.msra.mxu0 0
  %188 = vmatprep.subr.bf16.mxu0 0
  %189 = vmatpush2.bf16.msra.mxu0 0
  %190 = vmatprep.mubr.bf16.mxu0 0
  %191 = vmatmul.mubr.bf16.gmra.mxu0 %v156
  %v192 = vpop.f32.mrf.mxu0
  %v193 = vadd.f32 0.0, %v192
  %v194 = vpop.f32.mrf.mxu0
  %v195 = vpop.f32.mrf.mxu0
  %v196 = vpop.f32.mrf.mxu0
  %197 = vdwg.mxu0
  %v199 = vsel %vm57, %v51, 0
  %201 = vmatprep.subr.bf16.mxu0 0
  %202 = vmatpush1.bf16.msra.mxu0 0
  %203 = vmatprep.subr.bf16.mxu0 0
  %204 = vmatpush1.bf16.msra.mxu0 0
  %205 = vmatprep.subr.bf16.mxu0 0
  %206 = vmatpush1.bf16.msra.mxu0 0
  %207 = vmatprep.subr.bf16.mxu0 0
  %208 = vmatpush1.bf16.msra.mxu0 0
  %209 = vmatprep.subr.bf16.mxu0 0
  %210 = vmatpush1.bf16.msra.mxu0 0
  %211 = vmatprep.subr.bf16.mxu0 0
  %212 = vmatpush1.bf16.msra.mxu0 0
  %213 = vmatprep.subr.bf16.mxu0 0
  %214 = vmatpush1.bf16.msra.mxu0 0
  %215 = vmatprep.subr.bf16.mxu0 0
  %216 = vmatpush1.bf16.msra.mxu0 %v111
  %217 = vmatprep.subr.bf16.mxu0 0
  %218 = vmatpush2.bf16.msra.mxu0 0
  %219 = vmatprep.subr.bf16.mxu0 0
  %220 = vmatpush2.bf16.msra.mxu0 0
  %221 = vmatprep.subr.bf16.mxu0 0
  %222 = vmatpush2.bf16.msra.mxu0 0
  %223 = vmatprep.subr.bf16.mxu0 0
  %224 = vmatpush2.bf16.msra.mxu0 0
  %225 = vmatprep.subr.bf16.mxu0 0
  %226 = vmatpush2.bf16.msra.mxu0 0
  %227 = vmatprep.subr.bf16.mxu0 0
  %228 = vmatpush2.bf16.msra.mxu0 0
  %229 = vmatprep.subr.bf16.mxu0 0
  %230 = vmatpush2.bf16.msra.mxu0 0
  %231 = vmatprep.subr.bf16.mxu0 0
  %232 = vmatpush2.bf16.msra.mxu0 0
  %233 = vmatprep.mubr.bf16.mxu0 0
  %234 = vmatmul.mubr.bf16.gmra.mxu0 %v199
  %v235 = vpop.f32.mrf.mxu0
  %v236 = vadd.f32 %v193, %v235
  %v237 = vpop.f32.mrf.mxu0
  %v238 = vpop.f32.mrf.mxu0
  %v239 = vpop.f32.mrf.mxu0
  %240 = vdwg.mxu0
  %s241 = scalar_lea.vmem %s1, 8
  %v242 = vld [vmem:[%s241] sm:$0xf]
  %243 = vrot.lane.b32.xlu0 %v49, 122
  %v244 = vpop.permute.xlu0 %243
  %v246 = vsel %vm57, %v242, 0
  %v249 = vsel %vm61, %v244, 0
  %251 = vmatprep.subr.bf16.mxu0 0
  %252 = vmatpush1.bf16.msra.mxu0 0
  %253 = vmatprep.subr.bf16.mxu0 0
  %254 = vmatpush1.bf16.msra.mxu0 0
  %255 = vmatprep.subr.bf16.mxu0 0
  %256 = vmatpush1.bf16.msra.mxu0 0
  %257 = vmatprep.subr.bf16.mxu0 0
  %258 = vmatpush1.bf16.msra.mxu0 0
  %259 = vmatprep.subr.bf16.mxu0 0
  %260 = vmatpush1.bf16.msra.mxu0 0
  %261 = vmatprep.subr.bf16.mxu0 0
  %262 = vmatpush1.bf16.msra.mxu0 0
  %263 = vmatprep.subr.bf16.mxu0 0
  %264 = vmatpush1.bf16.msra.mxu0 0
  %265 = vmatprep.subr.bf16.mxu0 0
  %266 = vmatpush1.bf16.msra.mxu0 %v249
  %267 = vmatprep.subr.bf16.mxu0 0
  %268 = vmatpush2.bf16.msra.mxu0 0
  %269 = vmatprep.subr.bf16.mxu0 0
  %270 = vmatpush2.bf16.msra.mxu0 0
  %271 = vmatprep.subr.bf16.mxu0 0
  %272 = vmatpush2.bf16.msra.mxu0 0
  %273 = vmatprep.subr.bf16.mxu0 0
  %274 = vmatpush2.bf16.msra.mxu0 0
  %275 = vmatprep.subr.bf16.mxu0 0
  %276 = vmatpush2.bf16.msra.mxu0 0
  %277 = vmatprep.subr.bf16.mxu0 0
  %278 = vmatpush2.bf16.msra.mxu0 0
  %279 = vmatprep.subr.bf16.mxu0 0
  %280 = vmatpush2.bf16.msra.mxu0 0
  %281 = vmatprep.subr.bf16.mxu0 0
  %282 = vmatpush2.bf16.msra.mxu0 0
  %283 = vmatprep.mubr.bf16.mxu0 0
  %284 = vmatmul.mubr.bf16.gmra.mxu0 %v246
  %v285 = vpop.f32.mrf.mxu0
  %v286 = vadd.f32 0.0, %v285
  %v287 = vpop.f32.mrf.mxu0
  %v288 = vpop.f32.mrf.mxu0
  %v289 = vpop.f32.mrf.mxu0
  %290 = vdwg.mxu0
  %v291 = vadd.f32 %v148, %v286
  %s292 = scalar_lea.vmem %s2, 8
  %v293 = vld [vmem:[%s292] sm:$0xf]
  %v295 = vsel %vm57, %v293, 0
  %297 = vmatprep.subr.bf16.mxu0 0
  %298 = vmatpush1.bf16.msra.mxu0 0
  %299 = vmatprep.subr.bf16.mxu0 0
  %300 = vmatpush1.bf16.msra.mxu0 0
  %301 = vmatprep.subr.bf16.mxu0 0
  %302 = vmatpush1.bf16.msra.mxu0 0
  %303 = vmatprep.subr.bf16.mxu0 0
  %304 = vmatpush1.bf16.msra.mxu0 0
  %305 = vmatprep.subr.bf16.mxu0 0
  %306 = vmatpush1.bf16.msra.mxu0 0
  %307 = vmatprep.subr.bf16.mxu0 0
  %308 = vmatpush1.bf16.msra.mxu0 0
  %309 = vmatprep.subr.bf16.mxu0 0
  %310 = vmatpush1.bf16.msra.mxu0 0
  %311 = vmatprep.subr.bf16.mxu0 0
  %312 = vmatpush1.bf16.msra.mxu0 %v249
  %313 = vmatprep.subr.bf16.mxu0 0
  %314 = vmatpush2.bf16.msra.mxu0 0
  %315 = vmatprep.subr.bf16.mxu0 0
  %316 = vmatpush2.bf16.msra.mxu0 0
  %317 = vmatprep.subr.bf16.mxu0 0
  %318 = vmatpush2.bf16.msra.mxu0 0
  %319 = vmatprep.subr.bf16.mxu0 0
  %320 = vmatpush2.bf16.msra.mxu0 0
  %321 = vmatprep.subr.bf16.mxu0 0
  %322 = vmatpush2.bf16.msra.mxu0 0
  %323 = vmatprep.subr.bf16.mxu0 0
  %324 = vmatpush2.bf16.msra.mxu0 0
  %325 = vmatprep.subr.bf16.mxu0 0
  %326 = vmatpush2.bf16.msra.mxu0 0
  %327 = vmatprep.subr.bf16.mxu0 0
  %328 = vmatpush2.bf16.msra.mxu0 0
  %329 = vmatprep.mubr.bf16.mxu0 0
  %330 = vmatmul.mubr.bf16.gmra.mxu0 %v295
  %v331 = vpop.f32.mrf.mxu0
  %v332 = vadd.f32 0.0, %v331
  %v333 = vpop.f32.mrf.mxu0
  %v334 = vpop.f32.mrf.mxu0
  %v335 = vpop.f32.mrf.mxu0
  %336 = vdwg.mxu0
  %v337 = vadd.f32 %v236, %v332
  %v338 = vld [vmem:[%s3] sm:$0xff]
  %340 = vset.pattern.permute.xlu0 0
  %341 = vperm.xlu0 %340, %v338
  %v342 = vpop.permute.xlu0 %341
  %v344 = vmul.f32 %v291, %v342
  %v345 = vld [vmem:[%s4] sm:$0xff]
  %347 = vset.pattern.permute.xlu0 0
  %348 = vperm.xlu0 %347, %v345
  %v349 = vpop.permute.xlu0 %348
  %v351 = vadd.f32 %v344, %v349
  %v352 = vld [vmem:[%s5] sm:$0xff]
  %354 = vset.pattern.permute.xlu0 0
  %355 = vperm.xlu0 %354, %v352
  %v356 = vpop.permute.xlu0 %355
  %v358 = vmul.f32 %v337, %v356
  %v359 = vld [vmem:[%s6] sm:$0xff]
  %361 = vset.pattern.permute.xlu0 0
  %362 = vperm.xlu0 %361, %v359
  %v363 = vpop.permute.xlu0 %362
  %v365 = vadd.f32 %v358, %v363
  %v366 = vtanh.pop %v351
  %v367 = vxor.u32 %v365, 2147483648
  %v368 = vmul.f32 %v367, 1.442695
  %v369 = vpow.pop %v368
  %v370 = vadd.f32 %v369, 1.0
  %v371 = vrcp.pop %v370
  %v372 = vmul.f32 1.0, %v371
  %v373 = vmul.f32 %v366, %v372
  %v374 = vpack.c.bf16 %v373, %v373
  %v375 = vld [vmem:[%s7] sm:$0xf]
  %v376 = vld [vmem:[%s8] sm:$0xff]
  %378 = vset.pattern.permute.xlu0 0
  %379 = vperm.xlu0 %378, %v376
  %v380 = vpop.permute.xlu0 %379
  %v383 = vsel %vm57, %v375, 0
  %v386 = vsel %vm61, %v374, 0
  %388 = vmatprep.subr.bf16.mxu0 0
  %389 = vmatpush1.bf16.msra.mxu0 0
  %390 = vmatprep.subr.bf16.mxu0 0
  %391 = vmatpush1.bf16.msra.mxu0 0
  %392 = vmatprep.subr.bf16.mxu0 0
  %393 = vmatpush1.bf16.msra.mxu0 0
  %394 = vmatprep.subr.bf16.mxu0 0
  %395 = vmatpush1.bf16.msra.mxu0 0
  %396 = vmatprep.subr.bf16.mxu0 0
  %397 = vmatpush1.bf16.msra.mxu0 0
  %398 = vmatprep.subr.bf16.mxu0 0
  %399 = vmatpush1.bf16.msra.mxu0 0
  %400 = vmatprep.subr.bf16.mxu0 0
  %401 = vmatpush1.bf16.msra.mxu0 0
  %402 = vmatprep.subr.bf16.mxu0 0
  %403 = vmatpush1.bf16.msra.mxu0 %v386
  %404 = vmatprep.subr.bf16.mxu0 0
  %405 = vmatpush2.bf16.msra.mxu0 0
  %406 = vmatprep.subr.bf16.mxu0 0
  %407 = vmatpush2.bf16.msra.mxu0 0
  %408 = vmatprep.subr.bf16.mxu0 0
  %409 = vmatpush2.bf16.msra.mxu0 0
  %410 = vmatprep.subr.bf16.mxu0 0
  %411 = vmatpush2.bf16.msra.mxu0 0
  %412 = vmatprep.subr.bf16.mxu0 0
  %413 = vmatpush2.bf16.msra.mxu0 0
  %414 = vmatprep.subr.bf16.mxu0 0
  %415 = vmatpush2.bf16.msra.mxu0 0
  %416 = vmatprep.subr.bf16.mxu0 0
  %417 = vmatpush2.bf16.msra.mxu0 0
  %418 = vmatprep.subr.bf16.mxu0 0
  %419 = vmatpush2.bf16.msra.mxu0 0
  %420 = vmatprep.mubr.bf16.mxu0 0
  %421 = vmatmul.mubr.bf16.gmra.mxu0 %v383
  %v422 = vpop.f32.mrf.mxu0
  %v423 = vadd.f32 %v380, %v422
  %v424 = vpop.f32.mrf.mxu0
  %v425 = vpop.f32.mrf.mxu0
  %v426 = vpop.f32.mrf.mxu0
  %427 = vdwg.mxu0
  %429 = vrot.lane.b32.xlu0 %v423, 4
  %v430 = vpop.permute.xlu0 %429
  %v432 = vadd.f32 %v48, %v430
  %433 = vst.msk [vmem:[#allocation2] sm:$0xff] %vm46, %v432
  %v434 = vld [vmem:[%s9] sm:$0xf]
  %v435 = vld [vmem:[%s10] sm:$0xff]
  %437 = vset.pattern.permute.xlu0 0
  %438 = vperm.xlu0 %437, %v435
  %v439 = vpop.permute.xlu0 %438
  %v442 = vsel %vm57, %v434, 0
  %444 = vmatprep.subr.bf16.mxu0 0
  %445 = vmatpush1.bf16.msra.mxu0 0
  %446 = vmatprep.subr.bf16.mxu0 0
  %447 = vmatpush1.bf16.msra.mxu0 0
  %448 = vmatprep.subr.bf16.mxu0 0
  %449 = vmatpush1.bf16.msra.mxu0 0
  %450 = vmatprep.subr.bf16.mxu0 0
  %451 = vmatpush1.bf16.msra.mxu0 0
  %452 = vmatprep.subr.bf16.mxu0 0
  %453 = vmatpush1.bf16.msra.mxu0 0
  %454 = vmatprep.subr.bf16.mxu0 0
  %455 = vmatpush1.bf16.msra.mxu0 0
  %456 = vmatprep.subr.bf16.mxu0 0
  %457 = vmatpush1.bf16.msra.mxu0 0
  %458 = vmatprep.subr.bf16.mxu0 0
  %459 = vmatpush1.bf16.msra.mxu0 %v386
  %460 = vmatprep.subr.bf16.mxu0 0
  %461 = vmatpush2.bf16.msra.mxu0 0
  %462 = vmatprep.subr.bf16.mxu0 0
  %463 = vmatpush2.bf16.msra.mxu0 0
  %464 = vmatprep.subr.bf16.mxu0 0
  %465 = vmatpush2.bf16.msra.mxu0 0
  %466 = vmatprep.subr.bf16.mxu0 0
  %467 = vmatpush2.bf16.msra.mxu0 0
  %468 = vmatprep.subr.bf16.mxu0 0
  %469 = vmatpush2.bf16.msra.mxu0 0
  %470 = vmatprep.subr.bf16.mxu0 0
  %471 = vmatpush2.bf16.msra.mxu0 0
  %472 = vmatprep.subr.bf16.mxu0 0
  %473 = vmatpush2.bf16.msra.mxu0 0
  %474 = vmatprep.subr.bf16.mxu0 0
  %475 = vmatpush2.bf16.msra.mxu0 0
  %476 = vmatprep.mubr.bf16.mxu0 0
  %477 = vmatmul.mubr.bf16.gmra.mxu0 %v442
  %v478 = vpop.f32.mrf.mxu0
  %v479 = vadd.f32 %v439, %v478
  %v480 = vpop.f32.mrf.mxu0
  %v481 = vpop.f32.mrf.mxu0
  %v482 = vpop.f32.mrf.mxu0
  %483 = vdwg.mxu0
  %v484 = vld [vmem:[#allocation2] sm:$0xff]
  %v485 = vpack.c.bf16 %v484, %v484
  %s486 = scalar_lea.vmem %s1, 12
  %v487 = vld [vmem:[%s486] sm:$0xf]
  %s488 = scalar_lea.vmem %s2, 12
  %v489 = vld [vmem:[%s488] sm:$0xf]
  %s490 = scalar_lea.vmem %s1, 16
  %v491 = vld [vmem:[%s490] sm:$0xf]
  %493 = vrot.lane.b32.xlu0 %v485, 124
  %v494 = vpop.permute.xlu0 %493
  %v496 = vsel %vm57, %v491, 0
  %v499 = vsel %vm61, %v494, 0
  %501 = vmatprep.subr.bf16.mxu0 0
  %502 = vmatpush1.bf16.msra.mxu0 0
  %503 = vmatprep.subr.bf16.mxu0 0
  %504 = vmatpush1.bf16.msra.mxu0 0
  %505 = vmatprep.subr.bf16.mxu0 0
  %506 = vmatpush1.bf16.msra.mxu0 0
  %507 = vmatprep.subr.bf16.mxu0 0
  %508 = vmatpush1.bf16.msra.mxu0 0
  %509 = vmatprep.subr.bf16.mxu0 0
  %510 = vmatpush1.bf16.msra.mxu0 0
  %511 = vmatprep.subr.bf16.mxu0 0
  %512 = vmatpush1.bf16.msra.mxu0 0
  %513 = vmatprep.subr.bf16.mxu0 0
  %514 = vmatpush1.bf16.msra.mxu0 0
  %515 = vmatprep.subr.bf16.mxu0 0
  %516 = vmatpush1.bf16.msra.mxu0 %v499
  %517 = vmatprep.subr.bf16.mxu0 0
  %518 = vmatpush2.bf16.msra.mxu0 0
  %519 = vmatprep.subr.bf16.mxu0 0
  %520 = vmatpush2.bf16.msra.mxu0 0
  %521 = vmatprep.subr.bf16.mxu0 0
  %522 = vmatpush2.bf16.msra.mxu0 0
  %523 = vmatprep.subr.bf16.mxu0 0
  %524 = vmatpush2.bf16.msra.mxu0 0
  %525 = vmatprep.subr.bf16.mxu0 0
  %526 = vmatpush2.bf16.msra.mxu0 0
  %527 = vmatprep.subr.bf16.mxu0 0
  %528 = vmatpush2.bf16.msra.mxu0 0
  %529 = vmatprep.subr.bf16.mxu0 0
  %530 = vmatpush2.bf16.msra.mxu0 0
  %531 = vmatprep.subr.bf16.mxu0 0
  %532 = vmatpush2.bf16.msra.mxu0 0
  %533 = vmatprep.mubr.bf16.mxu0 0
  %534 = vmatmul.mubr.bf16.gmra.mxu0 %v496
  %v535 = vpop.f32.mrf.mxu0
  %v536 = vadd.f32 0.0, %v535
  %v537 = vpop.f32.mrf.mxu0
  %v538 = vpop.f32.mrf.mxu0
  %v539 = vpop.f32.mrf.mxu0
  %540 = vdwg.mxu0
  %v542 = vsel %vm57, %v487, 0
  %v545 = vsel %vm61, %v485, 0
  %547 = vmatprep.subr.bf16.mxu0 0
  %548 = vmatpush1.bf16.msra.mxu0 0
  %549 = vmatprep.subr.bf16.mxu0 0
  %550 = vmatpush1.bf16.msra.mxu0 0
  %551 = vmatprep.subr.bf16.mxu0 0
  %552 = vmatpush1.bf16.msra.mxu0 0
  %553 = vmatprep.subr.bf16.mxu0 0
  %554 = vmatpush1.bf16.msra.mxu0 0
  %555 = vmatprep.subr.bf16.mxu0 0
  %556 = vmatpush1.bf16.msra.mxu0 0
  %557 = vmatprep.subr.bf16.mxu0 0
  %558 = vmatpush1.bf16.msra.mxu0 0
  %559 = vmatprep.subr.bf16.mxu0 0
  %560 = vmatpush1.bf16.msra.mxu0 0
  %561 = vmatprep.subr.bf16.mxu0 0
  %562 = vmatpush1.bf16.msra.mxu0 %v545
  %563 = vmatprep.subr.bf16.mxu0 0
  %564 = vmatpush2.bf16.msra.mxu0 0
  %565 = vmatprep.subr.bf16.mxu0 0
  %566 = vmatpush2.bf16.msra.mxu0 0
  %567 = vmatprep.subr.bf16.mxu0 0
  %568 = vmatpush2.bf16.msra.mxu0 0
  %569 = vmatprep.subr.bf16.mxu0 0
  %570 = vmatpush2.bf16.msra.mxu0 0
  %571 = vmatprep.subr.bf16.mxu0 0
  %572 = vmatpush2.bf16.msra.mxu0 0
  %573 = vmatprep.subr.bf16.mxu0 0
  %574 = vmatpush2.bf16.msra.mxu0 0
  %575 = vmatprep.subr.bf16.mxu0 0
  %576 = vmatpush2.bf16.msra.mxu0 0
  %577 = vmatprep.subr.bf16.mxu0 0
  %578 = vmatpush2.bf16.msra.mxu0 0
  %579 = vmatprep.mubr.bf16.mxu0 0
  %580 = vmatmul.mubr.bf16.gmra.mxu0 %v542
  %v581 = vpop.f32.mrf.mxu0
  %v582 = vadd.f32 %v536, %v581
  %v583 = vpop.f32.mrf.mxu0
  %v584 = vpop.f32.mrf.mxu0
  %v585 = vpop.f32.mrf.mxu0
  %586 = vdwg.mxu0
  %s587 = scalar_lea.vmem %s2, 16
  %v588 = vld [vmem:[%s587] sm:$0xf]
  %v590 = vsel %vm57, %v588, 0
  %592 = vmatprep.subr.bf16.mxu0 0
  %593 = vmatpush1.bf16.msra.mxu0 0
  %594 = vmatprep.subr.bf16.mxu0 0
  %595 = vmatpush1.bf16.msra.mxu0 0
  %596 = vmatprep.subr.bf16.mxu0 0
  %597 = vmatpush1.bf16.msra.mxu0 0
  %598 = vmatprep.subr.bf16.mxu0 0
  %599 = vmatpush1.bf16.msra.mxu0 0
  %600 = vmatprep.subr.bf16.mxu0 0
  %601 = vmatpush1.bf16.msra.mxu0 0
  %602 = vmatprep.subr.bf16.mxu0 0
  %603 = vmatpush1.bf16.msra.mxu0 0
  %604 = vmatprep.subr.bf16.mxu0 0
  %605 = vmatpush1.bf16.msra.mxu0 0
  %606 = vmatprep.subr.bf16.mxu0 0
  %607 = vmatpush1.bf16.msra.mxu0 %v499
  %608 = vmatprep.subr.bf16.mxu0 0
  %609 = vmatpush2.bf16.msra.mxu0 0
  %610 = vmatprep.subr.bf16.mxu0 0
  %611 = vmatpush2.bf16.msra.mxu0 0
  %612 = vmatprep.subr.bf16.mxu0 0
  %613 = vmatpush2.bf16.msra.mxu0 0
  %614 = vmatprep.subr.bf16.mxu0 0
  %615 = vmatpush2.bf16.msra.mxu0 0
  %616 = vmatprep.subr.bf16.mxu0 0
  %617 = vmatpush2.bf16.msra.mxu0 0
  %618 = vmatprep.subr.bf16.mxu0 0
  %619 = vmatpush2.bf16.msra.mxu0 0
  %620 = vmatprep.subr.bf16.mxu0 0
  %621 = vmatpush2.bf16.msra.mxu0 0
  %622 = vmatprep.subr.bf16.mxu0 0
  %623 = vmatpush2.bf16.msra.mxu0 0
  %624 = vmatprep.mubr.bf16.mxu0 0
  %625 = vmatmul.mubr.bf16.gmra.mxu0 %v590
  %v626 = vpop.f32.mrf.mxu0
  %v627 = vadd.f32 0.0, %v626
  %v628 = vpop.f32.mrf.mxu0
  %v629 = vpop.f32.mrf.mxu0
  %v630 = vpop.f32.mrf.mxu0
  %631 = vdwg.mxu0
  %v633 = vsel %vm57, %v489, 0
  %635 = vmatprep.subr.bf16.mxu0 0
  %636 = vmatpush1.bf16.msra.mxu0 0
  %637 = vmatprep.subr.bf16.mxu0 0
  %638 = vmatpush1.bf16.msra.mxu0 0
  %639 = vmatprep.subr.bf16.mxu0 0
  %640 = vmatpush1.bf16.msra.mxu0 0
  %641 = vmatprep.subr.bf16.mxu0 0
  %642 = vmatpush1.bf16.msra.mxu0 0
  %643 = vmatprep.subr.bf16.mxu0 0
  %644 = vmatpush1.bf16.msra.mxu0 0
  %645 = vmatprep.subr.bf16.mxu0 0
  %646 = vmatpush1.bf16.msra.mxu0 0
  %647 = vmatprep.subr.bf16.mxu0 0
  %648 = vmatpush1.bf16.msra.mxu0 0
  %649 = vmatprep.subr.bf16.mxu0 0
  %650 = vmatpush1.bf16.msra.mxu0 %v545
  %651 = vmatprep.subr.bf16.mxu0 0
  %652 = vmatpush2.bf16.msra.mxu0 0
  %653 = vmatprep.subr.bf16.mxu0 0
  %654 = vmatpush2.bf16.msra.mxu0 0
  %655 = vmatprep.subr.bf16.mxu0 0
  %656 = vmatpush2.bf16.msra.mxu0 0
  %657 = vmatprep.subr.bf16.mxu0 0
  %658 = vmatpush2.bf16.msra.mxu0 0
  %659 = vmatprep.subr.bf16.mxu0 0
  %660 = vmatpush2.bf16.msra.mxu0 0
  %661 = vmatprep.subr.bf16.mxu0 0
  %662 = vmatpush2.bf16.msra.mxu0 0
  %663 = vmatprep.subr.bf16.mxu0 0
  %664 = vmatpush2.bf16.msra.mxu0 0
  %665 = vmatprep.subr.bf16.mxu0 0
  %666 = vmatpush2.bf16.msra.mxu0 0
  %667 = vmatprep.mubr.bf16.mxu0 0
  %668 = vmatmul.mubr.bf16.gmra.mxu0 %v633
  %v669 = vpop.f32.mrf.mxu0
  %v670 = vadd.f32 %v627, %v669
  %v671 = vpop.f32.mrf.mxu0
  %v672 = vpop.f32.mrf.mxu0
  %v673 = vpop.f32.mrf.mxu0
  %674 = vdwg.mxu0
  %s675 = scalar_lea.vmem %s1, 20
  %v676 = vld [vmem:[%s675] sm:$0xf]
  %677 = vrot.lane.b32.xlu0 %v485, 120
  %v678 = vpop.permute.xlu0 %677
  %v680 = vsel %vm57, %v676, 0
  %v683 = vsel %vm61, %v678, 0
  %685 = vmatprep.subr.bf16.mxu0 0
  %686 = vmatpush1.bf16.msra.mxu0 0
  %687 = vmatprep.subr.bf16.mxu0 0
  %688 = vmatpush1.bf16.msra.mxu0 0
  %689 = vmatprep.subr.bf16.mxu0 0
  %690 = vmatpush1.bf16.msra.mxu0 0
  %691 = vmatprep.subr.bf16.mxu0 0
  %692 = vmatpush1.bf16.msra.mxu0 0
  %693 = vmatprep.subr.bf16.mxu0 0
  %694 = vmatpush1.bf16.msra.mxu0 0
  %695 = vmatprep.subr.bf16.mxu0 0
  %696 = vmatpush1.bf16.msra.mxu0 0
  %697 = vmatprep.subr.bf16.mxu0 0
  %698 = vmatpush1.bf16.msra.mxu0 0
  %699 = vmatprep.subr.bf16.mxu0 0
  %700 = vmatpush1.bf16.msra.mxu0 %v683
  %701 = vmatprep.subr.bf16.mxu0 0
  %702 = vmatpush2.bf16.msra.mxu0 0
  %703 = vmatprep.subr.bf16.mxu0 0
  %704 = vmatpush2.bf16.msra.mxu0 0
  %705 = vmatprep.subr.bf16.mxu0 0
  %706 = vmatpush2.bf16.msra.mxu0 0
  %707 = vmatprep.subr.bf16.mxu0 0
  %708 = vmatpush2.bf16.msra.mxu0 0
  %709 = vmatprep.subr.bf16.mxu0 0
  %710 = vmatpush2.bf16.msra.mxu0 0
  %711 = vmatprep.subr.bf16.mxu0 0
  %712 = vmatpush2.bf16.msra.mxu0 0
  %713 = vmatprep.subr.bf16.mxu0 0
  %714 = vmatpush2.bf16.msra.mxu0 0
  %715 = vmatprep.subr.bf16.mxu0 0
  %716 = vmatpush2.bf16.msra.mxu0 0
  %717 = vmatprep.mubr.bf16.mxu0 0
  %718 = vmatmul.mubr.bf16.gmra.mxu0 %v680
  %v719 = vpop.f32.mrf.mxu0
  %v720 = vadd.f32 0.0, %v719
  %v721 = vpop.f32.mrf.mxu0
  %v722 = vpop.f32.mrf.mxu0
  %v723 = vpop.f32.mrf.mxu0
  %724 = vdwg.mxu0
  %v725 = vadd.f32 %v582, %v720
  %s726 = scalar_lea.vmem %s2, 20
  %v727 = vld [vmem:[%s726] sm:$0xf]
  %v729 = vsel %vm57, %v727, 0
  %731 = vmatprep.subr.bf16.mxu0 0
  %732 = vmatpush1.bf16.msra.mxu0 0
  %733 = vmatprep.subr.bf16.mxu0 0
  %734 = vmatpush1.bf16.msra.mxu0 0
  %735 = vmatprep.subr.bf16.mxu0 0
  %736 = vmatpush1.bf16.msra.mxu0 0
  %737 = vmatprep.subr.bf16.mxu0 0
  %738 = vmatpush1.bf16.msra.mxu0 0
  %739 = vmatprep.subr.bf16.mxu0 0
  %740 = vmatpush1.bf16.msra.mxu0 0
  %741 = vmatprep.subr.bf16.mxu0 0
  %742 = vmatpush1.bf16.msra.mxu0 0
  %743 = vmatprep.subr.bf16.mxu0 0
  %744 = vmatpush1.bf16.msra.mxu0 0
  %745 = vmatprep.subr.bf16.mxu0 0
  %746 = vmatpush1.bf16.msra.mxu0 %v683
  %747 = vmatprep.subr.bf16.mxu0 0
  %748 = vmatpush2.bf16.msra.mxu0 0
  %749 = vmatprep.subr.bf16.mxu0 0
  %750 = vmatpush2.bf16.msra.mxu0 0
  %751 = vmatprep.subr.bf16.mxu0 0
  %752 = vmatpush2.bf16.msra.mxu0 0
  %753 = vmatprep.subr.bf16.mxu0 0
  %754 = vmatpush2.bf16.msra.mxu0 0
  %755 = vmatprep.subr.bf16.mxu0 0
  %756 = vmatpush2.bf16.msra.mxu0 0
  %757 = vmatprep.subr.bf16.mxu0 0
  %758 = vmatpush2.bf16.msra.mxu0 0
  %759 = vmatprep.subr.bf16.mxu0 0
  %760 = vmatpush2.bf16.msra.mxu0 0
  %761 = vmatprep.subr.bf16.mxu0 0
  %762 = vmatpush2.bf16.msra.mxu0 0
  %763 = vmatprep.mubr.bf16.mxu0 0
  %764 = vmatmul.mubr.bf16.gmra.mxu0 %v729
  %v765 = vpop.f32.mrf.mxu0
  %v766 = vadd.f32 0.0, %v765
  %v767 = vpop.f32.mrf.mxu0
  %v768 = vpop.f32.mrf.mxu0
  %v769 = vpop.f32.mrf.mxu0
  %770 = vdwg.mxu0
  %v771 = vadd.f32 %v670, %v766
  %s772 = scalar_lea.vmem %s3, 8
  %v773 = vld [vmem:[%s772] sm:$0xff]
  %775 = vset.pattern.permute.xlu0 0
  %776 = vperm.xlu0 %775, %v773
  %v777 = vpop.permute.xlu0 %776
  %v779 = vmul.f32 %v725, %v777
  %s780 = scalar_lea.vmem %s4, 8
  %v781 = vld [vmem:[%s780] sm:$0xff]
  %783 = vset.pattern.permute.xlu0 0
  %784 = vperm.xlu0 %783, %v781
  %v785 = vpop.permute.xlu0 %784
  %v787 = vadd.f32 %v779, %v785
  %s788 = scalar_lea.vmem %s5, 8
  %v789 = vld [vmem:[%s788] sm:$0xff]
  %791 = vset.pattern.permute.xlu0 0
  %792 = vperm.xlu0 %791, %v789
  %v793 = vpop.permute.xlu0 %792
  %v795 = vmul.f32 %v771, %v793
  %s796 = scalar_lea.vmem %s6, 8
  %v797 = vld [vmem:[%s796] sm:$0xff]
  %799 = vset.pattern.permute.xlu0 0
  %800 = vperm.xlu0 %799, %v797
  %v801 = vpop.permute.xlu0 %800
  %v803 = vadd.f32 %v795, %v801
  %v804 = vtanh.pop %v787
  %v805 = vxor.u32 %v803, 2147483648
  %v806 = vmul.f32 %v805, 1.442695
  %v807 = vpow.pop %v806
  %v808 = vadd.f32 %v807, 1.0
  %v809 = vrcp.pop %v808
  %v810 = vmul.f32 1.0, %v809
  %v811 = vmul.f32 %v804, %v810
  %v812 = vpack.c.bf16 %v811, %v811
  %s813 = scalar_lea.vmem %s7, 4
  %v814 = vld [vmem:[%s813] sm:$0xf]
  %s815 = scalar_lea.vmem %s8, 8
  %v816 = vld [vmem:[%s815] sm:$0xff]
  %818 = vset.pattern.permute.xlu0 0
  %819 = vperm.xlu0 %818, %v816
  %v820 = vpop.permute.xlu0 %819
  %v823 = vsel %vm57, %v814, 0
  %v826 = vsel %vm61, %v812, 0
  %828 = vmatprep.subr.bf16.mxu0 0
  %829 = vmatpush1.bf16.msra.mxu0 0
  %830 = vmatprep.subr.bf16.mxu0 0
  %831 = vmatpush1.bf16.msra.mxu0 0
  %832 = vmatprep.subr.bf16.mxu0 0
  %833 = vmatpush1.bf16.msra.mxu0 0
  %834 = vmatprep.subr.bf16.mxu0 0
  %835 = vmatpush1.bf16.msra.mxu0 0
  %836 = vmatprep.subr.bf16.mxu0 0
  %837 = vmatpush1.bf16.msra.mxu0 0
  %838 = vmatprep.subr.bf16.mxu0 0
  %839 = vmatpush1.bf16.msra.mxu0 0
  %840 = vmatprep.subr.bf16.mxu0 0
  %841 = vmatpush1.bf16.msra.mxu0 0
  %842 = vmatprep.subr.bf16.mxu0 0
  %843 = vmatpush1.bf16.msra.mxu0 %v826
  %844 = vmatprep.subr.bf16.mxu0 0
  %845 = vmatpush2.bf16.msra.mxu0 0
  %846 = vmatprep.subr.bf16.mxu0 0
  %847 = vmatpush2.bf16.msra.mxu0 0
  %848 = vmatprep.subr.bf16.mxu0 0
  %849 = vmatpush2.bf16.msra.mxu0 0
  %850 = vmatprep.subr.bf16.mxu0 0
  %851 = vmatpush2.bf16.msra.mxu0 0
  %852 = vmatprep.subr.bf16.mxu0 0
  %853 = vmatpush2.bf16.msra.mxu0 0
  %854 = vmatprep.subr.bf16.mxu0 0
  %855 = vmatpush2.bf16.msra.mxu0 0
  %856 = vmatprep.subr.bf16.mxu0 0
  %857 = vmatpush2.bf16.msra.mxu0 0
  %858 = vmatprep.subr.bf16.mxu0 0
  %859 = vmatpush2.bf16.msra.mxu0 0
  %860 = vmatprep.mubr.bf16.mxu0 0
  %861 = vmatmul.mubr.bf16.gmra.mxu0 %v823
  %v862 = vpop.f32.mrf.mxu0
  %v863 = vadd.f32 %v820, %v862
  %v864 = vpop.f32.mrf.mxu0
  %v865 = vpop.f32.mrf.mxu0
  %v866 = vpop.f32.mrf.mxu0
  %867 = vdwg.mxu0
  %869 = vrot.lane.b32.xlu0 %v863, 4
  %v870 = vpop.permute.xlu0 %869
  %v872 = vadd.f32 %v484, %v870
  %873 = vst.msk [vmem:[#allocation2] sm:$0xff] %vm46, %v872
  %s874 = scalar_lea.vmem %s9, 4
  %v875 = vld [vmem:[%s874] sm:$0xf]
  %v877 = vsel %vm57, %v875, 0
  %879 = vmatprep.subr.bf16.mxu0 0
  %880 = vmatpush1.bf16.msra.mxu0 0
  %881 = vmatprep.subr.bf16.mxu0 0
  %882 = vmatpush1.bf16.msra.mxu0 0
  %883 = vmatprep.subr.bf16.mxu0 0
  %884 = vmatpush1.bf16.msra.mxu0 0
  %885 = vmatprep.subr.bf16.mxu0 0
  %886 = vmatpush1.bf16.msra.mxu0 0
  %887 = vmatprep.subr.bf16.mxu0 0
  %888 = vmatpush1.bf16.msra.mxu0 0
  %889 = vmatprep.subr.bf16.mxu0 0
  %890 = vmatpush1.bf16.msra.mxu0 0
  %891 = vmatprep.subr.bf16.mxu0 0
  %892 = vmatpush1.bf16.msra.mxu0 0
  %893 = vmatprep.subr.bf16.mxu0 0
  %894 = vmatpush1.bf16.msra.mxu0 %v826
  %895 = vmatprep.subr.bf16.mxu0 0
  %896 = vmatpush2.bf16.msra.mxu0 0
  %897 = vmatprep.subr.bf16.mxu0 0
  %898 = vmatpush2.bf16.msra.mxu0 0
  %899 = vmatprep.subr.bf16.mxu0 0
  %900 = vmatpush2.bf16.msra.mxu0 0
  %901 = vmatprep.subr.bf16.mxu0 0
  %902 = vmatpush2.bf16.msra.mxu0 0
  %903 = vmatprep.subr.bf16.mxu0 0
  %904 = vmatpush2.bf16.msra.mxu0 0
  %905 = vmatprep.subr.bf16.mxu0 0
  %906 = vmatpush2.bf16.msra.mxu0 0
  %907 = vmatprep.subr.bf16.mxu0 0
  %908 = vmatpush2.bf16.msra.mxu0 0
  %909 = vmatprep.subr.bf16.mxu0 0
  %910 = vmatpush2.bf16.msra.mxu0 0
  %911 = vmatprep.mubr.bf16.mxu0 0
  %912 = vmatmul.mubr.bf16.gmra.mxu0 %v877
  %v913 = vpop.f32.mrf.mxu0
  %v914 = vadd.f32 0.0, %v913
  %v915 = vpop.f32.mrf.mxu0
  %v916 = vpop.f32.mrf.mxu0
  %v917 = vpop.f32.mrf.mxu0
  %918 = vdwg.mxu0
  %v919 = vadd.f32 %v479, %v914
  %s920 = scalar_lea.vmem %s10, 8
  %v921 = vld [vmem:[%s920] sm:$0xff]
  %923 = vset.pattern.permute.xlu0 0
  %924 = vperm.xlu0 %923, %v921
  %v925 = vpop.permute.xlu0 %924
  %v927 = vadd.f32 %v919, %v925
  %vm928 = vcmask 523264
  %929 = vst.msk [vmem:[%s11] sm:$0xff] %vm928, %v927
  // Predicated region
  $region46: #{_lambda_.7} parent=0 // pred_check
    _
  $region47: #{_lambda_.7} parent=0 // pred_check_branch
    %931 = sbr.rel (0) target = $region49
  $region48: #{_lambda_.7} parent=0 // pred_region
    _
  $region49: #{_lambda_.7} parent=0 // pred_fallthru
    _
  // Predicated region
  $region50: #{_lambda_.7} parent=0 // pred_check
    _
  $region51: #{_lambda_.7} parent=0 // pred_check_branch
    %933 = sbr.rel (0) target = $region53
  $region52: #{_lambda_.7} parent=0 // pred_region
    _
  $region53: #{_lambda_.7} parent=0 // pred_fallthru
    _

// kernel: _lambda_.8
$region0: #{_lambda_.8}
  #allocation0 [shape = 'u32[]', space=smem, size = 0x4, offset = 0x4, fixed_abs, tag = 'smem constant byte address 0x4 - core index']
  #allocation1 [shape = 'u32[144,128]{1,0:T(1,128)}', space=vmem, size = 0x12000, scoped, tag = 'internal scratch']
  #allocation2 [shape = 'f32[8,68]{1,0:T(8,128)}', space=vmem, size = 0x1000, scoped, tag = 'scratch operand']
  %s0 = inlined_call_operand.vmem [shape: f32[8,64], index: 0, kind: input, shape index: {}]
  %s1 = inlined_call_operand.vmem [shape: bf16[3,8,8], index: 1, kind: input, shape index: {}]
  %s2 = inlined_call_operand.vmem [shape: bf16[3,8,8], index: 2, kind: input, shape index: {}]
  %s3 = inlined_call_operand.vmem [shape: f32[8,1], index: 3, kind: input, shape index: {}]
  %s4 = inlined_call_operand.vmem [shape: f32[8,1], index: 4, kind: input, shape index: {}]
  %s5 = inlined_call_operand.vmem [shape: f32[8,1], index: 5, kind: input, shape index: {}]
  %s6 = inlined_call_operand.vmem [shape: f32[8,1], index: 6, kind: input, shape index: {}]
  %s7 = inlined_call_operand.vmem [shape: f32[8,64], index: 7, kind: output, shape index: {}]
  %s8 = sld [smem:[#allocation0]]
  $region38: #{_lambda_.8} parent=0
    _
  %s10 = ssub.s32 1, %s8
  %s11 = scalar_select 0, %s10, %s8
  // Predicated region
  $region2: #{_lambda_.8} parent=0 // pred_check
    _
  $region3: #{_lambda_.8} parent=0 // pred_check_branch
    %13 = sbr.rel (0) target = $region5
  $region4: #{_lambda_.8} parent=0 // pred_region
    _
  $region5: #{_lambda_.8} parent=0 // pred_fallthru
    _
  // Predicated region
  $region6: #{_lambda_.8} parent=0 // pred_check
    _
  $region7: #{_lambda_.8} parent=0 // pred_check_branch
    %15 = sbr.rel (0) target = $region9
  $region8: #{_lambda_.8} parent=0 // pred_region
    _
  $region9: #{_lambda_.8} parent=0 // pred_fallthru
    _
  // Predicated region
  $region10: #{_lambda_.8} parent=0 // pred_check
    _
  $region11: #{_lambda_.8} parent=0 // pred_check_branch
    %17 = sbr.rel (0) target = $region13
  $region12: #{_lambda_.8} parent=0 // pred_region
    _
  $region13: #{_lambda_.8} parent=0 // pred_fallthru
    _
  // Predicated region
  $region14: #{_lambda_.8} parent=0 // pred_check
    _
  $region15: #{_lambda_.8} parent=0 // pred_check_branch
    %19 = sbr.rel (0) target = $region17
  $region16: #{_lambda_.8} parent=0 // pred_region
    _
  $region17: #{_lambda_.8} parent=0 // pred_fallthru
    _
  // Predicated region
  $region18: #{_lambda_.8} parent=0 // pred_check
    _
  $region19: #{_lambda_.8} parent=0 // pred_check_branch
    %21 = sbr.rel (0) target = $region21
  $region20: #{_lambda_.8} parent=0 // pred_region
    _
  $region21: #{_lambda_.8} parent=0 // pred_fallthru
    _
  // Predicated region
  $region22: #{_lambda_.8} parent=0 // pred_check
    _
  $region23: #{_lambda_.8} parent=0 // pred_check_branch
    %23 = sbr.rel (0) target = $region25
  $region24: #{_lambda_.8} parent=0 // pred_region
    _
  $region25: #{_lambda_.8} parent=0 // pred_fallthru
    _
  // Predicated region
  $region26: #{_lambda_.8} parent=0 // pred_check
    _
  $region27: #{_lambda_.8} parent=0 // pred_check_branch
    %25 = sbr.rel (0) target = $region29
  $region28: #{_lambda_.8} parent=0 // pred_region
    _
  $region29: #{_lambda_.8} parent=0 // pred_fallthru
    _
  %vm27 = vcmask 556032
  %28 = vst.msk [vmem:[#allocation2] sm:$0xff] %vm27, 0.0
  %v29 = vld [vmem:[%s0] sm:$0xff]
  %31 = vrot.lane.b32.xlu0 %v29, 2
  %v32 = vpop.permute.xlu0 %31
  %vm34 = vcmask 539664
  %35 = vst.msk [vmem:[#allocation2] sm:$0xff] %vm34, %v32
  %v36 = vld [vmem:[#allocation2] sm:$0xff]
  %v37 = vpack.c.bf16 %v36, %v36
  %v38 = vld [vmem:[%s1] sm:$0xf]
  %v39 = vld [vmem:[%s2] sm:$0xf]
  %s40 = scalar_lea.vmem %s1, 4
  %v41 = vld [vmem:[%s40] sm:$0xf]
  %43 = vrot.lane.b32.xlu0 %v37, 126
  %v44 = vpop.permute.xlu0 %43
  %vm45 = vcmask 64512
  %v47 = vsel %vm45, %v41, 0
  %vm49 = vcmask 1043456
  %v51 = vsel %vm49, %v44, 0
  %53 = vmatprep.subr.bf16.mxu0 0
  %54 = vmatpush1.bf16.msra.mxu0 0
  %55 = vmatprep.subr.bf16.mxu0 0
  %56 = vmatpush1.bf16.msra.mxu0 0
  %57 = vmatprep.subr.bf16.mxu0 0
  %58 = vmatpush1.bf16.msra.mxu0 0
  %59 = vmatprep.subr.bf16.mxu0 0
  %60 = vmatpush1.bf16.msra.mxu0 0
  %61 = vmatprep.subr.bf16.mxu0 0
  %62 = vmatpush1.bf16.msra.mxu0 0
  %63 = vmatprep.subr.bf16.mxu0 0
  %64 = vmatpush1.bf16.msra.mxu0 0
  %65 = vmatprep.subr.bf16.mxu0 0
  %66 = vmatpush1.bf16.msra.mxu0 0
  %67 = vmatprep.subr.bf16.mxu0 0
  %68 = vmatpush1.bf16.msra.mxu0 %v51
  %69 = vmatprep.subr.bf16.mxu0 0
  %70 = vmatpush2.bf16.msra.mxu0 0
  %71 = vmatprep.subr.bf16.mxu0 0
  %72 = vmatpush2.bf16.msra.mxu0 0
  %73 = vmatprep.subr.bf16.mxu0 0
  %74 = vmatpush2.bf16.msra.mxu0 0
  %75 = vmatprep.subr.bf16.mxu0 0
  %76 = vmatpush2.bf16.msra.mxu0 0
  %77 = vmatprep.subr.bf16.mxu0 0
  %78 = vmatpush2.bf16.msra.mxu0 0
  %79 = vmatprep.subr.bf16.mxu0 0
  %80 = vmatpush2.bf16.msra.mxu0 0
  %81 = vmatprep.subr.bf16.mxu0 0
  %82 = vmatpush2.bf16.msra.mxu0 0
  %83 = vmatprep.subr.bf16.mxu0 0
  %84 = vmatpush2.bf16.msra.mxu0 0
  %85 = vmatprep.mubr.bf16.mxu0 0
  %86 = vmatmul.mubr.bf16.gmra.mxu0 %v47
  %v87 = vpop.f32.mrf.mxu0
  %v88 = vadd.f32 0.0, %v87
  %v89 = vpop.f32.mrf.mxu0
  %v90 = vpop.f32.mrf.mxu0
  %v91 = vpop.f32.mrf.mxu0
  %92 = vdwg.mxu0
  %v94 = vsel %vm45, %v38, 0
  %v97 = vsel %vm49, %v37, 0
  %99 = vmatprep.subr.bf16.mxu0 0
  %100 = vmatpush1.bf16.msra.mxu0 0
  %101 = vmatprep.subr.bf16.mxu0 0
  %102 = vmatpush1.bf16.msra.mxu0 0
  %103 = vmatprep.subr.bf16.mxu0 0
  %104 = vmatpush1.bf16.msra.mxu0 0
  %105 = vmatprep.subr.bf16.mxu0 0
  %106 = vmatpush1.bf16.msra.mxu0 0
  %107 = vmatprep.subr.bf16.mxu0 0
  %108 = vmatpush1.bf16.msra.mxu0 0
  %109 = vmatprep.subr.bf16.mxu0 0
  %110 = vmatpush1.bf16.msra.mxu0 0
  %111 = vmatprep.subr.bf16.mxu0 0
  %112 = vmatpush1.bf16.msra.mxu0 0
  %113 = vmatprep.subr.bf16.mxu0 0
  %114 = vmatpush1.bf16.msra.mxu0 %v97
  %115 = vmatprep.subr.bf16.mxu0 0
  %116 = vmatpush2.bf16.msra.mxu0 0
  %117 = vmatprep.subr.bf16.mxu0 0
  %118 = vmatpush2.bf16.msra.mxu0 0
  %119 = vmatprep.subr.bf16.mxu0 0
  %120 = vmatpush2.bf16.msra.mxu0 0
  %121 = vmatprep.subr.bf16.mxu0 0
  %122 = vmatpush2.bf16.msra.mxu0 0
  %123 = vmatprep.subr.bf16.mxu0 0
  %124 = vmatpush2.bf16.msra.mxu0 0
  %125 = vmatprep.subr.bf16.mxu0 0
  %126 = vmatpush2.bf16.msra.mxu0 0
  %127 = vmatprep.subr.bf16.mxu0 0
  %128 = vmatpush2.bf16.msra.mxu0 0
  %129 = vmatprep.subr.bf16.mxu0 0
  %130 = vmatpush2.bf16.msra.mxu0 0
  %131 = vmatprep.mubr.bf16.mxu0 0
  %132 = vmatmul.mubr.bf16.gmra.mxu0 %v94
  %v133 = vpop.f32.mrf.mxu0
  %v134 = vadd.f32 %v88, %v133
  %v135 = vpop.f32.mrf.mxu0
  %v136 = vpop.f32.mrf.mxu0
  %v137 = vpop.f32.mrf.mxu0
  %138 = vdwg.mxu0
  %s139 = scalar_lea.vmem %s2, 4
  %v140 = vld [vmem:[%s139] sm:$0xf]
  %v142 = vsel %vm45, %v140, 0
  %144 = vmatprep.subr.bf16.mxu0 0
  %145 = vmatpush1.bf16.msra.mxu0 0
  %146 = vmatprep.subr.bf16.mxu0 0
  %147 = vmatpush1.bf16.msra.mxu0 0
  %148 = vmatprep.subr.bf16.mxu0 0
  %149 = vmatpush1.bf16.msra.mxu0 0
  %150 = vmatprep.subr.bf16.mxu0 0
  %151 = vmatpush1.bf16.msra.mxu0 0
  %152 = vmatprep.subr.bf16.mxu0 0
  %153 = vmatpush1.bf16.msra.mxu0 0
  %154 = vmatprep.subr.bf16.mxu0 0
  %155 = vmatpush1.bf16.msra.mxu0 0
  %156 = vmatprep.subr.bf16.mxu0 0
  %157 = vmatpush1.bf16.msra.mxu0 0
  %158 = vmatprep.subr.bf16.mxu0 0
  %159 = vmatpush1.bf16.msra.mxu0 %v51
  %160 = vmatprep.subr.bf16.mxu0 0
  %161 = vmatpush2.bf16.msra.mxu0 0
  %162 = vmatprep.subr.bf16.mxu0 0
  %163 = vmatpush2.bf16.msra.mxu0 0
  %164 = vmatprep.subr.bf16.mxu0 0
  %165 = vmatpush2.bf16.msra.mxu0 0
  %166 = vmatprep.subr.bf16.mxu0 0
  %167 = vmatpush2.bf16.msra.mxu0 0
  %168 = vmatprep.subr.bf16.mxu0 0
  %169 = vmatpush2.bf16.msra.mxu0 0
  %170 = vmatprep.subr.bf16.mxu0 0
  %171 = vmatpush2.bf16.msra.mxu0 0
  %172 = vmatprep.subr.bf16.mxu0 0
  %173 = vmatpush2.bf16.msra.mxu0 0
  %174 = vmatprep.subr.bf16.mxu0 0
  %175 = vmatpush2.bf16.msra.mxu0 0
  %176 = vmatprep.mubr.bf16.mxu0 0
  %177 = vmatmul.mubr.bf16.gmra.mxu0 %v142
  %v178 = vpop.f32.mrf.mxu0
  %v179 = vadd.f32 0.0, %v178
  %v180 = vpop.f32.mrf.mxu0
  %v181 = vpop.f32.mrf.mxu0
  %v182 = vpop.f32.mrf.mxu0
  %183 = vdwg.mxu0
  %v185 = vsel %vm45, %v39, 0
  %187 = vmatprep.subr.bf16.mxu0 0
  %188 = vmatpush1.bf16.msra.mxu0 0
  %189 = vmatprep.subr.bf16.mxu0 0
  %190 = vmatpush1.bf16.msra.mxu0 0
  %191 = vmatprep.subr.bf16.mxu0 0
  %192 = vmatpush1.bf16.msra.mxu0 0
  %193 = vmatprep.subr.bf16.mxu0 0
  %194 = vmatpush1.bf16.msra.mxu0 0
  %195 = vmatprep.subr.bf16.mxu0 0
  %196 = vmatpush1.bf16.msra.mxu0 0
  %197 = vmatprep.subr.bf16.mxu0 0
  %198 = vmatpush1.bf16.msra.mxu0 0
  %199 = vmatprep.subr.bf16.mxu0 0
  %200 = vmatpush1.bf16.msra.mxu0 0
  %201 = vmatprep.subr.bf16.mxu0 0
  %202 = vmatpush1.bf16.msra.mxu0 %v97
  %203 = vmatprep.subr.bf16.mxu0 0
  %204 = vmatpush2.bf16.msra.mxu0 0
  %205 = vmatprep.subr.bf16.mxu0 0
  %206 = vmatpush2.bf16.msra.mxu0 0
  %207 = vmatprep.subr.bf16.mxu0 0
  %208 = vmatpush2.bf16.msra.mxu0 0
  %209 = vmatprep.subr.bf16.mxu0 0
  %210 = vmatpush2.bf16.msra.mxu0 0
  %211 = vmatprep.subr.bf16.mxu0 0
  %212 = vmatpush2.bf16.msra.mxu0 0
  %213 = vmatprep.subr.bf16.mxu0 0
  %214 = vmatpush2.bf16.msra.mxu0 0
  %215 = vmatprep.subr.bf16.mxu0 0
  %216 = vmatpush2.bf16.msra.mxu0 0
  %217 = vmatprep.subr.bf16.mxu0 0
  %218 = vmatpush2.bf16.msra.mxu0 0
  %219 = vmatprep.mubr.bf16.mxu0 0
  %220 = vmatmul.mubr.bf16.gmra.mxu0 %v185
  %v221 = vpop.f32.mrf.mxu0
  %v222 = vadd.f32 %v179, %v221
  %v223 = vpop.f32.mrf.mxu0
  %v224 = vpop.f32.mrf.mxu0
  %v225 = vpop.f32.mrf.mxu0
  %226 = vdwg.mxu0
  %s227 = scalar_lea.vmem %s1, 8
  %v228 = vld [vmem:[%s227] sm:$0xf]
  %229 = vrot.lane.b32.xlu0 %v37, 124
  %v230 = vpop.permute.xlu0 %229
  %v232 = vsel %vm45, %v228, 0
  %v235 = vsel %vm49, %v230, 0
  %237 = vmatprep.subr.bf16.mxu0 0
  %238 = vmatpush1.bf16.msra.mxu0 0
  %239 = vmatprep.subr.bf16.mxu0 0
  %240 = vmatpush1.bf16.msra.mxu0 0
  %241 = vmatprep.subr.bf16.mxu0 0
  %242 = vmatpush1.bf16.msra.mxu0 0
  %243 = vmatprep.subr.bf16.mxu0 0
  %244 = vmatpush1.bf16.msra.mxu0 0
  %245 = vmatprep.subr.bf16.mxu0 0
  %246 = vmatpush1.bf16.msra.mxu0 0
  %247 = vmatprep.subr.bf16.mxu0 0
  %248 = vmatpush1.bf16.msra.mxu0 0
  %249 = vmatprep.subr.bf16.mxu0 0
  %250 = vmatpush1.bf16.msra.mxu0 0
  %251 = vmatprep.subr.bf16.mxu0 0
  %252 = vmatpush1.bf16.msra.mxu0 %v235
  %253 = vmatprep.subr.bf16.mxu0 0
  %254 = vmatpush2.bf16.msra.mxu0 0
  %255 = vmatprep.subr.bf16.mxu0 0
  %256 = vmatpush2.bf16.msra.mxu0 0
  %257 = vmatprep.subr.bf16.mxu0 0
  %258 = vmatpush2.bf16.msra.mxu0 0
  %259 = vmatprep.subr.bf16.mxu0 0
  %260 = vmatpush2.bf16.msra.mxu0 0
  %261 = vmatprep.subr.bf16.mxu0 0
  %262 = vmatpush2.bf16.msra.mxu0 0
  %263 = vmatprep.subr.bf16.mxu0 0
  %264 = vmatpush2.bf16.msra.mxu0 0
  %265 = vmatprep.subr.bf16.mxu0 0
  %266 = vmatpush2.bf16.msra.mxu0 0
  %267 = vmatprep.subr.bf16.mxu0 0
  %268 = vmatpush2.bf16.msra.mxu0 0
  %269 = vmatprep.mubr.bf16.mxu0 0
  %270 = vmatmul.mubr.bf16.gmra.mxu0 %v232
  %v271 = vpop.f32.mrf.mxu0
  %v272 = vadd.f32 0.0, %v271
  %v273 = vpop.f32.mrf.mxu0
  %v274 = vpop.f32.mrf.mxu0
  %v275 = vpop.f32.mrf.mxu0
  %276 = vdwg.mxu0
  %v277 = vadd.f32 %v134, %v272
  %s278 = scalar_lea.vmem %s2, 8
  %v279 = vld [vmem:[%s278] sm:$0xf]
  %v281 = vsel %vm45, %v279, 0
  %283 = vmatprep.subr.bf16.mxu0 0
  %284 = vmatpush1.bf16.msra.mxu0 0
  %285 = vmatprep.subr.bf16.mxu0 0
  %286 = vmatpush1.bf16.msra.mxu0 0
  %287 = vmatprep.subr.bf16.mxu0 0
  %288 = vmatpush1.bf16.msra.mxu0 0
  %289 = vmatprep.subr.bf16.mxu0 0
  %290 = vmatpush1.bf16.msra.mxu0 0
  %291 = vmatprep.subr.bf16.mxu0 0
  %292 = vmatpush1.bf16.msra.mxu0 0
  %293 = vmatprep.subr.bf16.mxu0 0
  %294 = vmatpush1.bf16.msra.mxu0 0
  %295 = vmatprep.subr.bf16.mxu0 0
  %296 = vmatpush1.bf16.msra.mxu0 0
  %297 = vmatprep.subr.bf16.mxu0 0
  %298 = vmatpush1.bf16.msra.mxu0 %v235
  %299 = vmatprep.subr.bf16.mxu0 0
  %300 = vmatpush2.bf16.msra.mxu0 0
  %301 = vmatprep.subr.bf16.mxu0 0
  %302 = vmatpush2.bf16.msra.mxu0 0
  %303 = vmatprep.subr.bf16.mxu0 0
  %304 = vmatpush2.bf16.msra.mxu0 0
  %305 = vmatprep.subr.bf16.mxu0 0
  %306 = vmatpush2.bf16.msra.mxu0 0
  %307 = vmatprep.subr.bf16.mxu0 0
  %308 = vmatpush2.bf16.msra.mxu0 0
  %309 = vmatprep.subr.bf16.mxu0 0
  %310 = vmatpush2.bf16.msra.mxu0 0
  %311 = vmatprep.subr.bf16.mxu0 0
  %312 = vmatpush2.bf16.msra.mxu0 0
  %313 = vmatprep.subr.bf16.mxu0 0
  %314 = vmatpush2.bf16.msra.mxu0 0
  %315 = vmatprep.mubr.bf16.mxu0 0
  %316 = vmatmul.mubr.bf16.gmra.mxu0 %v281
  %v317 = vpop.f32.mrf.mxu0
  %v318 = vadd.f32 0.0, %v317
  %v319 = vpop.f32.mrf.mxu0
  %v320 = vpop.f32.mrf.mxu0
  %v321 = vpop.f32.mrf.mxu0
  %322 = vdwg.mxu0
  %v323 = vadd.f32 %v222, %v318
  %v324 = vld [vmem:[%s3] sm:$0xff]
  %326 = vset.pattern.permute.xlu0 0
  %327 = vperm.xlu0 %326, %v324
  %v328 = vpop.permute.xlu0 %327
  %v330 = vmul.f32 %v277, %v328
  %v331 = vld [vmem:[%s4] sm:$0xff]
  %333 = vset.pattern.permute.xlu0 0
  %334 = vperm.xlu0 %333, %v331
  %v335 = vpop.permute.xlu0 %334
  %v337 = vadd.f32 %v330, %v335
  %v338 = vld [vmem:[%s5] sm:$0xff]
  %340 = vset.pattern.permute.xlu0 0
  %341 = vperm.xlu0 %340, %v338
  %v342 = vpop.permute.xlu0 %341
  %v344 = vmul.f32 %v323, %v342
  %v345 = vld [vmem:[%s6] sm:$0xff]
  %347 = vset.pattern.permute.xlu0 0
  %348 = vperm.xlu0 %347, %v345
  %v349 = vpop.permute.xlu0 %348
  %v351 = vadd.f32 %v344, %v349
  %v352 = vxor.u32 %v351, 2147483648
  %v353 = vmul.f32 %v352, 1.442695
  %v354 = vpow.pop %v353
  %v355 = vadd.f32 %v354, 1.0
  %v356 = vrcp.pop %v355
  %v357 = vmul.f32 1.0, %v356
  %v358 = vmul.f32 %v337, %v357
  %vm359 = vcmask 523264
  %360 = vst.msk [vmem:[%s7] sm:$0xff] %vm359, %v358
  // Predicated region
  $region30: #{_lambda_.8} parent=0 // pred_check
    _
  $region31: #{_lambda_.8} parent=0 // pred_check_branch
    %362 = sbr.rel (0) target = $region33
  $region32: #{_lambda_.8} parent=0 // pred_region
    _
  $region33: #{_lambda_.8} parent=0 // pred_fallthru
    _
  // Predicated region
  $region34: #{_lambda_.8} parent=0 // pred_check
    _
  $region35: #{_lambda_.8} parent=0 // pred_check_branch
    %364 = sbr.rel (0) target = $region37
  $region36: #{_lambda_.8} parent=0 // pred_region
    _
  $region37: #{_lambda_.8} parent=0 // pred_fallthru
    _

// kernel: _lambda_.9
$region0: #{_lambda_.9}
  #allocation0 [shape = 'u32[]', space=smem, size = 0x4, offset = 0x4, fixed_abs, tag = 'smem constant byte address 0x4 - core index']
  #allocation1 [shape = 'u32[144,128]{1,0:T(1,128)}', space=vmem, size = 0x12000, scoped, tag = 'internal scratch']
  #allocation2 [shape = 'f32[8,92]{1,0:T(8,128)}', space=vmem, size = 0x1000, scoped, tag = 'scratch operand']
  %s0 = inlined_call_operand.vmem [shape: f32[8,64], index: 0, kind: input, shape index: {}]
  %s1 = inlined_call_operand.vmem [shape: bf16[15,4,8], index: 1, kind: input, shape index: {}]
  %s2 = inlined_call_operand.vmem [shape: f32[4,1], index: 2, kind: input, shape index: {}]
  %s3 = inlined_call_operand.vmem [shape: f32[4,1], index: 3, kind: input, shape index: {}]
  %s4 = inlined_call_operand.vmem [shape: f32[4,64], index: 4, kind: output, shape index: {}]
  %s5 = sld [smem:[#allocation0]]
  $region26: #{_lambda_.9} parent=0
    _
  %s7 = ssub.s32 1, %s5
  %s8 = scalar_select 0, %s7, %s5
  // Predicated region
  $region2: #{_lambda_.9} parent=0 // pred_check
    _
  $region3: #{_lambda_.9} parent=0 // pred_check_branch
    %10 = sbr.rel (0) target = $region5
  $region4: #{_lambda_.9} parent=0 // pred_region
    _
  $region5: #{_lambda_.9} parent=0 // pred_fallthru
    _
  // Predicated region
  $region6: #{_lambda_.9} parent=0 // pred_check
    _
  $region7: #{_lambda_.9} parent=0 // pred_check_branch
    %12 = sbr.rel (0) target = $region9
  $region8: #{_lambda_.9} parent=0 // pred_region
    _
  $region9: #{_lambda_.9} parent=0 // pred_fallthru
    _
  // Predicated region
  $region10: #{_lambda_.9} parent=0 // pred_check
    _
  $region11: #{_lambda_.9} parent=0 // pred_check_branch
    %14 = sbr.rel (0) target = $region13
  $region12: #{_lambda_.9} parent=0 // pred_region
    _
  $region13: #{_lambda_.9} parent=0 // pred_fallthru
    _
  // Predicated region
  $region14: #{_lambda_.9} parent=0 // pred_check
    _
  $region15: #{_lambda_.9} parent=0 // pred_check_branch
    %16 = sbr.rel (0) target = $region17
  $region16: #{_lambda_.9} parent=0 // pred_region
    _
  $region17: #{_lambda_.9} parent=0 // pred_fallthru
    _
  %vm18 = vcmask 752640
  %19 = vst.msk [vmem:[#allocation2] sm:$0xff] %vm18, 0.0
  %v20 = vld [vmem:[%s0] sm:$0xff]
  %22 = vrot.lane.b32.xlu0 %v20, 14
  %v23 = vpop.permute.xlu0 %22
  %vm25 = vcmask 638064
  %26 = vst.msk [vmem:[#allocation2] sm:$0xff] %vm25, %v23
  %v27 = vld [vmem:[#allocation2] sm:$0xff]
  %v28 = vpack.c.bf16 %v27, %v27
  %v29 = vld [vmem:[%s1] sm:$0x3]
  %s30 = scalar_lea.vmem %s1, 2
  %v31 = vld [vmem:[%s30] sm:$0x3]
  %33 = vrot.lane.b32.xlu0 %v28, 126
  %v34 = vpop.permute.xlu0 %33
  %vm35 = vcmask 64512
  %v37 = vsel %vm35, %v31, 0
  %vm39 = vcmask 1043456
  %v41 = vsel %vm39, %v34, 0
  %43 = vmatprep.subr.bf16.mxu0 0
  %44 = vmatpush1.bf16.msra.mxu0 0
  %45 = vmatprep.subr.bf16.mxu0 0
  %46 = vmatpush1.bf16.msra.mxu0 0
  %47 = vmatprep.subr.bf16.mxu0 0
  %48 = vmatpush1.bf16.msra.mxu0 0
  %49 = vmatprep.subr.bf16.mxu0 0
  %50 = vmatpush1.bf16.msra.mxu0 0
  %51 = vmatprep.subr.bf16.mxu0 0
  %52 = vmatpush1.bf16.msra.mxu0 0
  %53 = vmatprep.subr.bf16.mxu0 0
  %54 = vmatpush1.bf16.msra.mxu0 0
  %55 = vmatprep.subr.bf16.mxu0 0
  %56 = vmatpush1.bf16.msra.mxu0 0
  %57 = vmatprep.subr.bf16.mxu0 0
  %58 = vmatpush1.bf16.msra.mxu0 %v41
  %59 = vmatprep.subr.bf16.mxu0 0
  %60 = vmatpush2.bf16.msra.mxu0 0
  %61 = vmatprep.subr.bf16.mxu0 0
  %62 = vmatpush2.bf16.msra.mxu0 0
  %63 = vmatprep.subr.bf16.mxu0 0
  %64 = vmatpush2.bf16.msra.mxu0 0
  %65 = vmatprep.subr.bf16.mxu0 0
  %66 = vmatpush2.bf16.msra.mxu0 0
  %67 = vmatprep.subr.bf16.mxu0 0
  %68 = vmatpush2.bf16.msra.mxu0 0
  %69 = vmatprep.subr.bf16.mxu0 0
  %70 = vmatpush2.bf16.msra.mxu0 0
  %71 = vmatprep.subr.bf16.mxu0 0
  %72 = vmatpush2.bf16.msra.mxu0 0
  %73 = vmatprep.subr.bf16.mxu0 0
  %74 = vmatpush2.bf16.msra.mxu0 0
  %75 = vmatprep.mubr.bf16.mxu0 0
  %76 = vmatmul.mubr.bf16.gmra.mxu0 %v37
  %v77 = vpop.f32.mrf.mxu0
  %v78 = vadd.f32 0.0, %v77
  %v79 = vpop.f32.mrf.mxu0
  %v80 = vpop.f32.mrf.mxu0
  %v81 = vpop.f32.mrf.mxu0
  %82 = vdwg.mxu0
  %v84 = vsel %vm35, %v29, 0
  %v87 = vsel %vm39, %v28, 0
  %89 = vmatprep.subr.bf16.mxu0 0
  %90 = vmatpush1.bf16.msra.mxu0 0
  %91 = vmatprep.subr.bf16.mxu0 0
  %92 = vmatpush1.bf16.msra.mxu0 0
  %93 = vmatprep.subr.bf16.mxu0 0
  %94 = vmatpush1.bf16.msra.mxu0 0
  %95 = vmatprep.subr.bf16.mxu0 0
  %96 = vmatpush1.bf16.msra.mxu0 0
  %97 = vmatprep.subr.bf16.mxu0 0
  %98 = vmatpush1.bf16.msra.mxu0 0
  %99 = vmatprep.subr.bf16.mxu0 0
  %100 = vmatpush1.bf16.msra.mxu0 0
  %101 = vmatprep.subr.bf16.mxu0 0
  %102 = vmatpush1.bf16.msra.mxu0 0
  %103 = vmatprep.subr.bf16.mxu0 0
  %104 = vmatpush1.bf16.msra.mxu0 %v87
  %105 = vmatprep.subr.bf16.mxu0 0
  %106 = vmatpush2.bf16.msra.mxu0 0
  %107 = vmatprep.subr.bf16.mxu0 0
  %108 = vmatpush2.bf16.msra.mxu0 0
  %109 = vmatprep.subr.bf16.mxu0 0
  %110 = vmatpush2.bf16.msra.mxu0 0
  %111 = vmatprep.subr.bf16.mxu0 0
  %112 = vmatpush2.bf16.msra.mxu0 0
  %113 = vmatprep.subr.bf16.mxu0 0
  %114 = vmatpush2.bf16.msra.mxu0 0
  %115 = vmatprep.subr.bf16.mxu0 0
  %116 = vmatpush2.bf16.msra.mxu0 0
  %117 = vmatprep.subr.bf16.mxu0 0
  %118 = vmatpush2.bf16.msra.mxu0 0
  %119 = vmatprep.subr.bf16.mxu0 0
  %120 = vmatpush2.bf16.msra.mxu0 0
  %121 = vmatprep.mubr.bf16.mxu0 0
  %122 = vmatmul.mubr.bf16.gmra.mxu0 %v84
  %v123 = vpop.f32.mrf.mxu0
  %v124 = vadd.f32 %v78, %v123
  %v125 = vpop.f32.mrf.mxu0
  %v126 = vpop.f32.mrf.mxu0
  %v127 = vpop.f32.mrf.mxu0
  %128 = vdwg.mxu0
  %s129 = scalar_lea.vmem %s1, 4
  %v130 = vld [vmem:[%s129] sm:$0x3]
  %131 = vrot.lane.b32.xlu0 %v28, 124
  %v132 = vpop.permute.xlu0 %131
  %v134 = vsel %vm35, %v130, 0
  %v137 = vsel %vm39, %v132, 0
  %139 = vmatprep.subr.bf16.mxu0 0
  %140 = vmatpush1.bf16.msra.mxu0 0
  %141 = vmatprep.subr.bf16.mxu0 0
  %142 = vmatpush1.bf16.msra.mxu0 0
  %143 = vmatprep.subr.bf16.mxu0 0
  %144 = vmatpush1.bf16.msra.mxu0 0
  %145 = vmatprep.subr.bf16.mxu0 0
  %146 = vmatpush1.bf16.msra.mxu0 0
  %147 = vmatprep.subr.bf16.mxu0 0
  %148 = vmatpush1.bf16.msra.mxu0 0
  %149 = vmatprep.subr.bf16.mxu0 0
  %150 = vmatpush1.bf16.msra.mxu0 0
  %151 = vmatprep.subr.bf16.mxu0 0
  %152 = vmatpush1.bf16.msra.mxu0 0
  %153 = vmatprep.subr.bf16.mxu0 0
  %154 = vmatpush1.bf16.msra.mxu0 %v137
  %155 = vmatprep.subr.bf16.mxu0 0
  %156 = vmatpush2.bf16.msra.mxu0 0
  %157 = vmatprep.subr.bf16.mxu0 0
  %158 = vmatpush2.bf16.msra.mxu0 0
  %159 = vmatprep.subr.bf16.mxu0 0
  %160 = vmatpush2.bf16.msra.mxu0 0
  %161 = vmatprep.subr.bf16.mxu0 0
  %162 = vmatpush2.bf16.msra.mxu0 0
  %163 = vmatprep.subr.bf16.mxu0 0
  %164 = vmatpush2.bf16.msra.mxu0 0
  %165 = vmatprep.subr.bf16.mxu0 0
  %166 = vmatpush2.bf16.msra.mxu0 0
  %167 = vmatprep.subr.bf16.mxu0 0
  %168 = vmatpush2.bf16.msra.mxu0 0
  %169 = vmatprep.subr.bf16.mxu0 0
  %170 = vmatpush2.bf16.msra.mxu0 0
  %171 = vmatprep.mubr.bf16.mxu0 0
  %172 = vmatmul.mubr.bf16.gmra.mxu0 %v134
  %v173 = vpop.f32.mrf.mxu0
  %v174 = vadd.f32 0.0, %v173
  %v175 = vpop.f32.mrf.mxu0
  %v176 = vpop.f32.mrf.mxu0
  %v177 = vpop.f32.mrf.mxu0
  %178 = vdwg.mxu0
  %v179 = vadd.f32 %v124, %v174
  %s180 = scalar_lea.vmem %s1, 6
  %v181 = vld [vmem:[%s180] sm:$0x3]
  %182 = vrot.lane.b32.xlu0 %v28, 122
  %v183 = vpop.permute.xlu0 %182
  %v185 = vsel %vm35, %v181, 0
  %v188 = vsel %vm39, %v183, 0
  %190 = vmatprep.subr.bf16.mxu0 0
  %191 = vmatpush1.bf16.msra.mxu0 0
  %192 = vmatprep.subr.bf16.mxu0 0
  %193 = vmatpush1.bf16.msra.mxu0 0
  %194 = vmatprep.subr.bf16.mxu0 0
  %195 = vmatpush1.bf16.msra.mxu0 0
  %196 = vmatprep.subr.bf16.mxu0 0
  %197 = vmatpush1.bf16.msra.mxu0 0
  %198 = vmatprep.subr.bf16.mxu0 0
  %199 = vmatpush1.bf16.msra.mxu0 0
  %200 = vmatprep.subr.bf16.mxu0 0
  %201 = vmatpush1.bf16.msra.mxu0 0
  %202 = vmatprep.subr.bf16.mxu0 0
  %203 = vmatpush1.bf16.msra.mxu0 0
  %204 = vmatprep.subr.bf16.mxu0 0
  %205 = vmatpush1.bf16.msra.mxu0 %v188
  %206 = vmatprep.subr.bf16.mxu0 0
  %207 = vmatpush2.bf16.msra.mxu0 0
  %208 = vmatprep.subr.bf16.mxu0 0
  %209 = vmatpush2.bf16.msra.mxu0 0
  %210 = vmatprep.subr.bf16.mxu0 0
  %211 = vmatpush2.bf16.msra.mxu0 0
  %212 = vmatprep.subr.bf16.mxu0 0
  %213 = vmatpush2.bf16.msra.mxu0 0
  %214 = vmatprep.subr.bf16.mxu0 0
  %215 = vmatpush2.bf16.msra.mxu0 0
  %216 = vmatprep.subr.bf16.mxu0 0
  %217 = vmatpush2.bf16.msra.mxu0 0
  %218 = vmatprep.subr.bf16.mxu0 0
  %219 = vmatpush2.bf16.msra.mxu0 0
  %220 = vmatprep.subr.bf16.mxu0 0
  %221 = vmatpush2.bf16.msra.mxu0 0
  %222 = vmatprep.mubr.bf16.mxu0 0
  %223 = vmatmul.mubr.bf16.gmra.mxu0 %v185
  %v224 = vpop.f32.mrf.mxu0
  %v225 = vadd.f32 0.0, %v224
  %v226 = vpop.f32.mrf.mxu0
  %v227 = vpop.f32.mrf.mxu0
  %v228 = vpop.f32.mrf.mxu0
  %229 = vdwg.mxu0
  %v230 = vadd.f32 %v179, %v225
  %s231 = scalar_lea.vmem %s1, 8
  %v232 = vld [vmem:[%s231] sm:$0x3]
  %233 = vrot.lane.b32.xlu0 %v28, 120
  %v234 = vpop.permute.xlu0 %233
  %v236 = vsel %vm35, %v232, 0
  %v239 = vsel %vm39, %v234, 0
  %241 = vmatprep.subr.bf16.mxu0 0
  %242 = vmatpush1.bf16.msra.mxu0 0
  %243 = vmatprep.subr.bf16.mxu0 0
  %244 = vmatpush1.bf16.msra.mxu0 0
  %245 = vmatprep.subr.bf16.mxu0 0
  %246 = vmatpush1.bf16.msra.mxu0 0
  %247 = vmatprep.subr.bf16.mxu0 0
  %248 = vmatpush1.bf16.msra.mxu0 0
  %249 = vmatprep.subr.bf16.mxu0 0
  %250 = vmatpush1.bf16.msra.mxu0 0
  %251 = vmatprep.subr.bf16.mxu0 0
  %252 = vmatpush1.bf16.msra.mxu0 0
  %253 = vmatprep.subr.bf16.mxu0 0
  %254 = vmatpush1.bf16.msra.mxu0 0
  %255 = vmatprep.subr.bf16.mxu0 0
  %256 = vmatpush1.bf16.msra.mxu0 %v239
  %257 = vmatprep.subr.bf16.mxu0 0
  %258 = vmatpush2.bf16.msra.mxu0 0
  %259 = vmatprep.subr.bf16.mxu0 0
  %260 = vmatpush2.bf16.msra.mxu0 0
  %261 = vmatprep.subr.bf16.mxu0 0
  %262 = vmatpush2.bf16.msra.mxu0 0
  %263 = vmatprep.subr.bf16.mxu0 0
  %264 = vmatpush2.bf16.msra.mxu0 0
  %265 = vmatprep.subr.bf16.mxu0 0
  %266 = vmatpush2.bf16.msra.mxu0 0
  %267 = vmatprep.subr.bf16.mxu0 0
  %268 = vmatpush2.bf16.msra.mxu0 0
  %269 = vmatprep.subr.bf16.mxu0 0
  %270 = vmatpush2.bf16.msra.mxu0 0
  %271 = vmatprep.subr.bf16.mxu0 0
  %272 = vmatpush2.bf16.msra.mxu0 0
  %273 = vmatprep.mubr.bf16.mxu0 0
  %274 = vmatmul.mubr.bf16.gmra.mxu0 %v236
  %v275 = vpop.f32.mrf.mxu0
  %v276 = vadd.f32 0.0, %v275
  %v277 = vpop.f32.mrf.mxu0
  %v278 = vpop.f32.mrf.mxu0
  %v279 = vpop.f32.mrf.mxu0
  %280 = vdwg.mxu0
  %v281 = vadd.f32 %v230, %v276
  %s282 = scalar_lea.vmem %s1, 10
  %v283 = vld [vmem:[%s282] sm:$0x3]
  %284 = vrot.lane.b32.xlu0 %v28, 118
  %v285 = vpop.permute.xlu0 %284
  %v287 = vsel %vm35, %v283, 0
  %v290 = vsel %vm39, %v285, 0
  %292 = vmatprep.subr.bf16.mxu0 0
  %293 = vmatpush1.bf16.msra.mxu0 0
  %294 = vmatprep.subr.bf16.mxu0 0
  %295 = vmatpush1.bf16.msra.mxu0 0
  %296 = vmatprep.subr.bf16.mxu0 0
  %297 = vmatpush1.bf16.msra.mxu0 0
  %298 = vmatprep.subr.bf16.mxu0 0
  %299 = vmatpush1.bf16.msra.mxu0 0
  %300 = vmatprep.subr.bf16.mxu0 0
  %301 = vmatpush1.bf16.msra.mxu0 0
  %302 = vmatprep.subr.bf16.mxu0 0
  %303 = vmatpush1.bf16.msra.mxu0 0
  %304 = vmatprep.subr.bf16.mxu0 0
  %305 = vmatpush1.bf16.msra.mxu0 0
  %306 = vmatprep.subr.bf16.mxu0 0
  %307 = vmatpush1.bf16.msra.mxu0 %v290
  %308 = vmatprep.subr.bf16.mxu0 0
  %309 = vmatpush2.bf16.msra.mxu0 0
  %310 = vmatprep.subr.bf16.mxu0 0
  %311 = vmatpush2.bf16.msra.mxu0 0
  %312 = vmatprep.subr.bf16.mxu0 0
  %313 = vmatpush2.bf16.msra.mxu0 0
  %314 = vmatprep.subr.bf16.mxu0 0
  %315 = vmatpush2.bf16.msra.mxu0 0
  %316 = vmatprep.subr.bf16.mxu0 0
  %317 = vmatpush2.bf16.msra.mxu0 0
  %318 = vmatprep.subr.bf16.mxu0 0
  %319 = vmatpush2.bf16.msra.mxu0 0
  %320 = vmatprep.subr.bf16.mxu0 0
  %321 = vmatpush2.bf16.msra.mxu0 0
  %322 = vmatprep.subr.bf16.mxu0 0
  %323 = vmatpush2.bf16.msra.mxu0 0
  %324 = vmatprep.mubr.bf16.mxu0 0
  %325 = vmatmul.mubr.bf16.gmra.mxu0 %v287
  %v326 = vpop.f32.mrf.mxu0
  %v327 = vadd.f32 0.0, %v326
  %v328 = vpop.f32.mrf.mxu0
  %v329 = vpop.f32.mrf.mxu0
  %v330 = vpop.f32.mrf.mxu0
  %331 = vdwg.mxu0
  %v332 = vadd.f32 %v281, %v327
  %s333 = scalar_lea.vmem %s1, 12
  %v334 = vld [vmem:[%s333] sm:$0x3]
  %335 = vrot.lane.b32.xlu0 %v28, 116
  %v336 = vpop.permute.xlu0 %335
  %v338 = vsel %vm35, %v334, 0
  %v341 = vsel %vm39, %v336, 0
  %343 = vmatprep.subr.bf16.mxu0 0
  %344 = vmatpush1.bf16.msra.mxu0 0
  %345 = vmatprep.subr.bf16.mxu0 0
  %346 = vmatpush1.bf16.msra.mxu0 0
  %347 = vmatprep.subr.bf16.mxu0 0
  %348 = vmatpush1.bf16.msra.mxu0 0
  %349 = vmatprep.subr.bf16.mxu0 0
  %350 = vmatpush1.bf16.msra.mxu0 0
  %351 = vmatprep.subr.bf16.mxu0 0
  %352 = vmatpush1.bf16.msra.mxu0 0
  %353 = vmatprep.subr.bf16.mxu0 0
  %354 = vmatpush1.bf16.msra.mxu0 0
  %355 = vmatprep.subr.bf16.mxu0 0
  %356 = vmatpush1.bf16.msra.mxu0 0
  %357 = vmatprep.subr.bf16.mxu0 0
  %358 = vmatpush1.bf16.msra.mxu0 %v341
  %359 = vmatprep.subr.bf16.mxu0 0
  %360 = vmatpush2.bf16.msra.mxu0 0
  %361 = vmatprep.subr.bf16.mxu0 0
  %362 = vmatpush2.bf16.msra.mxu0 0
  %363 = vmatprep.subr.bf16.mxu0 0
  %364 = vmatpush2.bf16.msra.mxu0 0
  %365 = vmatprep.subr.bf16.mxu0 0
  %366 = vmatpush2.bf16.msra.mxu0 0
  %367 = vmatprep.subr.bf16.mxu0 0
  %368 = vmatpush2.bf16.msra.mxu0 0
  %369 = vmatprep.subr.bf16.mxu0 0
  %370 = vmatpush2.bf16.msra.mxu0 0
  %371 = vmatprep.subr.bf16.mxu0 0
  %372 = vmatpush2.bf16.msra.mxu0 0
  %373 = vmatprep.subr.bf16.mxu0 0
  %374 = vmatpush2.bf16.msra.mxu0 0
  %375 = vmatprep.mubr.bf16.mxu0 0
  %376 = vmatmul.mubr.bf16.gmra.mxu0 %v338
  %v377 = vpop.f32.mrf.mxu0
  %v378 = vadd.f32 0.0, %v377
  %v379 = vpop.f32.mrf.mxu0
  %v380 = vpop.f32.mrf.mxu0
  %v381 = vpop.f32.mrf.mxu0
  %382 = vdwg.mxu0
  %v383 = vadd.f32 %v332, %v378
  %s384 = scalar_lea.vmem %s1, 14
  %v385 = vld [vmem:[%s384] sm:$0x3]
  %386 = vrot.lane.b32.xlu0 %v28, 114
  %v387 = vpop.permute.xlu0 %386
  %v389 = vsel %vm35, %v385, 0
  %v392 = vsel %vm39, %v387, 0
  %394 = vmatprep.subr.bf16.mxu0 0
  %395 = vmatpush1.bf16.msra.mxu0 0
  %396 = vmatprep.subr.bf16.mxu0 0
  %397 = vmatpush1.bf16.msra.mxu0 0
  %398 = vmatprep.subr.bf16.mxu0 0
  %399 = vmatpush1.bf16.msra.mxu0 0
  %400 = vmatprep.subr.bf16.mxu0 0
  %401 = vmatpush1.bf16.msra.mxu0 0
  %402 = vmatprep.subr.bf16.mxu0 0
  %403 = vmatpush1.bf16.msra.mxu0 0
  %404 = vmatprep.subr.bf16.mxu0 0
  %405 = vmatpush1.bf16.msra.mxu0 0
  %406 = vmatprep.subr.bf16.mxu0 0
  %407 = vmatpush1.bf16.msra.mxu0 0
  %408 = vmatprep.subr.bf16.mxu0 0
  %409 = vmatpush1.bf16.msra.mxu0 %v392
  %410 = vmatprep.subr.bf16.mxu0 0
  %411 = vmatpush2.bf16.msra.mxu0 0
  %412 = vmatprep.subr.bf16.mxu0 0
  %413 = vmatpush2.bf16.msra.mxu0 0
  %414 = vmatprep.subr.bf16.mxu0 0
  %415 = vmatpush2.bf16.msra.mxu0 0
  %416 = vmatprep.subr.bf16.mxu0 0
  %417 = vmatpush2.bf16.msra.mxu0 0
  %418 = vmatprep.subr.bf16.mxu0 0
  %419 = vmatpush2.bf16.msra.mxu0 0
  %420 = vmatprep.subr.bf16.mxu0 0
  %421 = vmatpush2.bf16.msra.mxu0 0
  %422 = vmatprep.subr.bf16.mxu0 0
  %423 = vmatpush2.bf16.msra.mxu0 0
  %424 = vmatprep.subr.bf16.mxu0 0
  %425 = vmatpush2.bf16.msra.mxu0 0
  %426 = vmatprep.mubr.bf16.mxu0 0
  %427 = vmatmul.mubr.bf16.gmra.mxu0 %v389
  %v428 = vpop.f32.mrf.mxu0
  %v429 = vadd.f32 0.0, %v428
  %v430 = vpop.f32.mrf.mxu0
  %v431 = vpop.f32.mrf.mxu0
  %v432 = vpop.f32.mrf.mxu0
  %433 = vdwg.mxu0
  %v434 = vadd.f32 %v383, %v429
  %s435 = scalar_lea.vmem %s1, 16
  %v436 = vld [vmem:[%s435] sm:$0x3]
  %437 = vrot.lane.b32.xlu0 %v28, 112
  %v438 = vpop.permute.xlu0 %437
  %v440 = vsel %vm35, %v436, 0
  %v443 = vsel %vm39, %v438, 0
  %445 = vmatprep.subr.bf16.mxu0 0
  %446 = vmatpush1.bf16.msra.mxu0 0
  %447 = vmatprep.subr.bf16.mxu0 0
  %448 = vmatpush1.bf16.msra.mxu0 0
  %449 = vmatprep.subr.bf16.mxu0 0
  %450 = vmatpush1.bf16.msra.mxu0 0
  %451 = vmatprep.subr.bf16.mxu0 0
  %452 = vmatpush1.bf16.msra.mxu0 0
  %453 = vmatprep.subr.bf16.mxu0 0
  %454 = vmatpush1.bf16.msra.mxu0 0
  %455 = vmatprep.subr.bf16.mxu0 0
  %456 = vmatpush1.bf16.msra.mxu0 0
  %457 = vmatprep.subr.bf16.mxu0 0
  %458 = vmatpush1.bf16.msra.mxu0 0
  %459 = vmatprep.subr.bf16.mxu0 0
  %460 = vmatpush1.bf16.msra.mxu0 %v443
  %461 = vmatprep.subr.bf16.mxu0 0
  %462 = vmatpush2.bf16.msra.mxu0 0
  %463 = vmatprep.subr.bf16.mxu0 0
  %464 = vmatpush2.bf16.msra.mxu0 0
  %465 = vmatprep.subr.bf16.mxu0 0
  %466 = vmatpush2.bf16.msra.mxu0 0
  %467 = vmatprep.subr.bf16.mxu0 0
  %468 = vmatpush2.bf16.msra.mxu0 0
  %469 = vmatprep.subr.bf16.mxu0 0
  %470 = vmatpush2.bf16.msra.mxu0 0
  %471 = vmatprep.subr.bf16.mxu0 0
  %472 = vmatpush2.bf16.msra.mxu0 0
  %473 = vmatprep.subr.bf16.mxu0 0
  %474 = vmatpush2.bf16.msra.mxu0 0
  %475 = vmatprep.subr.bf16.mxu0 0
  %476 = vmatpush2.bf16.msra.mxu0 0
  %477 = vmatprep.mubr.bf16.mxu0 0
  %478 = vmatmul.mubr.bf16.gmra.mxu0 %v440
  %v479 = vpop.f32.mrf.mxu0
  %v480 = vadd.f32 0.0, %v479
  %v481 = vpop.f32.mrf.mxu0
  %v482 = vpop.f32.mrf.mxu0
  %v483 = vpop.f32.mrf.mxu0
  %484 = vdwg.mxu0
  %v485 = vadd.f32 %v434, %v480
  %s486 = scalar_lea.vmem %s1, 18
  %v487 = vld [vmem:[%s486] sm:$0x3]
  %488 = vrot.lane.b32.xlu0 %v28, 110
  %v489 = vpop.permute.xlu0 %488
  %v491 = vsel %vm35, %v487, 0
  %v494 = vsel %vm39, %v489, 0
  %496 = vmatprep.subr.bf16.mxu0 0
  %497 = vmatpush1.bf16.msra.mxu0 0
  %498 = vmatprep.subr.bf16.mxu0 0
  %499 = vmatpush1.bf16.msra.mxu0 0
  %500 = vmatprep.subr.bf16.mxu0 0
  %501 = vmatpush1.bf16.msra.mxu0 0
  %502 = vmatprep.subr.bf16.mxu0 0
  %503 = vmatpush1.bf16.msra.mxu0 0
  %504 = vmatprep.subr.bf16.mxu0 0
  %505 = vmatpush1.bf16.msra.mxu0 0
  %506 = vmatprep.subr.bf16.mxu0 0
  %507 = vmatpush1.bf16.msra.mxu0 0
  %508 = vmatprep.subr.bf16.mxu0 0
  %509 = vmatpush1.bf16.msra.mxu0 0
  %510 = vmatprep.subr.bf16.mxu0 0
  %511 = vmatpush1.bf16.msra.mxu0 %v494
  %512 = vmatprep.subr.bf16.mxu0 0
  %513 = vmatpush2.bf16.msra.mxu0 0
  %514 = vmatprep.subr.bf16.mxu0 0
  %515 = vmatpush2.bf16.msra.mxu0 0
  %516 = vmatprep.subr.bf16.mxu0 0
  %517 = vmatpush2.bf16.msra.mxu0 0
  %518 = vmatprep.subr.bf16.mxu0 0
  %519 = vmatpush2.bf16.msra.mxu0 0
  %520 = vmatprep.subr.bf16.mxu0 0
  %521 = vmatpush2.bf16.msra.mxu0 0
  %522 = vmatprep.subr.bf16.mxu0 0
  %523 = vmatpush2.bf16.msra.mxu0 0
  %524 = vmatprep.subr.bf16.mxu0 0
  %525 = vmatpush2.bf16.msra.mxu0 0
  %526 = vmatprep.subr.bf16.mxu0 0
  %527 = vmatpush2.bf16.msra.mxu0 0
  %528 = vmatprep.mubr.bf16.mxu0 0
  %529 = vmatmul.mubr.bf16.gmra.mxu0 %v491
  %v530 = vpop.f32.mrf.mxu0
  %v531 = vadd.f32 0.0, %v530
  %v532 = vpop.f32.mrf.mxu0
  %v533 = vpop.f32.mrf.mxu0
  %v534 = vpop.f32.mrf.mxu0
  %535 = vdwg.mxu0
  %v536 = vadd.f32 %v485, %v531
  %s537 = scalar_lea.vmem %s1, 20
  %v538 = vld [vmem:[%s537] sm:$0x3]
  %539 = vrot.lane.b32.xlu0 %v28, 108
  %v540 = vpop.permute.xlu0 %539
  %v542 = vsel %vm35, %v538, 0
  %v545 = vsel %vm39, %v540, 0
  %547 = vmatprep.subr.bf16.mxu0 0
  %548 = vmatpush1.bf16.msra.mxu0 0
  %549 = vmatprep.subr.bf16.mxu0 0
  %550 = vmatpush1.bf16.msra.mxu0 0
  %551 = vmatprep.subr.bf16.mxu0 0
  %552 = vmatpush1.bf16.msra.mxu0 0
  %553 = vmatprep.subr.bf16.mxu0 0
  %554 = vmatpush1.bf16.msra.mxu0 0
  %555 = vmatprep.subr.bf16.mxu0 0
  %556 = vmatpush1.bf16.msra.mxu0 0
  %557 = vmatprep.subr.bf16.mxu0 0
  %558 = vmatpush1.bf16.msra.mxu0 0
  %559 = vmatprep.subr.bf16.mxu0 0
  %560 = vmatpush1.bf16.msra.mxu0 0
  %561 = vmatprep.subr.bf16.mxu0 0
  %562 = vmatpush1.bf16.msra.mxu0 %v545
  %563 = vmatprep.subr.bf16.mxu0 0
  %564 = vmatpush2.bf16.msra.mxu0 0
  %565 = vmatprep.subr.bf16.mxu0 0
  %566 = vmatpush2.bf16.msra.mxu0 0
  %567 = vmatprep.subr.bf16.mxu0 0
  %568 = vmatpush2.bf16.msra.mxu0 0
  %569 = vmatprep.subr.bf16.mxu0 0
  %570 = vmatpush2.bf16.msra.mxu0 0
  %571 = vmatprep.subr.bf16.mxu0 0
  %572 = vmatpush2.bf16.msra.mxu0 0
  %573 = vmatprep.subr.bf16.mxu0 0
  %574 = vmatpush2.bf16.msra.mxu0 0
  %575 = vmatprep.subr.bf16.mxu0 0
  %576 = vmatpush2.bf16.msra.mxu0 0
  %577 = vmatprep.subr.bf16.mxu0 0
  %578 = vmatpush2.bf16.msra.mxu0 0
  %579 = vmatprep.mubr.bf16.mxu0 0
  %580 = vmatmul.mubr.bf16.gmra.mxu0 %v542
  %v581 = vpop.f32.mrf.mxu0
  %v582 = vadd.f32 0.0, %v581
  %v583 = vpop.f32.mrf.mxu0
  %v584 = vpop.f32.mrf.mxu0
  %v585 = vpop.f32.mrf.mxu0
  %586 = vdwg.mxu0
  %v587 = vadd.f32 %v536, %v582
  %s588 = scalar_lea.vmem %s1, 22
  %v589 = vld [vmem:[%s588] sm:$0x3]
  %590 = vrot.lane.b32.xlu0 %v28, 106
  %v591 = vpop.permute.xlu0 %590
  %v593 = vsel %vm35, %v589, 0
  %v596 = vsel %vm39, %v591, 0
  %598 = vmatprep.subr.bf16.mxu0 0
  %599 = vmatpush1.bf16.msra.mxu0 0
  %600 = vmatprep.subr.bf16.mxu0 0
  %601 = vmatpush1.bf16.msra.mxu0 0
  %602 = vmatprep.subr.bf16.mxu0 0
  %603 = vmatpush1.bf16.msra.mxu0 0
  %604 = vmatprep.subr.bf16.mxu0 0
  %605 = vmatpush1.bf16.msra.mxu0 0
  %606 = vmatprep.subr.bf16.mxu0 0
  %607 = vmatpush1.bf16.msra.mxu0 0
  %608 = vmatprep.subr.bf16.mxu0 0
  %609 = vmatpush1.bf16.msra.mxu0 0
  %610 = vmatprep.subr.bf16.mxu0 0
  %611 = vmatpush1.bf16.msra.mxu0 0
  %612 = vmatprep.subr.bf16.mxu0 0
  %613 = vmatpush1.bf16.msra.mxu0 %v596
  %614 = vmatprep.subr.bf16.mxu0 0
  %615 = vmatpush2.bf16.msra.mxu0 0
  %616 = vmatprep.subr.bf16.mxu0 0
  %617 = vmatpush2.bf16.msra.mxu0 0
  %618 = vmatprep.subr.bf16.mxu0 0
  %619 = vmatpush2.bf16.msra.mxu0 0
  %620 = vmatprep.subr.bf16.mxu0 0
  %621 = vmatpush2.bf16.msra.mxu0 0
  %622 = vmatprep.subr.bf16.mxu0 0
  %623 = vmatpush2.bf16.msra.mxu0 0
  %624 = vmatprep.subr.bf16.mxu0 0
  %625 = vmatpush2.bf16.msra.mxu0 0
  %626 = vmatprep.subr.bf16.mxu0 0
  %627 = vmatpush2.bf16.msra.mxu0 0
  %628 = vmatprep.subr.bf16.mxu0 0
  %629 = vmatpush2.bf16.msra.mxu0 0
  %630 = vmatprep.mubr.bf16.mxu0 0
  %631 = vmatmul.mubr.bf16.gmra.mxu0 %v593
  %v632 = vpop.f32.mrf.mxu0
  %v633 = vadd.f32 0.0, %v632
  %v634 = vpop.f32.mrf.mxu0
  %v635 = vpop.f32.mrf.mxu0
  %v636 = vpop.f32.mrf.mxu0
  %637 = vdwg.mxu0
  %v638 = vadd.f32 %v587, %v633
  %s639 = scalar_lea.vmem %s1, 24
  %v640 = vld [vmem:[%s639] sm:$0x3]
  %641 = vrot.lane.b32.xlu0 %v28, 104
  %v642 = vpop.permute.xlu0 %641
  %v644 = vsel %vm35, %v640, 0
  %v647 = vsel %vm39, %v642, 0
  %649 = vmatprep.subr.bf16.mxu0 0
  %650 = vmatpush1.bf16.msra.mxu0 0
  %651 = vmatprep.subr.bf16.mxu0 0
  %652 = vmatpush1.bf16.msra.mxu0 0
  %653 = vmatprep.subr.bf16.mxu0 0
  %654 = vmatpush1.bf16.msra.mxu0 0
  %655 = vmatprep.subr.bf16.mxu0 0
  %656 = vmatpush1.bf16.msra.mxu0 0
  %657 = vmatprep.subr.bf16.mxu0 0
  %658 = vmatpush1.bf16.msra.mxu0 0
  %659 = vmatprep.subr.bf16.mxu0 0
  %660 = vmatpush1.bf16.msra.mxu0 0
  %661 = vmatprep.subr.bf16.mxu0 0
  %662 = vmatpush1.bf16.msra.mxu0 0
  %663 = vmatprep.subr.bf16.mxu0 0
  %664 = vmatpush1.bf16.msra.mxu0 %v647
  %665 = vmatprep.subr.bf16.mxu0 0
  %666 = vmatpush2.bf16.msra.mxu0 0
  %667 = vmatprep.subr.bf16.mxu0 0
  %668 = vmatpush2.bf16.msra.mxu0 0
  %669 = vmatprep.subr.bf16.mxu0 0
  %670 = vmatpush2.bf16.msra.mxu0 0
  %671 = vmatprep.subr.bf16.mxu0 0
  %672 = vmatpush2.bf16.msra.mxu0 0
  %673 = vmatprep.subr.bf16.mxu0 0
  %674 = vmatpush2.bf16.msra.mxu0 0
  %675 = vmatprep.subr.bf16.mxu0 0
  %676 = vmatpush2.bf16.msra.mxu0 0
  %677 = vmatprep.subr.bf16.mxu0 0
  %678 = vmatpush2.bf16.msra.mxu0 0
  %679 = vmatprep.subr.bf16.mxu0 0
  %680 = vmatpush2.bf16.msra.mxu0 0
  %681 = vmatprep.mubr.bf16.mxu0 0
  %682 = vmatmul.mubr.bf16.gmra.mxu0 %v644
  %v683 = vpop.f32.mrf.mxu0
  %v684 = vadd.f32 0.0, %v683
  %v685 = vpop.f32.mrf.mxu0
  %v686 = vpop.f32.mrf.mxu0
  %v687 = vpop.f32.mrf.mxu0
  %688 = vdwg.mxu0
  %v689 = vadd.f32 %v638, %v684
  %s690 = scalar_lea.vmem %s1, 26
  %v691 = vld [vmem:[%s690] sm:$0x3]
  %692 = vrot.lane.b32.xlu0 %v28, 102
  %v693 = vpop.permute.xlu0 %692
  %v695 = vsel %vm35, %v691, 0
  %v698 = vsel %vm39, %v693, 0
  %700 = vmatprep.subr.bf16.mxu0 0
  %701 = vmatpush1.bf16.msra.mxu0 0
  %702 = vmatprep.subr.bf16.mxu0 0
  %703 = vmatpush1.bf16.msra.mxu0 0
  %704 = vmatprep.subr.bf16.mxu0 0
  %705 = vmatpush1.bf16.msra.mxu0 0
  %706 = vmatprep.subr.bf16.mxu0 0
  %707 = vmatpush1.bf16.msra.mxu0 0
  %708 = vmatprep.subr.bf16.mxu0 0
  %709 = vmatpush1.bf16.msra.mxu0 0
  %710 = vmatprep.subr.bf16.mxu0 0
  %711 = vmatpush1.bf16.msra.mxu0 0
  %712 = vmatprep.subr.bf16.mxu0 0
  %713 = vmatpush1.bf16.msra.mxu0 0
  %714 = vmatprep.subr.bf16.mxu0 0
  %715 = vmatpush1.bf16.msra.mxu0 %v698
  %716 = vmatprep.subr.bf16.mxu0 0
  %717 = vmatpush2.bf16.msra.mxu0 0
  %718 = vmatprep.subr.bf16.mxu0 0
  %719 = vmatpush2.bf16.msra.mxu0 0
  %720 = vmatprep.subr.bf16.mxu0 0
  %721 = vmatpush2.bf16.msra.mxu0 0
  %722 = vmatprep.subr.bf16.mxu0 0
  %723 = vmatpush2.bf16.msra.mxu0 0
  %724 = vmatprep.subr.bf16.mxu0 0
  %725 = vmatpush2.bf16.msra.mxu0 0
  %726 = vmatprep.subr.bf16.mxu0 0
  %727 = vmatpush2.bf16.msra.mxu0 0
  %728 = vmatprep.subr.bf16.mxu0 0
  %729 = vmatpush2.bf16.msra.mxu0 0
  %730 = vmatprep.subr.bf16.mxu0 0
  %731 = vmatpush2.bf16.msra.mxu0 0
  %732 = vmatprep.mubr.bf16.mxu0 0
  %733 = vmatmul.mubr.bf16.gmra.mxu0 %v695
  %v734 = vpop.f32.mrf.mxu0
  %v735 = vadd.f32 0.0, %v734
  %v736 = vpop.f32.mrf.mxu0
  %v737 = vpop.f32.mrf.mxu0
  %v738 = vpop.f32.mrf.mxu0
  %739 = vdwg.mxu0
  %v740 = vadd.f32 %v689, %v735
  %s741 = scalar_lea.vmem %s1, 28
  %v742 = vld [vmem:[%s741] sm:$0x3]
  %743 = vrot.lane.b32.xlu0 %v28, 100
  %v744 = vpop.permute.xlu0 %743
  %v746 = vsel %vm35, %v742, 0
  %v749 = vsel %vm39, %v744, 0
  %751 = vmatprep.subr.bf16.mxu0 0
  %752 = vmatpush1.bf16.msra.mxu0 0
  %753 = vmatprep.subr.bf16.mxu0 0
  %754 = vmatpush1.bf16.msra.mxu0 0
  %755 = vmatprep.subr.bf16.mxu0 0
  %756 = vmatpush1.bf16.msra.mxu0 0
  %757 = vmatprep.subr.bf16.mxu0 0
  %758 = vmatpush1.bf16.msra.mxu0 0
  %759 = vmatprep.subr.bf16.mxu0 0
  %760 = vmatpush1.bf16.msra.mxu0 0
  %761 = vmatprep.subr.bf16.mxu0 0
  %762 = vmatpush1.bf16.msra.mxu0 0
  %763 = vmatprep.subr.bf16.mxu0 0
  %764 = vmatpush1.bf16.msra.mxu0 0
  %765 = vmatprep.subr.bf16.mxu0 0
  %766 = vmatpush1.bf16.msra.mxu0 %v749
  %767 = vmatprep.subr.bf16.mxu0 0
  %768 = vmatpush2.bf16.msra.mxu0 0
  %769 = vmatprep.subr.bf16.mxu0 0
  %770 = vmatpush2.bf16.msra.mxu0 0
  %771 = vmatprep.subr.bf16.mxu0 0
  %772 = vmatpush2.bf16.msra.mxu0 0
  %773 = vmatprep.subr.bf16.mxu0 0
  %774 = vmatpush2.bf16.msra.mxu0 0
  %775 = vmatprep.subr.bf16.mxu0 0
  %776 = vmatpush2.bf16.msra.mxu0 0
  %777 = vmatprep.subr.bf16.mxu0 0
  %778 = vmatpush2.bf16.msra.mxu0 0
  %779 = vmatprep.subr.bf16.mxu0 0
  %780 = vmatpush2.bf16.msra.mxu0 0
  %781 = vmatprep.subr.bf16.mxu0 0
  %782 = vmatpush2.bf16.msra.mxu0 0
  %783 = vmatprep.mubr.bf16.mxu0 0
  %784 = vmatmul.mubr.bf16.gmra.mxu0 %v746
  %v785 = vpop.f32.mrf.mxu0
  %v786 = vadd.f32 0.0, %v785
  %v787 = vpop.f32.mrf.mxu0
  %v788 = vpop.f32.mrf.mxu0
  %v789 = vpop.f32.mrf.mxu0
  %790 = vdwg.mxu0
  %v791 = vadd.f32 %v740, %v786
  %v792 = vld [vmem:[%s2] sm:$0xf]
  %794 = vset.pattern.permute.xlu0 0
  %795 = vperm.xlu0 %794, %v792
  %v796 = vpop.permute.xlu0 %795
  %v798 = vmul.f32 %v791, %v796
  %v799 = vld [vmem:[%s3] sm:$0xf]
  %801 = vset.pattern.permute.xlu0 0
  %802 = vperm.xlu0 %801, %v799
  %v803 = vpop.permute.xlu0 %802
  %v805 = vadd.f32 %v798, %v803
  %vm806 = vcmask 519168
  %807 = vst.msk [vmem:[%s4] sm:$0xf] %vm806, %v805
  // Predicated region
  $region18: #{_lambda_.9} parent=0 // pred_check
    _
  $region19: #{_lambda_.9} parent=0 // pred_check_branch
    %809 = sbr.rel (0) target = $region21
  $region20: #{_lambda_.9} parent=0 // pred_region
    _
  $region21: #{_lambda_.9} parent=0 // pred_fallthru
    _
  // Predicated region
  $region22: #{_lambda_.9} parent=0 // pred_check
    _
  $region23: #{_lambda_.9} parent=0 // pred_check_branch
    %811 = sbr.rel (0) target = $region25
  $region24: #{_lambda_.9} parent=0 // pred_region
    _
  $region25: #{_lambda_.9} parent=0 // pred_fallthru
    _

</llo_original>
